<compile_context>
chip_gen: v7x
topology: tpu7x:2x2x1
jax: 0.10.0
libtpu: 0.0.40
codegen_flags: <defaults>
</compile_context>

<pallas_src>
import jax
import jax.numpy as jnp
import numpy as np
from jax import lax
from jax.experimental import pallas as pl
from jax.experimental.pallas import tpu as pltpu


def _round_up(a, m):
    return (a + m - 1) // m * m


def _sigmoid(x):
    # sigmoid(x) == 0.5 * (1 + tanh(x/2)): exactly one EUP op per gate (the logistic
    # lowering may otherwise cost exp + divide; EUP is a single unit per core).
    return 0.5 * (jnp.tanh(0.5 * x) + 1.0)


# ----------------------------- Pallas kernel --------------------------------
def _encoder_lstm_kernel(len_ref, x_ref, wih_ref, whh_ref, b_ref,
                         ctx_ref, ht_ref, ct_ref, gx_ref):
    """One grid step = one (batch block, time block). Time axis is innermost/sequential."""
    ti = pl.program_id(1)
    TT, BB, E = x_ref.shape             # timesteps / batch rows per block (static)
    H = ht_ref.shape[1]

    @pl.when(ti == 0)
    def _init():
        ht_ref[...] = jnp.zeros_like(ht_ref)
        ct_ref[...] = jnp.zeros_like(ct_ref)

    # ---- hoisted input projection (off the recurrent critical path) ----------------
    # One large (TT*BB, E) x (E, 4H) MXU matmul per time block, bias folded in once.
    # The pipeliner overlaps it with the x-block DMA; the recurrence below only needs K=H.
    x_flat = x_ref[...].reshape(TT * BB, E)
    gx_ref[...] = jnp.dot(x_flat, wih_ref[...],
                          preferred_element_type=jnp.float32) + b_ref[...]

    # Resident output blocks double as the recurrent state (no scratch, no per-step copy).
    h = ht_ref[...]                     # (BB, H) f32
    c = ct_ref[...]                     # (BB, H) f32
    whh = whh_ref[...]                  # (H, 4H)
    lens = len_ref[...]                 # (BB, 1) int32
    t_base = ti * TT

    # Per-block validity mask: one VPU compare instead of TT tiny per-step compares.
    step_ids = t_base + lax.broadcasted_iota(jnp.int32, (BB, TT), 1)
    valid = step_ids < lens             # (BB, TT) bool

    # TODO(synk): once TT grows past ~8 at real sizes, switch this static unroll to
    # lax.fori_loop(..., unroll=2..4) to bound vreg live ranges / spill traffic.
    for k in range(TT):                 # fully unrolled; TT is a small static constant
        gx_k = gx_ref[k * BB:(k + 1) * BB, :]                 # (BB, 4H) f32, precomputed
        gates = gx_k + jnp.dot(h.astype(whh.dtype), whh,
                               preferred_element_type=jnp.float32)

        # PyTorch gate order: i, f, g, o. (Slices are 128-lane aligned once H % 128 == 0.)
        i_g = _sigmoid(gates[:, 0 * H:1 * H])
        f_g = _sigmoid(gates[:, 1 * H:2 * H])
        g_g = jnp.tanh(gates[:, 2 * H:3 * H])
        o_g = _sigmoid(gates[:, 3 * H:4 * H])

        c_new = f_g * c + i_g * g_g
        h_new = o_g * jnp.tanh(c_new)

        mask = valid[:, k:k + 1]        # (BB, 1): is this sample still inside its sequence?
        c = jnp.where(mask, c_new, c)
        h = jnp.where(mask, h_new, h)
        # pad_packed_sequence pads with zeros past each sample's length; ctx is written
        # batch-major so the wrapper never has to transpose it.
        ctx_ref[:, k, :] = jnp.where(mask, h_new, 0.0).astype(ctx_ref.dtype)

    # Write state back once per time block; the resident block carries it to the next
    # block, and after the final block it equals the state at each sample's last valid step.
    ht_ref[...] = h
    ct_ref[...] = c


# ----------------------------- wrapper ---------------------------------------
def encoder_lstm_pallas(tokens, lengths, params, *, time_block=8,
                        batch_block=64, use_bf16_matmul=False, ctx_dtype=None):
    """tokens: (B, T) int32, lengths: (B,) int32. Returns (ctx, decoder_init, c_t)."""
    emb = params["embedding"]                        # (V, E)
    w_ih, w_hh = params["w_ih"], params["w_hh"]      # (4H, E), (4H, H)
    b_ih, b_hh = params["b_ih"], params["b_hh"]      # (4H,), (4H,)
    w_dec, b_dec = params["w_dec"], params["b_dec"]  # (H, H), (H,)

    B, T = tokens.shape
    E = emb.shape[1]
    H = w_hh.shape[1]
    mm_dtype = jnp.bfloat16 if use_bf16_matmul else jnp.float32
    if ctx_dtype is None:
        # ctx is the dominant HBM writeback; emit it in the matmul dtype by default.
        ctx_dtype = jnp.bfloat16 if use_bf16_matmul else jnp.float32

    # Batch: pad to a sublane-full multiple (16 for bf16 packing). Default batch_block=64
    # keeps >=2 batch blocks for typical B<=128 so both v7x TensorCores get work
    # ("parallel" leading grid axis); v5e/v6e (1 TC) callers can pass 128.
    sub = 16 if use_bf16_matmul else 8
    BB = min(_round_up(B, sub), _round_up(batch_block, sub))
    B_pad = _round_up(B, BB)
    # Time block: multiple of 8 (second-minor dim of the batch-major ctx block).
    TT = _round_up(min(time_block, max(T, 1)), 8)
    T_pad = _round_up(T, TT)

    # Pad tokens / lengths; padded rows and padded steps are inert (length==0 / t>=length).
    # NOTE: pad token id 0 is only ever read for masked positions, so it need not be padding_idx.
    tok_p = jnp.zeros((B_pad, T_pad), jnp.int32).at[:B, :T].set(tokens.astype(jnp.int32))
    len_p = jnp.zeros((B_pad,), jnp.int32).at[:B].set(lengths.astype(jnp.int32))

    # Embedding gather directly into time-major layout (padding_idx row is zero in the
    # table); dropout in eval mode is the identity.
    x_tm = jnp.take(emb, tok_p.T, axis=0).astype(mm_dtype)      # (T_pad, B_pad, E)

    w_ih_t = w_ih.T.astype(mm_dtype)                             # (E, 4H)
    w_hh_t = w_hh.T.astype(mm_dtype)                             # (H, 4H)
    bias = (b_ih + b_hh).reshape(1, 4 * H).astype(jnp.float32)   # (1, 4H)
    len2d = len_p.reshape(B_pad, 1)                              # (B_pad, 1)

    nb, nt = B_pad // BB, T_pad // TT

    # VMEM budget from actual block sizes (+50% headroom); cap at 64 MiB so the same
    # tiling remains legal on v7x (64 MiB physical) as well as v5e/v6e (128 MiB).
    mm_b = jnp.dtype(mm_dtype).itemsize
    ctx_b = jnp.dtype(ctx_dtype).itemsize
    vmem_est = (2 * TT * BB * E * mm_b            # x block (double-buffered)
                + 2 * BB * TT * H * ctx_b         # ctx block (double-buffered)
                + (E + H) * 4 * H * mm_b          # W_ih^T + W_hh^T (single-buffered)
                + 4 * H * 4 + 2 * BB * 4          # bias, lengths
                + 2 * 2 * BB * H * 4              # ht, ct resident blocks
                + TT * BB * 4 * H * 4)            # gates_x scratch (f32)
    vmem_limit = int(min(64 << 20, max(32 << 20, int(vmem_est * 1.5) + (2 << 20))))

    out_shapes = (
        jax.ShapeDtypeStruct((B_pad, T_pad, H), ctx_dtype),      # ctx (batch-major!)
        jax.ShapeDtypeStruct((B_pad, H), jnp.float32),           # h_t (state accumulator)
        jax.ShapeDtypeStruct((B_pad, H), jnp.float32),           # c_t (state accumulator)
    )

    const = pl.Buffered(1)   # constant operands: no double-buffering, half the VMEM

    ctx_pad, h_t, c_t = pl.pallas_call(
        _encoder_lstm_kernel,
        out_shape=out_shapes,
        grid_spec=pltpu.PrefetchScalarGridSpec(
            num_scalar_prefetch=0,
            grid=(nb, nt),                                              # (batch, time) blocks
            in_specs=[
                pl.BlockSpec((BB, 1), lambda bi, ti: (bi, 0)),          # lengths
                pl.BlockSpec((TT, BB, E), lambda bi, ti: (ti, bi, 0)),  # x time block
                pl.BlockSpec((E, 4 * H), lambda bi, ti: (0, 0),
                             pipeline_mode=const),                      # W_ih^T (constant)
                pl.BlockSpec((H, 4 * H), lambda bi, ti: (0, 0),
                             pipeline_mode=const),                      # W_hh^T (constant)
                pl.BlockSpec((1, 4 * H), lambda bi, ti: (0, 0),
                             pipeline_mode=const),                      # bias   (constant)
            ],
            out_specs=[
                pl.BlockSpec((BB, TT, H), lambda bi, ti: (bi, ti, 0)),  # ctx (batch-major)
                pl.BlockSpec((BB, H), lambda bi, ti: (bi, 0)),          # h_t (resident)
                pl.BlockSpec((BB, H), lambda bi, ti: (bi, 0)),          # c_t (resident)
            ],
            scratch_shapes=[pltpu.VMEM((TT * BB, 4 * H), jnp.float32)], # hoisted gates_x
        ),
        compiler_params=pltpu.CompilerParams(
            # batch blocks are independent (2 TCs on v7x); time is the sequential recurrence
            # and MUST stay "arbitrary"/innermost (resident-state correctness).
            dimension_semantics=("parallel", "arbitrary"),
            vmem_limit_bytes=vmem_limit),
    )(len2d, x_tm, w_ih_t, w_hh_t, bias)

    ctx = ctx_pad[:B, :T]                                        # already batch_first (B,T,H)
    h_t, c_t = h_t[:B], c_t[:B]
    # Tiny (B,H)x(H,H) projection; per perf review this is cheaper as a plain XLA op.
    dec = jnp.tanh(h_t @ w_dec.T + b_dec)
    return ctx, dec, c_t


# ----------------------------- pure-JAX reference ----------------------------
def encoder_lstm_ref(tokens, lengths, params):
    emb = params["embedding"]
    w_ih, w_hh = params["w_ih"], params["w_hh"]
    b_ih, b_hh = params["b_ih"], params["b_hh"]
    w_dec, b_dec = params["w_dec"], params["b_dec"]

    x = jnp.take(emb, tokens, axis=0)                # (B, T, E)
    B, T, _ = x.shape
    H = w_hh.shape[1]
    x_tm = jnp.transpose(x, (1, 0, 2))

    def step(carry, inp):
        h, c = carry
        x_t, t = inp
        gates = x_t @ w_ih.T + h @ w_hh.T + b_ih + b_hh
        i_g, f_g, g_g, o_g = jnp.split(gates, 4, axis=1)
        i_g, f_g, o_g = jax.nn.sigmoid(i_g), jax.nn.sigmoid(f_g), jax.nn.sigmoid(o_g)
        g_g = jnp.tanh(g_g)
        c_new = f_g * c + i_g * g_g
        h_new = o_g * jnp.tanh(c_new)
        mask = (t < lengths)[:, None]
        c = jnp.where(mask, c_new, c)
        h = jnp.where(mask, h_new, h)
        out = jnp.where(mask, h_new, 0.0)
        return (h, c), out

    init = (jnp.zeros((B, H), jnp.float32), jnp.zeros((B, H), jnp.float32))
    (h_t, c_t), ctx_tm = lax.scan(step, init, (x_tm, jnp.arange(T, dtype=jnp.int32)))
    dec = jnp.tanh(h_t @ w_dec.T + b_dec)
    return jnp.transpose(ctx_tm, (1, 0, 2)), dec, c_t


# ----------------------------- parameter init --------------------------------
def init_params(key, vocab_size, padding_idx, E, H):
    ks = jax.random.split(key, 6)
    scale = 0.1
    embedding = scale * jax.random.normal(ks[0], (vocab_size, E), jnp.float32)
    embedding = embedding.at[padding_idx].set(0.0)   # padding_idx row = 0
    return {
        "embedding": embedding,
        "w_ih": scale * jax.random.normal(ks[1], (4 * H, E), jnp.float32),
        "w_hh": scale * jax.random.normal(ks[2], (4 * H, H), jnp.float32),
        "b_ih": scale * jax.random.normal(ks[3], (4 * H,), jnp.float32),
        "b_hh": scale * jax.random.normal(ks[4], (4 * H,), jnp.float32),
        "w_dec": scale * jax.random.normal(ks[5], (H, H), jnp.float32),
        "b_dec": jnp.zeros((H,), jnp.float32),
    }


def _to_np32(x):
    return np.asarray(jnp.asarray(x, jnp.float32))


if __name__ == "__main__":
    # Small shapes: batch=12, seq=12 (spans 2 time blocks), vocab=50, embed=32, hidden=32.
    B, T, V, E, H = 12, 12, 50, 32, 32
    PAD = 0

    key = jax.random.PRNGKey(0)
    k_tok, k_len, k_par = jax.random.split(key, 3)

    lengths = jax.random.randint(k_len, (B,), 1, T + 1, dtype=jnp.int32)
    lengths = lengths.at[0].set(T)                                # max length == T
    tokens = jax.random.randint(k_tok, (B, T), 1, V, dtype=jnp.int32)
    t_idx = jnp.arange(T, dtype=jnp.int32)[None, :]
    tokens = jnp.where(t_idx < lengths[:, None], tokens, PAD)     # zero-pad past lengths

    params = init_params(k_par, V, PAD, E, H)
    ctx_r, dec_r, c_r = encoder_lstm_ref(tokens, lengths, params)

    # 1) Full-f32 path, default tiling (time spans 2 blocks -> tests resident state carry).
    ctx, dec_init, c_t = jax.block_until_ready(
        encoder_lstm_pallas(tokens, lengths, params))
    np.testing.assert_allclose(_to_np32(ctx), np.asarray(ctx_r), atol=1e-5, rtol=1e-5)
    np.testing.assert_allclose(_to_np32(dec_init), np.asarray(dec_r), atol=1e-5, rtol=1e-5)
    np.testing.assert_allclose(_to_np32(c_t), np.asarray(c_r), atol=1e-5, rtol=1e-5)

    # 2) Small batch blocks -> >1 "parallel" batch block (v7x-style split), still exact.
    ctx2, dec2, c2 = jax.block_until_ready(
        encoder_lstm_pallas(tokens, lengths, params, batch_block=8))
    np.testing.assert_allclose(_to_np32(ctx2), np.asarray(ctx_r), atol=1e-5, rtol=1e-5)
    np.testing.assert_allclose(_to_np32(dec2), np.asarray(dec_r), atol=1e-5, rtol=1e-5)
    np.testing.assert_allclose(_to_np32(c2), np.asarray(c_r), atol=1e-5, rtol=1e-5)

    # 3) bf16 matmul operands + bf16 ctx writeback (halved weight/x DMA and ctx HBM write);
    #    gate math and the cell state stay f32. Recurrent h recast compounds rounding with
    #    sequence length, hence the looser tolerance at T=12.
    ctx_b, dec_b, c_b = jax.block_until_ready(
        encoder_lstm_pallas(tokens, lengths, params, use_bf16_matmul=True))
    np.testing.assert_allclose(_to_np32(ctx_b), np.asarray(ctx_r), atol=2e-2, rtol=2e-2)
    np.testing.assert_allclose(_to_np32(dec_b), np.asarray(dec_r), atol=2e-2, rtol=2e-2)
    np.testing.assert_allclose(_to_np32(c_b), np.asarray(c_r), atol=2e-2, rtol=2e-2)

    print("KERNEL_OK")
</pallas_src>

<mosaic_0001>
module attributes {stable_mosaic.version = 11 : i64} {
  func.func @_encoder_lstm_kernel(%arg0: i32, %arg1: i32, %arg2: memref<16x1xi32, #tpu.memory_space<vmem>>, %arg3: memref<8x16x32xf32, #tpu.memory_space<vmem>>, %arg4: memref<32x128xf32, #tpu.memory_space<vmem>>, %arg5: memref<32x128xf32, #tpu.memory_space<vmem>>, %arg6: memref<1x128xf32, #tpu.memory_space<vmem>>, %arg7: memref<16x8x32xf32, #tpu.memory_space<vmem>>, %arg8: memref<16x32xf32, #tpu.memory_space<vmem>>, %arg9: memref<16x32xf32, #tpu.memory_space<vmem>>, %arg10: memref<128x128xf32, #tpu.memory_space<vmem>>) attributes {dimension_semantics = [#tpu.dimension_semantics<parallel>, #tpu.dimension_semantics<arbitrary>], iteration_bounds = array<i64: 1, 2>, scalar_prefetch = 0 : i64, scratch_operands = 1 : i64, tpu.core_type = #tpu.core_type<tc>, window_params = [{transform_indices = @transform_0, window_bounds = array<i64: 16, 1>}, {transform_indices = @transform_1, window_bounds = array<i64: 8, 16, 32>}, {pipeline_mode = #tpu.pipeline_mode<synchronous>, transform_indices = @transform_2, window_bounds = array<i64: 32, 128>}, {pipeline_mode = #tpu.pipeline_mode<synchronous>, transform_indices = @transform_3, window_bounds = array<i64: 32, 128>}, {pipeline_mode = #tpu.pipeline_mode<synchronous>, transform_indices = @transform_4, window_bounds = array<i64: 1, 128>}, {transform_indices = @transform_5, window_bounds = array<i64: 16, 8, 32>}, {transform_indices = @transform_6, window_bounds = array<i64: 16, 32>}, {transform_indices = @transform_7, window_bounds = array<i64: 16, 32>}]} {
    %c0_i32 = arith.constant 0 : i32
    %0 = arith.cmpi eq, %arg1, %c0_i32 : i32
    %1 = arith.extui %0 : i1 to i32
    %c0_i32_0 = arith.constant 0 : i32
    %2 = arith.cmpi ne, %1, %c0_i32_0 : i32
    scf.if %2 {
      %cst_135 = arith.constant 0.000000e+00 : f32
      %407 = vector.broadcast %cst_135 : f32 to vector<16x32xf32>
      %c0_136 = arith.constant 0 : index
      %c0_137 = arith.constant 0 : index
      %408 = vector.load %arg8[%c0_136, %c0_137] : memref<16x32xf32, #tpu.memory_space<vmem>>, vector<16x32xf32>
      tpu.vector_store %arg8[%c0_136, %c0_137], %407 {strides = array<i32>} : memref<16x32xf32, #tpu.memory_space<vmem>>, vector<16x32xf32>,
      %cst_138 = arith.constant 0.000000e+00 : f32
      %409 = vector.broadcast %cst_138 : f32 to vector<16x32xf32>
      %c0_139 = arith.constant 0 : index
      %c0_140 = arith.constant 0 : index
      %410 = vector.load %arg9[%c0_139, %c0_140] : memref<16x32xf32, #tpu.memory_space<vmem>>, vector<16x32xf32>
      tpu.vector_store %arg9[%c0_139, %c0_140], %409 {strides = array<i32>} : memref<16x32xf32, #tpu.memory_space<vmem>>, vector<16x32xf32>,
    } else {
    }
    %c0 = arith.constant 0 : index
    %c0_1 = arith.constant 0 : index
    %c0_2 = arith.constant 0 : index
    %3 = vector.load %arg3[%c0, %c0_1, %c0_2] : memref<8x16x32xf32, #tpu.memory_space<vmem>>, vector<8x16x32xf32>
    %4 = vector.shape_cast %3 : vector<8x16x32xf32> to vector<128x32xf32>
    %c0_3 = arith.constant 0 : index
    %c0_4 = arith.constant 0 : index
    %5 = vector.load %arg4[%c0_3, %c0_4] : memref<32x128xf32, #tpu.memory_space<vmem>>, vector<32x128xf32>
    %cst = arith.constant dense<0.000000e+00> : vector<128x128xf32>
    %6 = tpu.matmul %4, %5, %cst {dimension_numbers = #tpu.dot_dimension_numbers<[1], [0], [0], [1], [0, 0, 1, 1], [], []>} : vector<128x32xf32>, vector<32x128xf32>, vector<128x128xf32> -> vector<128x128xf32>
    %c0_5 = arith.constant 0 : index
    %c0_6 = arith.constant 0 : index
    %7 = vector.load %arg6[%c0_5, %c0_6] : memref<1x128xf32, #tpu.memory_space<vmem>>, vector<1x128xf32>
    %8 = vector.broadcast %7 : vector<1x128xf32> to vector<128x128xf32>
    %9 = arith.addf %6, %8 : vector<128x128xf32>
    %c0_7 = arith.constant 0 : index
    %c0_8 = arith.constant 0 : index
    %10 = vector.load %arg10[%c0_7, %c0_8] : memref<128x128xf32, #tpu.memory_space<vmem>>, vector<128x128xf32>
    tpu.vector_store %arg10[%c0_7, %c0_8], %9 {strides = array<i32>} : memref<128x128xf32, #tpu.memory_space<vmem>>, vector<128x128xf32>,
    %c0_9 = arith.constant 0 : index
    %c0_10 = arith.constant 0 : index
    %11 = vector.load %arg8[%c0_9, %c0_10] : memref<16x32xf32, #tpu.memory_space<vmem>>, vector<16x32xf32>
    %c0_11 = arith.constant 0 : index
    %c0_12 = arith.constant 0 : index
    %12 = vector.load %arg9[%c0_11, %c0_12] : memref<16x32xf32, #tpu.memory_space<vmem>>, vector<16x32xf32>
    %c0_13 = arith.constant 0 : index
    %c0_14 = arith.constant 0 : index
    %13 = vector.load %arg5[%c0_13, %c0_14] : memref<32x128xf32, #tpu.memory_space<vmem>>, vector<32x128xf32>
    %c0_15 = arith.constant 0 : index
    %c0_16 = arith.constant 0 : index
    %14 = vector.load %arg2[%c0_15, %c0_16] : memref<16x1xi32, #tpu.memory_space<vmem>>, vector<16x1xi32>
    %c8_i32 = arith.constant 8 : i32
    %15 = arith.muli %arg1, %c8_i32 : i32
    %16 = tpu.iota {dimensions = array<i32: 1>} : vector<16x8xi32>
    %17 = vector.broadcast %15 : i32 to vector<16x8xi32>
    %18 = arith.addi %17, %16 : vector<16x8xi32>
    %19 = vector.broadcast %14 : vector<16x1xi32> to vector<16x8xi32>
    %20 = arith.cmpi slt, %18, %19 : vector<16x8xi32>
    %c0_17 = arith.constant 0 : index
    %c0_18 = arith.constant 0 : index
    %21 = vector.load %arg10[%c0_17, %c0_18] : memref<128x128xf32, #tpu.memory_space<vmem>>, vector<16x128xf32>
    %cst_19 = arith.constant dense<0.000000e+00> : vector<16x128xf32>
    %22 = tpu.matmul %11, %13, %cst_19 {dimension_numbers = #tpu.dot_dimension_numbers<[1], [0], [0], [1], [0, 0, 1, 1], [], []>} : vector<16x32xf32>, vector<32x128xf32>, vector<16x128xf32> -> vector<16x128xf32>
    %23 = arith.addf %21, %22 : vector<16x128xf32>
    %24 = vector.extract_strided_slice %23 {offsets = [0, 0], sizes = [16, 32], strides = [1, 1]} : vector<16x128xf32> to vector<16x32xf32>
    %cst_20 = arith.constant 5.000000e-01 : f32
    %25 = vector.broadcast %cst_20 : f32 to vector<16x32xf32>
    %26 = arith.mulf %25, %24 : vector<16x32xf32>
    %27 = math.tanh %26 : vector<16x32xf32>
    %cst_21 = arith.constant 1.000000e+00 : f32
    %28 = vector.broadcast %cst_21 : f32 to vector<16x32xf32>
    %29 = arith.addf %27, %28 : vector<16x32xf32>
    %cst_22 = arith.constant 5.000000e-01 : f32
    %30 = vector.broadcast %cst_22 : f32 to vector<16x32xf32>
    %31 = arith.mulf %30, %29 : vector<16x32xf32>
    %32 = vector.extract_strided_slice %23 {offsets = [0, 32], sizes = [16, 32], strides = [1, 1]} : vector<16x128xf32> to vector<16x32xf32>
    %cst_23 = arith.constant 5.000000e-01 : f32
    %33 = vector.broadcast %cst_23 : f32 to vector<16x32xf32>
    %34 = arith.mulf %33, %32 : vector<16x32xf32>
    %35 = math.tanh %34 : vector<16x32xf32>
    %cst_24 = arith.constant 1.000000e+00 : f32
    %36 = vector.broadcast %cst_24 : f32 to vector<16x32xf32>
    %37 = arith.addf %35, %36 : vector<16x32xf32>
    %cst_25 = arith.constant 5.000000e-01 : f32
    %38 = vector.broadcast %cst_25 : f32 to vector<16x32xf32>
    %39 = arith.mulf %38, %37 : vector<16x32xf32>
    %40 = vector.extract_strided_slice %23 {offsets = [0, 64], sizes = [16, 32], strides = [1, 1]} : vector<16x128xf32> to vector<16x32xf32>
    %41 = math.tanh %40 : vector<16x32xf32>
    %42 = vector.extract_strided_slice %23 {offsets = [0, 96], sizes = [16, 32], strides = [1, 1]} : vector<16x128xf32> to vector<16x32xf32>
    %cst_26 = arith.constant 5.000000e-01 : f32
    %43 = vector.broadcast %cst_26 : f32 to vector<16x32xf32>
    %44 = arith.mulf %43, %42 : vector<16x32xf32>
    %45 = math.tanh %44 : vector<16x32xf32>
    %cst_27 = arith.constant 1.000000e+00 : f32
    %46 = vector.broadcast %cst_27 : f32 to vector<16x32xf32>
    %47 = arith.addf %45, %46 : vector<16x32xf32>
    %cst_28 = arith.constant 5.000000e-01 : f32
    %48 = vector.broadcast %cst_28 : f32 to vector<16x32xf32>
    %49 = arith.mulf %48, %47 : vector<16x32xf32>
    %50 = arith.mulf %39, %12 : vector<16x32xf32>
    %51 = arith.mulf %31, %41 : vector<16x32xf32>
    %52 = arith.addf %50, %51 : vector<16x32xf32>
    %53 = math.tanh %52 : vector<16x32xf32>
    %54 = arith.mulf %49, %53 : vector<16x32xf32>
    %55 = vector.extract_strided_slice %20 {offsets = [0, 0], sizes = [16, 1], strides = [1, 1]} : vector<16x8xi1> to vector<16x1xi1>
    %56 = vector.shape_cast %55 : vector<16x1xi1> to vector<16x1xi1>
    %57 = vector.broadcast %56 : vector<16x1xi1> to vector<16x32xi1>
    %58 = arith.select %57, %52, %12 : vector<16x32xi1>, vector<16x32xf32>
    %59 = vector.shape_cast %55 : vector<16x1xi1> to vector<16x1xi1>
    %60 = vector.broadcast %59 : vector<16x1xi1> to vector<16x32xi1>
    %61 = arith.select %60, %54, %11 : vector<16x32xi1>, vector<16x32xf32>
    %cst_29 = arith.constant 0.000000e+00 : f32
    %62 = vector.shape_cast %55 : vector<16x1xi1> to vector<16x1xi1>
    %63 = vector.broadcast %62 : vector<16x1xi1> to vector<16x32xi1>
    %64 = vector.broadcast %cst_29 : f32 to vector<16x32xf32>
    %65 = arith.select %63, %54, %64 : vector<16x32xi1>, vector<16x32xf32>
    %c0_30 = arith.constant 0 : index
    %c0_31 = arith.constant 0 : index
    %c0_32 = arith.constant 0 : index
    %66 = vector.load %arg7[%c0_30, %c0_31, %c0_32] : memref<16x8x32xf32, #tpu.memory_space<vmem>>, vector<16x1x32xf32>
    %67 = vector.shape_cast %66 : vector<16x1x32xf32> to vector<16x32xf32>
    %68 = vector.shape_cast %65 : vector<16x32xf32> to vector<16x1x32xf32>
    tpu.vector_store %arg7[%c0_30, %c0_31, %c0_32], %68 {strides = array<i32>} : memref<16x8x32xf32, #tpu.memory_space<vmem>>, vector<16x1x32xf32>,
    %c16 = arith.constant 16 : index
    %c0_33 = arith.constant 0 : index
    %69 = vector.load %arg10[%c16, %c0_33] : memref<128x128xf32, #tpu.memory_space<vmem>>, vector<16x128xf32>
    %cst_34 = arith.constant dense<0.000000e+00> : vector<16x128xf32>
    %70 = tpu.matmul %61, %13, %cst_34 {dimension_numbers = #tpu.dot_dimension_numbers<[1], [0], [0], [1], [0, 0, 1, 1], [], []>} : vector<16x32xf32>, vector<32x128xf32>, vector<16x128xf32> -> vector<16x128xf32>
    %71 = arith.addf %69, %70 : vector<16x128xf32>
    %72 = vector.extract_strided_slice %71 {offsets = [0, 0], sizes = [16, 32], strides = [1, 1]} : vector<16x128xf32> to vector<16x32xf32>
    %cst_35 = arith.constant 5.000000e-01 : f32
    %73 = vector.broadcast %cst_35 : f32 to vector<16x32xf32>
    %74 = arith.mulf %73, %72 : vector<16x32xf32>
    %75 = math.tanh %74 : vector<16x32xf32>
    %cst_36 = arith.constant 1.000000e+00 : f32
    %76 = vector.broadcast %cst_36 : f32 to vector<16x32xf32>
    %77 = arith.addf %75, %76 : vector<16x32xf32>
    %cst_37 = arith.constant 5.000000e-01 : f32
    %78 = vector.broadcast %cst_37 : f32 to vector<16x32xf32>
    %79 = arith.mulf %78, %77 : vector<16x32xf32>
    %80 = vector.extract_strided_slice %71 {offsets = [0, 32], sizes = [16, 32], strides = [1, 1]} : vector<16x128xf32> to vector<16x32xf32>
    %cst_38 = arith.constant 5.000000e-01 : f32
    %81 = vector.broadcast %cst_38 : f32 to vector<16x32xf32>
    %82 = arith.mulf %81, %80 : vector<16x32xf32>
    %83 = math.tanh %82 : vector<16x32xf32>
    %cst_39 = arith.constant 1.000000e+00 : f32
    %84 = vector.broadcast %cst_39 : f32 to vector<16x32xf32>
    %85 = arith.addf %83, %84 : vector<16x32xf32>
    %cst_40 = arith.constant 5.000000e-01 : f32
    %86 = vector.broadcast %cst_40 : f32 to vector<16x32xf32>
    %87 = arith.mulf %86, %85 : vector<16x32xf32>
    %88 = vector.extract_strided_slice %71 {offsets = [0, 64], sizes = [16, 32], strides = [1, 1]} : vector<16x128xf32> to vector<16x32xf32>
    %89 = math.tanh %88 : vector<16x32xf32>
    %90 = vector.extract_strided_slice %71 {offsets = [0, 96], sizes = [16, 32], strides = [1, 1]} : vector<16x128xf32> to vector<16x32xf32>
    %cst_41 = arith.constant 5.000000e-01 : f32
    %91 = vector.broadcast %cst_41 : f32 to vector<16x32xf32>
    %92 = arith.mulf %91, %90 : vector<16x32xf32>
    %93 = math.tanh %92 : vector<16x32xf32>
    %cst_42 = arith.constant 1.000000e+00 : f32
    %94 = vector.broadcast %cst_42 : f32 to vector<16x32xf32>
    %95 = arith.addf %93, %94 : vector<16x32xf32>
    %cst_43 = arith.constant 5.000000e-01 : f32
    %96 = vector.broadcast %cst_43 : f32 to vector<16x32xf32>
    %97 = arith.mulf %96, %95 : vector<16x32xf32>
    %98 = arith.mulf %87, %58 : vector<16x32xf32>
    %99 = arith.mulf %79, %89 : vector<16x32xf32>
    %100 = arith.addf %98, %99 : vector<16x32xf32>
    %101 = math.tanh %100 : vector<16x32xf32>
    %102 = arith.mulf %97, %101 : vector<16x32xf32>
    %103 = vector.extract_strided_slice %20 {offsets = [0, 1], sizes = [16, 1], strides = [1, 1]} : vector<16x8xi1> to vector<16x1xi1>
    %104 = vector.shape_cast %103 : vector<16x1xi1> to vector<16x1xi1>
    %105 = vector.broadcast %104 : vector<16x1xi1> to vector<16x32xi1>
    %106 = arith.select %105, %100, %58 : vector<16x32xi1>, vector<16x32xf32>
    %107 = vector.shape_cast %103 : vector<16x1xi1> to vector<16x1xi1>
    %108 = vector.broadcast %107 : vector<16x1xi1> to vector<16x32xi1>
    %109 = arith.select %108, %102, %61 : vector<16x32xi1>, vector<16x32xf32>
    %cst_44 = arith.constant 0.000000e+00 : f32
    %110 = vector.shape_cast %103 : vector<16x1xi1> to vector<16x1xi1>
    %111 = vector.broadcast %110 : vector<16x1xi1> to vector<16x32xi1>
    %112 = vector.broadcast %cst_44 : f32 to vector<16x32xf32>
    %113 = arith.select %111, %102, %112 : vector<16x32xi1>, vector<16x32xf32>
    %c0_45 = arith.constant 0 : index
    %c1 = arith.constant 1 : index
    %c0_46 = arith.constant 0 : index
    %114 = vector.load %arg7[%c0_45, %c1, %c0_46] : memref<16x8x32xf32, #tpu.memory_space<vmem>>, vector<16x1x32xf32>
    %115 = vector.shape_cast %114 : vector<16x1x32xf32> to vector<16x32xf32>
    %116 = vector.shape_cast %113 : vector<16x32xf32> to vector<16x1x32xf32>
    tpu.vector_store %arg7[%c0_45, %c1, %c0_46], %116 {strides = array<i32>} : memref<16x8x32xf32, #tpu.memory_space<vmem>>, vector<16x1x32xf32>,
    %c32 = arith.constant 32 : index
    %c0_47 = arith.constant 0 : index
    %117 = vector.load %arg10[%c32, %c0_47] : memref<128x128xf32, #tpu.memory_space<vmem>>, vector<16x128xf32>
    %cst_48 = arith.constant dense<0.000000e+00> : vector<16x128xf32>
    %118 = tpu.matmul %109, %13, %cst_48 {dimension_numbers = #tpu.dot_dimension_numbers<[1], [0], [0], [1], [0, 0, 1, 1], [], []>} : vector<16x32xf32>, vector<32x128xf32>, vector<16x128xf32> -> vector<16x128xf32>
    %119 = arith.addf %117, %118 : vector<16x128xf32>
    %120 = vector.extract_strided_slice %119 {offsets = [0, 0], sizes = [16, 32], strides = [1, 1]} : vector<16x128xf32> to vector<16x32xf32>
    %cst_49 = arith.constant 5.000000e-01 : f32
    %121 = vector.broadcast %cst_49 : f32 to vector<16x32xf32>
    %122 = arith.mulf %121, %120 : vector<16x32xf32>
    %123 = math.tanh %122 : vector<16x32xf32>
    %cst_50 = arith.constant 1.000000e+00 : f32
    %124 = vector.broadcast %cst_50 : f32 to vector<16x32xf32>
    %125 = arith.addf %123, %124 : vector<16x32xf32>
    %cst_51 = arith.constant 5.000000e-01 : f32
    %126 = vector.broadcast %cst_51 : f32 to vector<16x32xf32>
    %127 = arith.mulf %126, %125 : vector<16x32xf32>
    %128 = vector.extract_strided_slice %119 {offsets = [0, 32], sizes = [16, 32], strides = [1, 1]} : vector<16x128xf32> to vector<16x32xf32>
    %cst_52 = arith.constant 5.000000e-01 : f32
    %129 = vector.broadcast %cst_52 : f32 to vector<16x32xf32>
    %130 = arith.mulf %129, %128 : vector<16x32xf32>
    %131 = math.tanh %130 : vector<16x32xf32>
    %cst_53 = arith.constant 1.000000e+00 : f32
    %132 = vector.broadcast %cst_53 : f32 to vector<16x32xf32>
    %133 = arith.addf %131, %132 : vector<16x32xf32>
    %cst_54 = arith.constant 5.000000e-01 : f32
    %134 = vector.broadcast %cst_54 : f32 to vector<16x32xf32>
    %135 = arith.mulf %134, %133 : vector<16x32xf32>
    %136 = vector.extract_strided_slice %119 {offsets = [0, 64], sizes = [16, 32], strides = [1, 1]} : vector<16x128xf32> to vector<16x32xf32>
    %137 = math.tanh %136 : vector<16x32xf32>
    %138 = vector.extract_strided_slice %119 {offsets = [0, 96], sizes = [16, 32], strides = [1, 1]} : vector<16x128xf32> to vector<16x32xf32>
    %cst_55 = arith.constant 5.000000e-01 : f32
    %139 = vector.broadcast %cst_55 : f32 to vector<16x32xf32>
    %140 = arith.mulf %139, %138 : vector<16x32xf32>
    %141 = math.tanh %140 : vector<16x32xf32>
    %cst_56 = arith.constant 1.000000e+00 : f32
    %142 = vector.broadcast %cst_56 : f32 to vector<16x32xf32>
    %143 = arith.addf %141, %142 : vector<16x32xf32>
    %cst_57 = arith.constant 5.000000e-01 : f32
    %144 = vector.broadcast %cst_57 : f32 to vector<16x32xf32>
    %145 = arith.mulf %144, %143 : vector<16x32xf32>
    %146 = arith.mulf %135, %106 : vector<16x32xf32>
    %147 = arith.mulf %127, %137 : vector<16x32xf32>
    %148 = arith.addf %146, %147 : vector<16x32xf32>
    %149 = math.tanh %148 : vector<16x32xf32>
    %150 = arith.mulf %145, %149 : vector<16x32xf32>
    %151 = vector.extract_strided_slice %20 {offsets = [0, 2], sizes = [16, 1], strides = [1, 1]} : vector<16x8xi1> to vector<16x1xi1>
    %152 = vector.shape_cast %151 : vector<16x1xi1> to vector<16x1xi1>
    %153 = vector.broadcast %152 : vector<16x1xi1> to vector<16x32xi1>
    %154 = arith.select %153, %148, %106 : vector<16x32xi1>, vector<16x32xf32>
    %155 = vector.shape_cast %151 : vector<16x1xi1> to vector<16x1xi1>
    %156 = vector.broadcast %155 : vector<16x1xi1> to vector<16x32xi1>
    %157 = arith.select %156, %150, %109 : vector<16x32xi1>, vector<16x32xf32>
    %cst_58 = arith.constant 0.000000e+00 : f32
    %158 = vector.shape_cast %151 : vector<16x1xi1> to vector<16x1xi1>
    %159 = vector.broadcast %158 : vector<16x1xi1> to vector<16x32xi1>
    %160 = vector.broadcast %cst_58 : f32 to vector<16x32xf32>
    %161 = arith.select %159, %150, %160 : vector<16x32xi1>, vector<16x32xf32>
    %c0_59 = arith.constant 0 : index
    %c2 = arith.constant 2 : index
    %c0_60 = arith.constant 0 : index
    %162 = vector.load %arg7[%c0_59, %c2, %c0_60] : memref<16x8x32xf32, #tpu.memory_space<vmem>>, vector<16x1x32xf32>
    %163 = vector.shape_cast %162 : vector<16x1x32xf32> to vector<16x32xf32>
    %164 = vector.shape_cast %161 : vector<16x32xf32> to vector<16x1x32xf32>
    tpu.vector_store %arg7[%c0_59, %c2, %c0_60], %164 {strides = array<i32>} : memref<16x8x32xf32, #tpu.memory_space<vmem>>, vector<16x1x32xf32>,
    %c48 = arith.constant 48 : index
    %c0_61 = arith.constant 0 : index
    %165 = vector.load %arg10[%c48, %c0_61] : memref<128x128xf32, #tpu.memory_space<vmem>>, vector<16x128xf32>
    %cst_62 = arith.constant dense<0.000000e+00> : vector<16x128xf32>
    %166 = tpu.matmul %157, %13, %cst_62 {dimension_numbers = #tpu.dot_dimension_numbers<[1], [0], [0], [1], [0, 0, 1, 1], [], []>} : vector<16x32xf32>, vector<32x128xf32>, vector<16x128xf32> -> vector<16x128xf32>
    %167 = arith.addf %165, %166 : vector<16x128xf32>
    %168 = vector.extract_strided_slice %167 {offsets = [0, 0], sizes = [16, 32], strides = [1, 1]} : vector<16x128xf32> to vector<16x32xf32>
    %cst_63 = arith.constant 5.000000e-01 : f32
    %169 = vector.broadcast %cst_63 : f32 to vector<16x32xf32>
    %170 = arith.mulf %169, %168 : vector<16x32xf32>
    %171 = math.tanh %170 : vector<16x32xf32>
    %cst_64 = arith.constant 1.000000e+00 : f32
    %172 = vector.broadcast %cst_64 : f32 to vector<16x32xf32>
    %173 = arith.addf %171, %172 : vector<16x32xf32>
    %cst_65 = arith.constant 5.000000e-01 : f32
    %174 = vector.broadcast %cst_65 : f32 to vector<16x32xf32>
    %175 = arith.mulf %174, %173 : vector<16x32xf32>
    %176 = vector.extract_strided_slice %167 {offsets = [0, 32], sizes = [16, 32], strides = [1, 1]} : vector<16x128xf32> to vector<16x32xf32>
    %cst_66 = arith.constant 5.000000e-01 : f32
    %177 = vector.broadcast %cst_66 : f32 to vector<16x32xf32>
    %178 = arith.mulf %177, %176 : vector<16x32xf32>
    %179 = math.tanh %178 : vector<16x32xf32>
    %cst_67 = arith.constant 1.000000e+00 : f32
    %180 = vector.broadcast %cst_67 : f32 to vector<16x32xf32>
    %181 = arith.addf %179, %180 : vector<16x32xf32>
    %cst_68 = arith.constant 5.000000e-01 : f32
    %182 = vector.broadcast %cst_68 : f32 to vector<16x32xf32>
    %183 = arith.mulf %182, %181 : vector<16x32xf32>
    %184 = vector.extract_strided_slice %167 {offsets = [0, 64], sizes = [16, 32], strides = [1, 1]} : vector<16x128xf32> to vector<16x32xf32>
    %185 = math.tanh %184 : vector<16x32xf32>
    %186 = vector.extract_strided_slice %167 {offsets = [0, 96], sizes = [16, 32], strides = [1, 1]} : vector<16x128xf32> to vector<16x32xf32>
    %cst_69 = arith.constant 5.000000e-01 : f32
    %187 = vector.broadcast %cst_69 : f32 to vector<16x32xf32>
    %188 = arith.mulf %187, %186 : vector<16x32xf32>
    %189 = math.tanh %188 : vector<16x32xf32>
    %cst_70 = arith.constant 1.000000e+00 : f32
    %190 = vector.broadcast %cst_70 : f32 to vector<16x32xf32>
    %191 = arith.addf %189, %190 : vector<16x32xf32>
    %cst_71 = arith.constant 5.000000e-01 : f32
    %192 = vector.broadcast %cst_71 : f32 to vector<16x32xf32>
    %193 = arith.mulf %192, %191 : vector<16x32xf32>
    %194 = arith.mulf %183, %154 : vector<16x32xf32>
    %195 = arith.mulf %175, %185 : vector<16x32xf32>
    %196 = arith.addf %194, %195 : vector<16x32xf32>
    %197 = math.tanh %196 : vector<16x32xf32>
    %198 = arith.mulf %193, %197 : vector<16x32xf32>
    %199 = vector.extract_strided_slice %20 {offsets = [0, 3], sizes = [16, 1], strides = [1, 1]} : vector<16x8xi1> to vector<16x1xi1>
    %200 = vector.shape_cast %199 : vector<16x1xi1> to vector<16x1xi1>
    %201 = vector.broadcast %200 : vector<16x1xi1> to vector<16x32xi1>
    %202 = arith.select %201, %196, %154 : vector<16x32xi1>, vector<16x32xf32>
    %203 = vector.shape_cast %199 : vector<16x1xi1> to vector<16x1xi1>
    %204 = vector.broadcast %203 : vector<16x1xi1> to vector<16x32xi1>
    %205 = arith.select %204, %198, %157 : vector<16x32xi1>, vector<16x32xf32>
    %cst_72 = arith.constant 0.000000e+00 : f32
    %206 = vector.shape_cast %199 : vector<16x1xi1> to vector<16x1xi1>
    %207 = vector.broadcast %206 : vector<16x1xi1> to vector<16x32xi1>
    %208 = vector.broadcast %cst_72 : f32 to vector<16x32xf32>
    %209 = arith.select %207, %198, %208 : vector<16x32xi1>, vector<16x32xf32>
    %c0_73 = arith.constant 0 : index
    %c3 = arith.constant 3 : index
    %c0_74 = arith.constant 0 : index
    %210 = vector.load %arg7[%c0_73, %c3, %c0_74] : memref<16x8x32xf32, #tpu.memory_space<vmem>>, vector<16x1x32xf32>
    %211 = vector.shape_cast %210 : vector<16x1x32xf32> to vector<16x32xf32>
    %212 = vector.shape_cast %209 : vector<16x32xf32> to vector<16x1x32xf32>
    tpu.vector_store %arg7[%c0_73, %c3, %c0_74], %212 {strides = array<i32>} : memref<16x8x32xf32, #tpu.memory_space<vmem>>, vector<16x1x32xf32>,
    %c64 = arith.constant 64 : index
    %c0_75 = arith.constant 0 : index
    %213 = vector.load %arg10[%c64, %c0_75] : memref<128x128xf32, #tpu.memory_space<vmem>>, vector<16x128xf32>
    %cst_76 = arith.constant dense<0.000000e+00> : vector<16x128xf32>
    %214 = tpu.matmul %205, %13, %cst_76 {dimension_numbers = #tpu.dot_dimension_numbers<[1], [0], [0], [1], [0, 0, 1, 1], [], []>} : vector<16x32xf32>, vector<32x128xf32>, vector<16x128xf32> -> vector<16x128xf32>
    %215 = arith.addf %213, %214 : vector<16x128xf32>
    %216 = vector.extract_strided_slice %215 {offsets = [0, 0], sizes = [16, 32], strides = [1, 1]} : vector<16x128xf32> to vector<16x32xf32>
    %cst_77 = arith.constant 5.000000e-01 : f32
    %217 = vector.broadcast %cst_77 : f32 to vector<16x32xf32>
    %218 = arith.mulf %217, %216 : vector<16x32xf32>
    %219 = math.tanh %218 : vector<16x32xf32>
    %cst_78 = arith.constant 1.000000e+00 : f32
    %220 = vector.broadcast %cst_78 : f32 to vector<16x32xf32>
    %221 = arith.addf %219, %220 : vector<16x32xf32>
    %cst_79 = arith.constant 5.000000e-01 : f32
    %222 = vector.broadcast %cst_79 : f32 to vector<16x32xf32>
    %223 = arith.mulf %222, %221 : vector<16x32xf32>
    %224 = vector.extract_strided_slice %215 {offsets = [0, 32], sizes = [16, 32], strides = [1, 1]} : vector<16x128xf32> to vector<16x32xf32>
    %cst_80 = arith.constant 5.000000e-01 : f32
    %225 = vector.broadcast %cst_80 : f32 to vector<16x32xf32>
    %226 = arith.mulf %225, %224 : vector<16x32xf32>
    %227 = math.tanh %226 : vector<16x32xf32>
    %cst_81 = arith.constant 1.000000e+00 : f32
    %228 = vector.broadcast %cst_81 : f32 to vector<16x32xf32>
    %229 = arith.addf %227, %228 : vector<16x32xf32>
    %cst_82 = arith.constant 5.000000e-01 : f32
    %230 = vector.broadcast %cst_82 : f32 to vector<16x32xf32>
    %231 = arith.mulf %230, %229 : vector<16x32xf32>
    %232 = vector.extract_strided_slice %215 {offsets = [0, 64], sizes = [16, 32], strides = [1, 1]} : vector<16x128xf32> to vector<16x32xf32>
    %233 = math.tanh %232 : vector<16x32xf32>
    %234 = vector.extract_strided_slice %215 {offsets = [0, 96], sizes = [16, 32], strides = [1, 1]} : vector<16x128xf32> to vector<16x32xf32>
    %cst_83 = arith.constant 5.000000e-01 : f32
    %235 = vector.broadcast %cst_83 : f32 to vector<16x32xf32>
    %236 = arith.mulf %235, %234 : vector<16x32xf32>
    %237 = math.tanh %236 : vector<16x32xf32>
    %cst_84 = arith.constant 1.000000e+00 : f32
    %238 = vector.broadcast %cst_84 : f32 to vector<16x32xf32>
    %239 = arith.addf %237, %238 : vector<16x32xf32>
    %cst_85 = arith.constant 5.000000e-01 : f32
    %240 = vector.broadcast %cst_85 : f32 to vector<16x32xf32>
    %241 = arith.mulf %240, %239 : vector<16x32xf32>
    %242 = arith.mulf %231, %202 : vector<16x32xf32>
    %243 = arith.mulf %223, %233 : vector<16x32xf32>
    %244 = arith.addf %242, %243 : vector<16x32xf32>
    %245 = math.tanh %244 : vector<16x32xf32>
    %246 = arith.mulf %241, %245 : vector<16x32xf32>
    %247 = vector.extract_strided_slice %20 {offsets = [0, 4], sizes = [16, 1], strides = [1, 1]} : vector<16x8xi1> to vector<16x1xi1>
    %248 = vector.shape_cast %247 : vector<16x1xi1> to vector<16x1xi1>
    %249 = vector.broadcast %248 : vector<16x1xi1> to vector<16x32xi1>
    %250 = arith.select %249, %244, %202 : vector<16x32xi1>, vector<16x32xf32>
    %251 = vector.shape_cast %247 : vector<16x1xi1> to vector<16x1xi1>
    %252 = vector.broadcast %251 : vector<16x1xi1> to vector<16x32xi1>
    %253 = arith.select %252, %246, %205 : vector<16x32xi1>, vector<16x32xf32>
    %cst_86 = arith.constant 0.000000e+00 : f32
    %254 = vector.shape_cast %247 : vector<16x1xi1> to vector<16x1xi1>
    %255 = vector.broadcast %254 : vector<16x1xi1> to vector<16x32xi1>
    %256 = vector.broadcast %cst_86 : f32 to vector<16x32xf32>
    %257 = arith.select %255, %246, %256 : vector<16x32xi1>, vector<16x32xf32>
    %c0_87 = arith.constant 0 : index
    %c4 = arith.constant 4 : index
    %c0_88 = arith.constant 0 : index
    %258 = vector.load %arg7[%c0_87, %c4, %c0_88] : memref<16x8x32xf32, #tpu.memory_space<vmem>>, vector<16x1x32xf32>
    %259 = vector.shape_cast %258 : vector<16x1x32xf32> to vector<16x32xf32>
    %260 = vector.shape_cast %257 : vector<16x32xf32> to vector<16x1x32xf32>
    tpu.vector_store %arg7[%c0_87, %c4, %c0_88], %260 {strides = array<i32>} : memref<16x8x32xf32, #tpu.memory_space<vmem>>, vector<16x1x32xf32>,
    %c80 = arith.constant 80 : index
    %c0_89 = arith.constant 0 : index
    %261 = vector.load %arg10[%c80, %c0_89] : memref<128x128xf32, #tpu.memory_space<vmem>>, vector<16x128xf32>
    %cst_90 = arith.constant dense<0.000000e+00> : vector<16x128xf32>
    %262 = tpu.matmul %253, %13, %cst_90 {dimension_numbers = #tpu.dot_dimension_numbers<[1], [0], [0], [1], [0, 0, 1, 1], [], []>} : vector<16x32xf32>, vector<32x128xf32>, vector<16x128xf32> -> vector<16x128xf32>
    %263 = arith.addf %261, %262 : vector<16x128xf32>
    %264 = vector.extract_strided_slice %263 {offsets = [0, 0], sizes = [16, 32], strides = [1, 1]} : vector<16x128xf32> to vector<16x32xf32>
    %cst_91 = arith.constant 5.000000e-01 : f32
    %265 = vector.broadcast %cst_91 : f32 to vector<16x32xf32>
    %266 = arith.mulf %265, %264 : vector<16x32xf32>
    %267 = math.tanh %266 : vector<16x32xf32>
    %cst_92 = arith.constant 1.000000e+00 : f32
    %268 = vector.broadcast %cst_92 : f32 to vector<16x32xf32>
    %269 = arith.addf %267, %268 : vector<16x32xf32>
    %cst_93 = arith.constant 5.000000e-01 : f32
    %270 = vector.broadcast %cst_93 : f32 to vector<16x32xf32>
    %271 = arith.mulf %270, %269 : vector<16x32xf32>
    %272 = vector.extract_strided_slice %263 {offsets = [0, 32], sizes = [16, 32], strides = [1, 1]} : vector<16x128xf32> to vector<16x32xf32>
    %cst_94 = arith.constant 5.000000e-01 : f32
    %273 = vector.broadcast %cst_94 : f32 to vector<16x32xf32>
    %274 = arith.mulf %273, %272 : vector<16x32xf32>
    %275 = math.tanh %274 : vector<16x32xf32>
    %cst_95 = arith.constant 1.000000e+00 : f32
    %276 = vector.broadcast %cst_95 : f32 to vector<16x32xf32>
    %277 = arith.addf %275, %276 : vector<16x32xf32>
    %cst_96 = arith.constant 5.000000e-01 : f32
    %278 = vector.broadcast %cst_96 : f32 to vector<16x32xf32>
    %279 = arith.mulf %278, %277 : vector<16x32xf32>
    %280 = vector.extract_strided_slice %263 {offsets = [0, 64], sizes = [16, 32], strides = [1, 1]} : vector<16x128xf32> to vector<16x32xf32>
    %281 = math.tanh %280 : vector<16x32xf32>
    %282 = vector.extract_strided_slice %263 {offsets = [0, 96], sizes = [16, 32], strides = [1, 1]} : vector<16x128xf32> to vector<16x32xf32>
    %cst_97 = arith.constant 5.000000e-01 : f32
    %283 = vector.broadcast %cst_97 : f32 to vector<16x32xf32>
    %284 = arith.mulf %283, %282 : vector<16x32xf32>
    %285 = math.tanh %284 : vector<16x32xf32>
    %cst_98 = arith.constant 1.000000e+00 : f32
    %286 = vector.broadcast %cst_98 : f32 to vector<16x32xf32>
    %287 = arith.addf %285, %286 : vector<16x32xf32>
    %cst_99 = arith.constant 5.000000e-01 : f32
    %288 = vector.broadcast %cst_99 : f32 to vector<16x32xf32>
    %289 = arith.mulf %288, %287 : vector<16x32xf32>
    %290 = arith.mulf %279, %250 : vector<16x32xf32>
    %291 = arith.mulf %271, %281 : vector<16x32xf32>
    %292 = arith.addf %290, %291 : vector<16x32xf32>
    %293 = math.tanh %292 : vector<16x32xf32>
    %294 = arith.mulf %289, %293 : vector<16x32xf32>
    %295 = vector.extract_strided_slice %20 {offsets = [0, 5], sizes = [16, 1], strides = [1, 1]} : vector<16x8xi1> to vector<16x1xi1>
    %296 = vector.shape_cast %295 : vector<16x1xi1> to vector<16x1xi1>
    %297 = vector.broadcast %296 : vector<16x1xi1> to vector<16x32xi1>
    %298 = arith.select %297, %292, %250 : vector<16x32xi1>, vector<16x32xf32>
    %299 = vector.shape_cast %295 : vector<16x1xi1> to vector<16x1xi1>
    %300 = vector.broadcast %299 : vector<16x1xi1> to vector<16x32xi1>
    %301 = arith.select %300, %294, %253 : vector<16x32xi1>, vector<16x32xf32>
    %cst_100 = arith.constant 0.000000e+00 : f32
    %302 = vector.shape_cast %295 : vector<16x1xi1> to vector<16x1xi1>
    %303 = vector.broadcast %302 : vector<16x1xi1> to vector<16x32xi1>
    %304 = vector.broadcast %cst_100 : f32 to vector<16x32xf32>
    %305 = arith.select %303, %294, %304 : vector<16x32xi1>, vector<16x32xf32>
    %c0_101 = arith.constant 0 : index
    %c5 = arith.constant 5 : index
    %c0_102 = arith.constant 0 : index
    %306 = vector.load %arg7[%c0_101, %c5, %c0_102] : memref<16x8x32xf32, #tpu.memory_space<vmem>>, vector<16x1x32xf32>
    %307 = vector.shape_cast %306 : vector<16x1x32xf32> to vector<16x32xf32>
    %308 = vector.shape_cast %305 : vector<16x32xf32> to vector<16x1x32xf32>
    tpu.vector_store %arg7[%c0_101, %c5, %c0_102], %308 {strides = array<i32>} : memref<16x8x32xf32, #tpu.memory_space<vmem>>, vector<16x1x32xf32>,
    %c96 = arith.constant 96 : index
    %c0_103 = arith.constant 0 : index
    %309 = vector.load %arg10[%c96, %c0_103] : memref<128x128xf32, #tpu.memory_space<vmem>>, vector<16x128xf32>
    %cst_104 = arith.constant dense<0.000000e+00> : vector<16x128xf32>
    %310 = tpu.matmul %301, %13, %cst_104 {dimension_numbers = #tpu.dot_dimension_numbers<[1], [0], [0], [1], [0, 0, 1, 1], [], []>} : vector<16x32xf32>, vector<32x128xf32>, vector<16x128xf32> -> vector<16x128xf32>
    %311 = arith.addf %309, %310 : vector<16x128xf32>
    %312 = vector.extract_strided_slice %311 {offsets = [0, 0], sizes = [16, 32], strides = [1, 1]} : vector<16x128xf32> to vector<16x32xf32>
    %cst_105 = arith.constant 5.000000e-01 : f32
    %313 = vector.broadcast %cst_105 : f32 to vector<16x32xf32>
    %314 = arith.mulf %313, %312 : vector<16x32xf32>
    %315 = math.tanh %314 : vector<16x32xf32>
    %cst_106 = arith.constant 1.000000e+00 : f32
    %316 = vector.broadcast %cst_106 : f32 to vector<16x32xf32>
    %317 = arith.addf %315, %316 : vector<16x32xf32>
    %cst_107 = arith.constant 5.000000e-01 : f32
    %318 = vector.broadcast %cst_107 : f32 to vector<16x32xf32>
    %319 = arith.mulf %318, %317 : vector<16x32xf32>
    %320 = vector.extract_strided_slice %311 {offsets = [0, 32], sizes = [16, 32], strides = [1, 1]} : vector<16x128xf32> to vector<16x32xf32>
    %cst_108 = arith.constant 5.000000e-01 : f32
    %321 = vector.broadcast %cst_108 : f32 to vector<16x32xf32>
    %322 = arith.mulf %321, %320 : vector<16x32xf32>
    %323 = math.tanh %322 : vector<16x32xf32>
    %cst_109 = arith.constant 1.000000e+00 : f32
    %324 = vector.broadcast %cst_109 : f32 to vector<16x32xf32>
    %325 = arith.addf %323, %324 : vector<16x32xf32>
    %cst_110 = arith.constant 5.000000e-01 : f32
    %326 = vector.broadcast %cst_110 : f32 to vector<16x32xf32>
    %327 = arith.mulf %326, %325 : vector<16x32xf32>
    %328 = vector.extract_strided_slice %311 {offsets = [0, 64], sizes = [16, 32], strides = [1, 1]} : vector<16x128xf32> to vector<16x32xf32>
    %329 = math.tanh %328 : vector<16x32xf32>
    %330 = vector.extract_strided_slice %311 {offsets = [0, 96], sizes = [16, 32], strides = [1, 1]} : vector<16x128xf32> to vector<16x32xf32>
    %cst_111 = arith.constant 5.000000e-01 : f32
    %331 = vector.broadcast %cst_111 : f32 to vector<16x32xf32>
    %332 = arith.mulf %331, %330 : vector<16x32xf32>
    %333 = math.tanh %332 : vector<16x32xf32>
    %cst_112 = arith.constant 1.000000e+00 : f32
    %334 = vector.broadcast %cst_112 : f32 to vector<16x32xf32>
    %335 = arith.addf %333, %334 : vector<16x32xf32>
    %cst_113 = arith.constant 5.000000e-01 : f32
    %336 = vector.broadcast %cst_113 : f32 to vector<16x32xf32>
    %337 = arith.mulf %336, %335 : vector<16x32xf32>
    %338 = arith.mulf %327, %298 : vector<16x32xf32>
    %339 = arith.mulf %319, %329 : vector<16x32xf32>
    %340 = arith.addf %338, %339 : vector<16x32xf32>
    %341 = math.tanh %340 : vector<16x32xf32>
    %342 = arith.mulf %337, %341 : vector<16x32xf32>
    %343 = vector.extract_strided_slice %20 {offsets = [0, 6], sizes = [16, 1], strides = [1, 1]} : vector<16x8xi1> to vector<16x1xi1>
    %344 = vector.shape_cast %343 : vector<16x1xi1> to vector<16x1xi1>
    %345 = vector.broadcast %344 : vector<16x1xi1> to vector<16x32xi1>
    %346 = arith.select %345, %340, %298 : vector<16x32xi1>, vector<16x32xf32>
    %347 = vector.shape_cast %343 : vector<16x1xi1> to vector<16x1xi1>
    %348 = vector.broadcast %347 : vector<16x1xi1> to vector<16x32xi1>
    %349 = arith.select %348, %342, %301 : vector<16x32xi1>, vector<16x32xf32>
    %cst_114 = arith.constant 0.000000e+00 : f32
    %350 = vector.shape_cast %343 : vector<16x1xi1> to vector<16x1xi1>
    %351 = vector.broadcast %350 : vector<16x1xi1> to vector<16x32xi1>
    %352 = vector.broadcast %cst_114 : f32 to vector<16x32xf32>
    %353 = arith.select %351, %342, %352 : vector<16x32xi1>, vector<16x32xf32>
    %c0_115 = arith.constant 0 : index
    %c6 = arith.constant 6 : index
    %c0_116 = arith.constant 0 : index
    %354 = vector.load %arg7[%c0_115, %c6, %c0_116] : memref<16x8x32xf32, #tpu.memory_space<vmem>>, vector<16x1x32xf32>
    %355 = vector.shape_cast %354 : vector<16x1x32xf32> to vector<16x32xf32>
    %356 = vector.shape_cast %353 : vector<16x32xf32> to vector<16x1x32xf32>
    tpu.vector_store %arg7[%c0_115, %c6, %c0_116], %356 {strides = array<i32>} : memref<16x8x32xf32, #tpu.memory_space<vmem>>, vector<16x1x32xf32>,
    %c112 = arith.constant 112 : index
    %c0_117 = arith.constant 0 : index
    %357 = vector.load %arg10[%c112, %c0_117] : memref<128x128xf32, #tpu.memory_space<vmem>>, vector<16x128xf32>
    %cst_118 = arith.constant dense<0.000000e+00> : vector<16x128xf32>
    %358 = tpu.matmul %349, %13, %cst_118 {dimension_numbers = #tpu.dot_dimension_numbers<[1], [0], [0], [1], [0, 0, 1, 1], [], []>} : vector<16x32xf32>, vector<32x128xf32>, vector<16x128xf32> -> vector<16x128xf32>
    %359 = arith.addf %357, %358 : vector<16x128xf32>
    %360 = vector.extract_strided_slice %359 {offsets = [0, 0], sizes = [16, 32], strides = [1, 1]} : vector<16x128xf32> to vector<16x32xf32>
    %cst_119 = arith.constant 5.000000e-01 : f32
    %361 = vector.broadcast %cst_119 : f32 to vector<16x32xf32>
    %362 = arith.mulf %361, %360 : vector<16x32xf32>
    %363 = math.tanh %362 : vector<16x32xf32>
    %cst_120 = arith.constant 1.000000e+00 : f32
    %364 = vector.broadcast %cst_120 : f32 to vector<16x32xf32>
    %365 = arith.addf %363, %364 : vector<16x32xf32>
    %cst_121 = arith.constant 5.000000e-01 : f32
    %366 = vector.broadcast %cst_121 : f32 to vector<16x32xf32>
    %367 = arith.mulf %366, %365 : vector<16x32xf32>
    %368 = vector.extract_strided_slice %359 {offsets = [0, 32], sizes = [16, 32], strides = [1, 1]} : vector<16x128xf32> to vector<16x32xf32>
    %cst_122 = arith.constant 5.000000e-01 : f32
    %369 = vector.broadcast %cst_122 : f32 to vector<16x32xf32>
    %370 = arith.mulf %369, %368 : vector<16x32xf32>
    %371 = math.tanh %370 : vector<16x32xf32>
    %cst_123 = arith.constant 1.000000e+00 : f32
    %372 = vector.broadcast %cst_123 : f32 to vector<16x32xf32>
    %373 = arith.addf %371, %372 : vector<16x32xf32>
    %cst_124 = arith.constant 5.000000e-01 : f32
    %374 = vector.broadcast %cst_124 : f32 to vector<16x32xf32>
    %375 = arith.mulf %374, %373 : vector<16x32xf32>
    %376 = vector.extract_strided_slice %359 {offsets = [0, 64], sizes = [16, 32], strides = [1, 1]} : vector<16x128xf32> to vector<16x32xf32>
    %377 = math.tanh %376 : vector<16x32xf32>
    %378 = vector.extract_strided_slice %359 {offsets = [0, 96], sizes = [16, 32], strides = [1, 1]} : vector<16x128xf32> to vector<16x32xf32>
    %cst_125 = arith.constant 5.000000e-01 : f32
    %379 = vector.broadcast %cst_125 : f32 to vector<16x32xf32>
    %380 = arith.mulf %379, %378 : vector<16x32xf32>
    %381 = math.tanh %380 : vector<16x32xf32>
    %cst_126 = arith.constant 1.000000e+00 : f32
    %382 = vector.broadcast %cst_126 : f32 to vector<16x32xf32>
    %383 = arith.addf %381, %382 : vector<16x32xf32>
    %cst_127 = arith.constant 5.000000e-01 : f32
    %384 = vector.broadcast %cst_127 : f32 to vector<16x32xf32>
    %385 = arith.mulf %384, %383 : vector<16x32xf32>
    %386 = arith.mulf %375, %346 : vector<16x32xf32>
    %387 = arith.mulf %367, %377 : vector<16x32xf32>
    %388 = arith.addf %386, %387 : vector<16x32xf32>
    %389 = math.tanh %388 : vector<16x32xf32>
    %390 = arith.mulf %385, %389 : vector<16x32xf32>
    %391 = vector.extract_strided_slice %20 {offsets = [0, 7], sizes = [16, 1], strides = [1, 1]} : vector<16x8xi1> to vector<16x1xi1>
    %392 = vector.shape_cast %391 : vector<16x1xi1> to vector<16x1xi1>
    %393 = vector.broadcast %392 : vector<16x1xi1> to vector<16x32xi1>
    %394 = arith.select %393, %388, %346 : vector<16x32xi1>, vector<16x32xf32>
    %395 = vector.shape_cast %391 : vector<16x1xi1> to vector<16x1xi1>
    %396 = vector.broadcast %395 : vector<16x1xi1> to vector<16x32xi1>
    %397 = arith.select %396, %390, %349 : vector<16x32xi1>, vector<16x32xf32>
    %cst_128 = arith.constant 0.000000e+00 : f32
    %398 = vector.shape_cast %391 : vector<16x1xi1> to vector<16x1xi1>
    %399 = vector.broadcast %398 : vector<16x1xi1> to vector<16x32xi1>
    %400 = vector.broadcast %cst_128 : f32 to vector<16x32xf32>
    %401 = arith.select %399, %390, %400 : vector<16x32xi1>, vector<16x32xf32>
    %c0_129 = arith.constant 0 : index
    %c7 = arith.constant 7 : index
    %c0_130 = arith.constant 0 : index
    %402 = vector.load %arg7[%c0_129, %c7, %c0_130] : memref<16x8x32xf32, #tpu.memory_space<vmem>>, vector<16x1x32xf32>
    %403 = vector.shape_cast %402 : vector<16x1x32xf32> to vector<16x32xf32>
    %404 = vector.shape_cast %401 : vector<16x32xf32> to vector<16x1x32xf32>
    tpu.vector_store %arg7[%c0_129, %c7, %c0_130], %404 {strides = array<i32>} : memref<16x8x32xf32, #tpu.memory_space<vmem>>, vector<16x1x32xf32>,
    %c0_131 = arith.constant 0 : index
    %c0_132 = arith.constant 0 : index
    %405 = vector.load %arg8[%c0_131, %c0_132] : memref<16x32xf32, #tpu.memory_space<vmem>>, vector<16x32xf32>
    tpu.vector_store %arg8[%c0_131, %c0_132], %397 {strides = array<i32>} : memref<16x32xf32, #tpu.memory_space<vmem>>, vector<16x32xf32>,
    %c0_133 = arith.constant 0 : index
    %c0_134 = arith.constant 0 : index
    %406 = vector.load %arg9[%c0_133, %c0_134] : memref<16x32xf32, #tpu.memory_space<vmem>>, vector<16x32xf32>
    tpu.vector_store %arg9[%c0_133, %c0_134], %394 {strides = array<i32>} : memref<16x32xf32, #tpu.memory_space<vmem>>, vector<16x32xf32>,
    return
  }
  func.func @transform_0(%arg0: i32, %arg1: i32) -> (i32, i32) {
    %c0_i32 = arith.constant 0 : i32
    %c0_i32_0 = arith.constant 0 : i32
    return %arg0, %c0_i32 : i32, i32
  }
  func.func @transform_1(%arg0: i32, %arg1: i32) -> (i32, i32, i32) {
    %c0_i32 = arith.constant 0 : i32
    %c0_i32_0 = arith.constant 0 : i32
    return %arg1, %arg0, %c0_i32 : i32, i32, i32
  }
  func.func @transform_2(%arg0: i32, %arg1: i32) -> (i32, i32) {
    %c0_i32 = arith.constant 0 : i32
    %c0_i32_0 = arith.constant 0 : i32
    %c0_i32_1 = arith.constant 0 : i32
    return %c0_i32, %c0_i32_0 : i32, i32
  }
  func.func @transform_3(%arg0: i32, %arg1: i32) -> (i32, i32) {
    %c0_i32 = arith.constant 0 : i32
    %c0_i32_0 = arith.constant 0 : i32
    %c0_i32_1 = arith.constant 0 : i32
    return %c0_i32, %c0_i32_0 : i32, i32
  }
  func.func @transform_4(%arg0: i32, %arg1: i32) -> (i32, i32) {
    %c0_i32 = arith.constant 0 : i32
    %c0_i32_0 = arith.constant 0 : i32
    %c0_i32_1 = arith.constant 0 : i32
    return %c0_i32, %c0_i32_0 : i32, i32
  }
  func.func @transform_5(%arg0: i32, %arg1: i32) -> (i32, i32, i32) {
    %c0_i32 = arith.constant 0 : i32
    %c0_i32_0 = arith.constant 0 : i32
    return %arg0, %arg1, %c0_i32 : i32, i32, i32
  }
  func.func @transform_6(%arg0: i32, %arg1: i32) -> (i32, i32) {
    %c0_i32 = arith.constant 0 : i32
    %c0_i32_0 = arith.constant 0 : i32
    return %arg0, %c0_i32 : i32, i32
  }
  func.func @transform_7(%arg0: i32, %arg1: i32) -> (i32, i32) {
    %c0_i32 = arith.constant 0 : i32
    %c0_i32_0 = arith.constant 0 : i32
    return %arg0, %c0_i32 : i32, i32
  }
}

</mosaic_0001>

<llo_original>
// kernel: tpu_custom_call.1
$region0: #{tpu_custom_call.1}
  #allocation0 [shape = 'u32[]', space=smem, size = 0x4, offset = 0x4, fixed_abs, tag = 'smem constant byte address 0x4 - core index']
  #allocation1 [shape = 'u32[144,128]{1,0:T(1,128)}', space=vmem, size = 0x12000, scoped, tag = 'internal scratch']
  #allocation2 [shape = 'f32[128,128]{1,0:T(8,128)}', space=vmem, size = 0x10000, scoped, tag = 'scratch operand']
  %s0 = inlined_call_operand.vmem [shape: s32[16,1], index: 0, kind: input, shape index: {}]
  %s1 = inlined_call_operand.hbm [shape: f32[16,16,32], index: 1, kind: input, shape index: {}]
  %s2 = inlined_call_operand.hbm [shape: f32[32,128], index: 2, kind: input, shape index: {}]
  %s3 = inlined_call_operand.hbm [shape: f32[32,128], index: 3, kind: input, shape index: {}]
  %s4 = inlined_call_operand.vmem [shape: f32[1,128], index: 4, kind: input, shape index: {}]
  %s5 = inlined_call_operand.hbm [shape: f32[16,16,32], index: 5, kind: output, shape index: {0}]
  %s6 = inlined_call_operand.hbm [shape: f32[16,32], index: 6, kind: output, shape index: {1}]
  %s7 = inlined_call_operand.hbm [shape: f32[16,32], index: 7, kind: output, shape index: {2}]
  %8 = xla_tuple %s5, %s6, %s7
  %s9 = sld [smem:[#allocation0]]
  $region85: #{tpu_custom_call.1} parent=0
    _
  %s11 = ssub.s32 1, %s9
  %s12 = scalar_select 0, %s11, %s9
  $region1: #{tpu_custom_call.1} parent=0
    #allocation3 [shape = 'u8[131072]{0}', space=vmem, size = 0x20000, scoped, tag = 'input window, operand 1']
    #allocation4 [shape = 's32[2]{0}', space=sflag, size = 0x8, scoped, tag = 'scoped memory for tpu_custom_call.1']
    #allocation5 [shape = 's32[2]{0}', space=sflag, size = 0x8, scoped, tag = 'scoped memory for tpu_custom_call.1']
    #allocation6 [shape = 'u8[16384]{0}', space=vmem, size = 0x4000, scoped, tag = 'input window, operand 2, single buffered']
    #allocation7 [shape = 's32[1]{0}', space=sflag, size = 0x4, scoped, tag = 'scoped memory for tpu_custom_call.1']
    #allocation8 [shape = 'u8[16384]{0}', space=vmem, size = 0x4000, scoped, tag = 'input window, operand 3, single buffered']
    #allocation9 [shape = 'u8[131072]{0}', space=vmem, size = 0x20000, scoped, tag = 'output window, operand 0']
    #allocation10 [shape = 'u8[8192]{0}', space=vmem, size = 0x2000, scoped, tag = 'output window, operand 1, single buffered']
    #allocation11 [shape = 's32[1]{0}', space=sflag, size = 0x4, scoped, tag = 'scoped memory for tpu_custom_call.1']
    #allocation12 [shape = 'u8[8192]{0}', space=vmem, size = 0x2000, scoped, tag = 'output window, operand 2, single buffered']
    %13 = vsyncpa [#allocation4], 0
    %s14 = scalar_lea.sflag [#allocation4], 1
    %15 = vsyncpa %s14, 0
    %16 = vsyncpa [#allocation7], 0
    %17 = vsyncpa [#allocation5], 0
    %s18 = scalar_lea.sflag [#allocation5], 1
    %19 = vsyncpa %s18, 0
    %20 = vsyncpa [#allocation11], 0
    loop: start=0, step=1, limit=4
    $region2: #{tpu_custom_call.1} parent=1 // loop_pre_header
      _
    $region3: #{tpu_custom_call.1} parent=1 // loop_header
      %s22 = sphi 0, %s26
      %p23 = scmp.ge.s32.totalorder %s22, 4
      %s29 = sphi 0, %s41
      %s30 = sphi 0, %s37
      %s31 = sphi 0, %s29
      %s32 = sphi 0, %s30
      %s33 = sphi 0, %s31
      %s34 = sphi 0, %s32
      %s44 = sphi 0, %s46
      %s47 = sphi 0, %s44
      %s48 = sphi 0, %s47
      %s64 = sphi 0, %s48
      %s72 = sphi 0, %s74
      %s75 = sphi 0, %s72
      %s76 = sphi 0, %s75
      %s92 = sphi 0, %s76
      %s96 = sphi 0, %s96
      %s98 = sphi 0, %s96
      %s99 = sphi 0, %s98
      %s113 = sphi 0, %s99
      %s117 = sphi 0, %s117
      %s119 = sphi 0, %s117
      %s120 = sphi 0, %s119
      %s134 = sphi 0, %s120
      %s138 = sphi 0, %s138
      %s140 = sphi 0, %s138
      %s141 = sphi 0, %s140
      %s155 = sphi 0, %s141
      %s163 = sphi 0, %s165
      %s166 = sphi 0, %s163
      %s167 = sphi 0, %s166
      %s183 = sphi 0, %s167
      %s189 = sphi 0, %s191
      %s192 = sphi 0, %s189
      %s193 = sphi 0, %s192
      %s209 = sphi 0, %s193
      %s215 = sphi 0, %s217
      %s218 = sphi 0, %s215
      %s219 = sphi 0, %s218
      %s235 = sphi 0, %s219
    $region4: #{tpu_custom_call.1} parent=1 // loop_header_branch
      %25 = sbr.rel (%p23) target = $region8
    $region5: #{tpu_custom_call.1} parent=1 // loop_body
      %s27 = ssub.s32 %s22, 1
      %s28 = ssub.s32 %s22, 2
      %s35 = sadd.s32 1, %s30
      %p36 = scmp.ge.s32.totalorder %s35, 2
      %s37 = scalar_select %p36, 0, %s35
      %s38 = sadd.s32 1, %s29
      %s39 = scalar_select %p36, %s38, %s29
      %p40 = scmp.ge.s32.totalorder %s39, 1
      %s41 = scalar_select %p40, 0, %s39
      %s42 = ssub.s32 %s29, %s41
      %p43 = scmp.eq.s32.totalorder %s42, 0
      %s45 = sadd.s32 %s44, 1
      %s46 = scalar_select %p43, %s44, %s45
      %p49 = pneg %p43
      %p50 = scmp.eq.s32.totalorder %s22, 1
      %p51 = por %p49, %p50
      %p52 = scmp.ne.s32.totalorder %s44, %s47
      %p53 = scmp.eq.s32.totalorder %s22, 0
      %p54 = por %p52, %p53
      %p55 = scmp.ne.s32.totalorder %s44, %s47
      %p56 = scmp.eq.s32.totalorder %s27, 1
      %p57 = por %p55, %p56
      %p58 = scmp.ne.s32.totalorder %s47, %s48
      %p59 = scmp.eq.s32.totalorder %s27, 0
      %p60 = por %p58, %p59
      %p61 = scmp.ne.s32.totalorder %s47, %s48
      %p62 = scmp.eq.s32.totalorder %s28, 1
      %p63 = por %p61, %p62
      %p65 = scmp.ne.s32.totalorder %s48, %s64
      %p66 = scmp.eq.s32.totalorder %s28, 0
      %p67 = por %p65, %p66
      %s68 = ssub.s32 %s30, %s37
      %s69 = ssub.s32 %s29, %s41
      %s70 = sor.u32 %s68, %s69
      %p71 = scmp.eq.s32.totalorder %s70, 0
      %s73 = sadd.s32 %s72, 1
      %s74 = scalar_select %p71, %s72, %s73
      %p77 = pneg %p71
      %p78 = scmp.eq.s32.totalorder %s22, 1
      %p79 = por %p77, %p78
      %p80 = scmp.ne.s32.totalorder %s72, %s75
      %p81 = scmp.eq.s32.totalorder %s22, 0
      %p82 = por %p80, %p81
      %p83 = scmp.ne.s32.totalorder %s72, %s75
      %p84 = scmp.eq.s32.totalorder %s27, 1
      %p85 = por %p83, %p84
      %p86 = scmp.ne.s32.totalorder %s75, %s76
      %p87 = scmp.eq.s32.totalorder %s27, 0
      %p88 = por %p86, %p87
      %p89 = scmp.ne.s32.totalorder %s75, %s76
      %p90 = scmp.eq.s32.totalorder %s28, 1
      %p91 = por %p89, %p90
      %p93 = scmp.ne.s32.totalorder %s76, %s92
      %p94 = scmp.eq.s32.totalorder %s28, 0
      %p95 = por %p93, %p94
      %s97 = sadd.s32 %s96, 1
      %p100 = scmp.eq.s32.totalorder %s22, 1
      %p101 = scmp.ne.s32.totalorder %s96, %s98
      %p102 = scmp.eq.s32.totalorder %s22, 0
      %p103 = por %p101, %p102
      %p104 = scmp.ne.s32.totalorder %s96, %s98
      %p105 = scmp.eq.s32.totalorder %s27, 1
      %p106 = por %p104, %p105
      %p107 = scmp.ne.s32.totalorder %s98, %s99
      %p108 = scmp.eq.s32.totalorder %s27, 0
      %p109 = por %p107, %p108
      %p110 = scmp.ne.s32.totalorder %s98, %s99
      %p111 = scmp.eq.s32.totalorder %s28, 1
      %p112 = por %p110, %p111
      %p114 = scmp.ne.s32.totalorder %s99, %s113
      %p115 = scmp.eq.s32.totalorder %s28, 0
      %p116 = por %p114, %p115
      %s118 = sadd.s32 %s117, 1
      %p121 = scmp.eq.s32.totalorder %s22, 1
      %p122 = scmp.ne.s32.totalorder %s117, %s119
      %p123 = scmp.eq.s32.totalorder %s22, 0
      %p124 = por %p122, %p123
      %p125 = scmp.ne.s32.totalorder %s117, %s119
      %p126 = scmp.eq.s32.totalorder %s27, 1
      %p127 = por %p125, %p126
      %p128 = scmp.ne.s32.totalorder %s119, %s120
      %p129 = scmp.eq.s32.totalorder %s27, 0
      %p130 = por %p128, %p129
      %p131 = scmp.ne.s32.totalorder %s119, %s120
      %p132 = scmp.eq.s32.totalorder %s28, 1
      %p133 = por %p131, %p132
      %p135 = scmp.ne.s32.totalorder %s120, %s134
      %p136 = scmp.eq.s32.totalorder %s28, 0
      %p137 = por %p135, %p136
      %s139 = sadd.s32 %s138, 1
      %p142 = scmp.eq.s32.totalorder %s22, 1
      %p143 = scmp.ne.s32.totalorder %s138, %s140
      %p144 = scmp.eq.s32.totalorder %s22, 0
      %p145 = por %p143, %p144
      %p146 = scmp.ne.s32.totalorder %s138, %s140
      %p147 = scmp.eq.s32.totalorder %s27, 1
      %p148 = por %p146, %p147
      %p149 = scmp.ne.s32.totalorder %s140, %s141
      %p150 = scmp.eq.s32.totalorder %s27, 0
      %p151 = por %p149, %p150
      %p152 = scmp.ne.s32.totalorder %s140, %s141
      %p153 = scmp.eq.s32.totalorder %s28, 1
      %p154 = por %p152, %p153
      %p156 = scmp.ne.s32.totalorder %s141, %s155
      %p157 = scmp.eq.s32.totalorder %s28, 0
      %p158 = por %p156, %p157
      %s159 = ssub.s32 %s29, %s41
      %s160 = ssub.s32 %s30, %s37
      %s161 = sor.u32 %s159, %s160
      %p162 = scmp.eq.s32.totalorder %s161, 0
      %s164 = sadd.s32 %s163, 1
      %s165 = scalar_select %p162, %s163, %s164
      %p168 = pneg %p162
      %p169 = scmp.eq.s32.totalorder %s22, 1
      %p170 = por %p168, %p169
      %p171 = scmp.ne.s32.totalorder %s163, %s166
      %p172 = scmp.eq.s32.totalorder %s22, 0
      %p173 = por %p171, %p172
      %p174 = scmp.ne.s32.totalorder %s163, %s166
      %p175 = scmp.eq.s32.totalorder %s27, 1
      %p176 = por %p174, %p175
      %p177 = scmp.ne.s32.totalorder %s166, %s167
      %p178 = scmp.eq.s32.totalorder %s27, 0
      %p179 = por %p177, %p178
      %p180 = scmp.ne.s32.totalorder %s166, %s167
      %p181 = scmp.eq.s32.totalorder %s28, 1
      %p182 = por %p180, %p181
      %p184 = scmp.ne.s32.totalorder %s167, %s183
      %p185 = scmp.eq.s32.totalorder %s28, 0
      %p186 = por %p184, %p185
      %s187 = ssub.s32 %s29, %s41
      %p188 = scmp.eq.s32.totalorder %s187, 0
      %s190 = sadd.s32 %s189, 1
      %s191 = scalar_select %p188, %s189, %s190
      %p194 = pneg %p188
      %p195 = scmp.eq.s32.totalorder %s22, 1
      %p196 = por %p194, %p195
      %p197 = scmp.ne.s32.totalorder %s189, %s192
      %p198 = scmp.eq.s32.totalorder %s22, 0
      %p199 = por %p197, %p198
      %p200 = scmp.ne.s32.totalorder %s189, %s192
      %p201 = scmp.eq.s32.totalorder %s27, 1
      %p202 = por %p200, %p201
      %p203 = scmp.ne.s32.totalorder %s192, %s193
      %p204 = scmp.eq.s32.totalorder %s27, 0
      %p205 = por %p203, %p204
      %p206 = scmp.ne.s32.totalorder %s192, %s193
      %p207 = scmp.eq.s32.totalorder %s28, 1
      %p208 = por %p206, %p207
      %p210 = scmp.ne.s32.totalorder %s193, %s209
      %p211 = scmp.eq.s32.totalorder %s28, 0
      %p212 = por %p210, %p211
      %s213 = ssub.s32 %s29, %s41
      %p214 = scmp.eq.s32.totalorder %s213, 0
      %s216 = sadd.s32 %s215, 1
      %s217 = scalar_select %p214, %s215, %s216
      %p220 = pneg %p214
      %p221 = scmp.eq.s32.totalorder %s22, 1
      %p222 = por %p220, %p221
      %p223 = scmp.ne.s32.totalorder %s215, %s218
      %p224 = scmp.eq.s32.totalorder %s22, 0
      %p225 = por %p223, %p224
      %p226 = scmp.ne.s32.totalorder %s215, %s218
      %p227 = scmp.eq.s32.totalorder %s27, 1
      %p228 = por %p226, %p227
      %p229 = scmp.ne.s32.totalorder %s218, %s219
      %p230 = scmp.eq.s32.totalorder %s27, 0
      %p231 = por %p229, %p230
      %p232 = scmp.ne.s32.totalorder %s218, %s219
      %p233 = scmp.eq.s32.totalorder %s28, 1
      %p234 = por %p232, %p233
      %p236 = scmp.ne.s32.totalorder %s219, %s235
      %p237 = scmp.eq.s32.totalorder %s28, 0
      %p238 = por %p236, %p237
      %p239 = scmp.le.s32.totalorder 1, %s22
      %p240 = scmp.lt.s32.totalorder %s22, 3
      %p241 = pnand %p239, %p240
      %p242 = pneg %p241
      // Predicated region
      $region9: #{tpu_custom_call.1} parent=5 // pred_check
        _
      $region10: #{tpu_custom_call.1} parent=5 // pred_check_branch
        %244 = sbr.rel (%p241) target = $region12
      $region11: #{tpu_custom_call.1} parent=5 // pred_region
        %s245 = ssub.s32 %s22, 1
        // Predicated region
        $region13: #{tpu_custom_call.1} parent=11 // pred_check
          %p246 = pneg %p60
        $region14: #{tpu_custom_call.1} parent=11 // pred_check_branch
          %248 = sbr.rel (%p246) target = $region16
        $region15: #{tpu_custom_call.1} parent=11 // pred_region
          %s249 = smul.u32 2, %s31
          %p250 = scmp.lt.s32.totalorder %s249, 1
          %s251 = scalar_select %p250, %s249, 1
          %s252 = smul.addr %s251, 8
          %s253 = scalar_lea.vmem %s0, %s252
          %s254 = smul.u32 2, %s31
        $region16: #{tpu_custom_call.1} parent=11 // pred_fallthru
          _
        // Predicated region
        $region17: #{tpu_custom_call.1} parent=11 // pred_check
          %p255 = pneg %p109
        $region18: #{tpu_custom_call.1} parent=11 // pred_check_branch
          %257 = sbr.rel (%p255) target = $region20
        $region19: #{tpu_custom_call.1} parent=11 // pred_region
          %s259 = ssub.s32 512, 512
          %260 = vsyncadd [#allocation7], %s259
          %s261 = sshll.u32 [#allocation6], 4
          %s262 = int_to_ptr.vmem [resolvable:$true] %s261
          %267 = dma.hbm_to_vmem [thread:$0]  %s2, 512, %s262, [#allocation7], 128, 128, 8
        $region20: #{tpu_custom_call.1} parent=11 // pred_fallthru
          _
        // Predicated region
        $region21: #{tpu_custom_call.1} parent=11 // pred_check
          %p268 = pneg %p130
        $region22: #{tpu_custom_call.1} parent=11 // pred_check_branch
          %270 = sbr.rel (%p268) target = $region24
        $region23: #{tpu_custom_call.1} parent=11 // pred_region
          %s272 = ssub.s32 512, 512
          %273 = vsyncadd [#allocation7], %s272
          %s274 = sshll.u32 [#allocation8], 4
          %s275 = int_to_ptr.vmem [resolvable:$true] %s274
          %280 = dma.hbm_to_vmem [thread:$0]  %s3, 512, %s275, [#allocation7], 128, 128, 8
        $region24: #{tpu_custom_call.1} parent=11 // pred_fallthru
          _
        // Predicated region
        $region25: #{tpu_custom_call.1} parent=11 // pred_check
          %p281 = pneg %p151
        $region26: #{tpu_custom_call.1} parent=11 // pred_check_branch
          %283 = sbr.rel (%p281) target = $region28
        $region27: #{tpu_custom_call.1} parent=11 // pred_region
          _
        $region28: #{tpu_custom_call.1} parent=11 // pred_fallthru
          _
      $region12: #{tpu_custom_call.1} parent=5 // pred_fallthru
        _
      %p284 = scmp.lt.s32.totalorder %s22, 2
      // Predicated region
      $region29: #{tpu_custom_call.1} parent=5 // pred_check
        %p285 = pneg %p284
      $region30: #{tpu_custom_call.1} parent=5 // pred_check_branch
        %287 = sbr.rel (%p285) target = $region32
      $region31: #{tpu_custom_call.1} parent=5 // pred_region
        // Predicated region
        $region33: #{tpu_custom_call.1} parent=31 // pred_check
          %p288 = pneg %p82
        $region34: #{tpu_custom_call.1} parent=31 // pred_check_branch
          %290 = sbr.rel (%p288) target = $region36
        $region35: #{tpu_custom_call.1} parent=31 // pred_region
          %s291 = sand.u32 %s72, 1
          %s292 = scalar_lea.sflag [#allocation4], %s291
          %s293 = sand.u32 %s72, 1
          %s294 = smul.addr %s293, 128
          %s295 = scalar_lea.vmem [#allocation3], %s294
          %s296 = smul.u32 8, %s30
          %s297 = smul.u32 2, %s29
          %s299 = ssub.s32 2048, 2048
          %300 = vsyncadd %s292, %s299
          %s301 = smul.addr %s296, 2
          %s302 = sadd.s32 %s297, %s301
          %s303 = smul.addr %s302, 128
          %s304 = scalar_lea.hbm %s1, %s303
          %s305 = sshll.u32 %s295, 4
          %s306 = int_to_ptr.vmem [resolvable:$true] %s305
          %311 = dma.hbm_to_vmem [thread:$0]  %s304, 2048, %s306, %s292, 128, 128, 8
        $region36: #{tpu_custom_call.1} parent=31 // pred_fallthru
          _
      $region32: #{tpu_custom_call.1} parent=5 // pred_fallthru
        _
      %p312 = scmp.le.s32.totalorder 1, %s22
      %p313 = scmp.lt.s32.totalorder %s22, 3
      %p314 = pnand %p312, %p313
      %p315 = pneg %p314
      // Predicated region
      $region37: #{tpu_custom_call.1} parent=5 // pred_check
        _
      $region38: #{tpu_custom_call.1} parent=5 // pred_check_branch
        %317 = sbr.rel (%p314) target = $region40
      $region39: #{tpu_custom_call.1} parent=5 // pred_region
        %s318 = ssub.s32 %s22, 1
        %s319 = sand.u32 %s75, 1
        %s320 = scalar_lea.sflag [#allocation4], %s319
        %s321 = sand.u32 %s75, 1
        %s322 = smul.addr %s321, 128
        %s323 = scalar_lea.vmem [#allocation3], %s322
        // Predicated region
        $region41: #{tpu_custom_call.1} parent=39 // pred_check
          %p324 = pneg %p88
        $region42: #{tpu_custom_call.1} parent=39 // pred_check_branch
          %326 = sbr.rel (%p324) target = $region44
        $region43: #{tpu_custom_call.1} parent=39 // pred_region
          %327 = dma.done %s320, 2048
        $region44: #{tpu_custom_call.1} parent=39 // pred_fallthru
          _
        // Predicated region
        $region45: #{tpu_custom_call.1} parent=39 // pred_check
          %p328 = pneg %p109
        $region46: #{tpu_custom_call.1} parent=39 // pred_check_branch
          %330 = sbr.rel (%p328) target = $region48
        $region47: #{tpu_custom_call.1} parent=39 // pred_region
          %331 = dma.done [#allocation7], 512
        $region48: #{tpu_custom_call.1} parent=39 // pred_fallthru
          _
        // Predicated region
        $region49: #{tpu_custom_call.1} parent=39 // pred_check
          %p332 = pneg %p130
        $region50: #{tpu_custom_call.1} parent=39 // pred_check_branch
          %334 = sbr.rel (%p332) target = $region52
        $region51: #{tpu_custom_call.1} parent=39 // pred_region
          %335 = dma.done [#allocation7], 512
        $region52: #{tpu_custom_call.1} parent=39 // pred_fallthru
          _
        %s336 = smul.u32 2, %s31
        %p337 = scmp.lt.s32.totalorder %s336, 1
        %s338 = scalar_select %p337, %s336, 1
        %s339 = smul.addr %s338, 8
        %s340 = scalar_lea.vmem %s0, %s339
        %p341 = pneg %p60
        %p342 = pneg %p57
        %s343 = sand.u32 %s75, 1
        %s344 = scalar_lea.sflag [#allocation4], %s343
        %s345 = sand.u32 %s75, 1
        %s346 = smul.addr %s345, 128
        %s347 = scalar_lea.vmem [#allocation3], %s346
        %p348 = pneg %p88
        %p349 = pneg %p85
        %p350 = pneg %p109
        %p351 = pneg %p106
        %p352 = pneg %p130
        %p353 = pneg %p127
        %p354 = pneg %p151
        %p355 = pneg %p148
        %p356 = pneg %p179
        %p357 = pneg %p176
        %s358 = sand.u32 %s166, 1
        %s359 = scalar_lea.sflag [#allocation5], %s358
        %s360 = sand.u32 %s166, 1
        %s361 = smul.addr %s360, 128
        %s362 = scalar_lea.vmem [#allocation9], %s361
        %p363 = pneg %p205
        %p364 = pneg %p202
        %p365 = pneg %p231
        %p366 = pneg %p228
        %s367 = smul.u32 2, %s31
        %p368 = scmp.lt.s32.totalorder %s367, 1
        %s369 = scalar_select %p368, %s367, 1
        %s370 = smul.addr %s369, 8
        %s371 = scalar_lea.vmem %s0, %s370
        %s372 = smul.u32 2, %s31
        %s373 = smul.u32 8, %s32
        %s374 = smul.u32 2, %s31
        %s375 = smul.u32 16, %s31
        %s376 = smul.u32 2, %s31
        %s377 = smul.u32 2, %s31
        %p378 = scmp.eq.s32.totalorder %s32, 0
        // Predicated region
        $region53: #{tpu_custom_call.1} parent=39 // pred_check
          %p379 = pneg %p378
        $region54: #{tpu_custom_call.1} parent=39 // pred_check_branch
          %381 = sbr.rel (%p379) target = $region56
        $region55: #{tpu_custom_call.1} parent=39 // pred_region
          %vm382 = vcmask 261120
          %383 = vst.msk [vmem:[#allocation10] sm:$0xff] %vm382, 0.0
          %384 = vst.msk [vmem:[#allocation10 + $0x8] sm:$0xff] %vm382, 0.0
          %385 = vst.msk [vmem:[#allocation12] sm:$0xff] %vm382, 0.0
          %386 = vst.msk [vmem:[#allocation12 + $0x8] sm:$0xff] %vm382, 0.0
        $region56: #{tpu_custom_call.1} parent=39 // pred_fallthru
          _
        %v387 = vld [vmem:[%s323] sm:$0xff]
        %v388 = vld [vmem:[%s323 + $0x8] sm:$0xff]
        %v389 = vld [vmem:[%s323 + $0x10] sm:$0xff]
        %v390 = vld [vmem:[%s323 + $0x18] sm:$0xff]
        %v391 = vld [vmem:[%s323 + $0x20] sm:$0xff]
        %v392 = vld [vmem:[%s323 + $0x28] sm:$0xff]
        %v393 = vld [vmem:[%s323 + $0x30] sm:$0xff]
        %v394 = vld [vmem:[%s323 + $0x38] sm:$0xff]
        %v395 = vld [vmem:[%s323 + $0x40] sm:$0xff]
        %v396 = vld [vmem:[%s323 + $0x48] sm:$0xff]
        %v397 = vld [vmem:[%s323 + $0x50] sm:$0xff]
        %v398 = vld [vmem:[%s323 + $0x58] sm:$0xff]
        %v399 = vld [vmem:[%s323 + $0x60] sm:$0xff]
        %v400 = vld [vmem:[%s323 + $0x68] sm:$0xff]
        %v401 = vld [vmem:[%s323 + $0x70] sm:$0xff]
        %v402 = vld [vmem:[%s323 + $0x78] sm:$0xff]
        %v403 = vld [vmem:[#allocation6] sm:$0xff]
        %v404 = vld [vmem:[#allocation6 + $0x8] sm:$0xff]
        %v405 = vld [vmem:[#allocation6 + $0x10] sm:$0xff]
        %v406 = vld [vmem:[#allocation6 + $0x18] sm:$0xff]
        %v407 = vld [vmem:[%s4] sm:$0x1]
        %v409 = vlaneseq
        %v410 = vshrl.u32 %v409, 7
        %v411 = vsub.s32 0, %v410
        %v412 = vrot.slane %v407, %v411
        %vm414 = vcmask 261120
        %v416 = vsel %vm414, %v387, 0
        %v419 = vsel %vm414, %v388, 0
        %v422 = vsel %vm414, %v389, 0
        %v425 = vsel %vm414, %v390, 0
        %v428 = vsel %vm414, %v391, 0
        %v431 = vsel %vm414, %v392, 0
        %v434 = vsel %vm414, %v393, 0
        %v437 = vsel %vm414, %v394, 0
        %v440 = vsel %vm414, %v395, 0
        %v443 = vsel %vm414, %v396, 0
        %v446 = vsel %vm414, %v397, 0
        %v449 = vsel %vm414, %v398, 0
        %v452 = vsel %vm414, %v399, 0
        %v455 = vsel %vm414, %v400, 0
        %v458 = vsel %vm414, %v401, 0
        %v461 = vsel %vm414, %v402, 0
        %463 = vmatprep.subr.mxu0 0.0
        %464 = vmatpush1.msra.mxu0 %v403
        %465 = vmatprep.subr.mxu0 0.0
        %466 = vmatpush1.msra.mxu0 %v404
        %467 = vmatprep.subr.mxu0 0.0
        %468 = vmatpush1.msra.mxu0 %v405
        %469 = vmatprep.subr.mxu0 0.0
        %470 = vmatpush1.msra.mxu0 %v406
        %471 = vmatprep.subr.mxu0 0.0
        %472 = vmatpush1.msra.mxu0 0.0
        %473 = vmatprep.subr.mxu0 0.0
        %474 = vmatpush1.msra.mxu0 0.0
        %475 = vmatprep.subr.mxu0 0.0
        %476 = vmatpush1.msra.mxu0 0.0
        %477 = vmatprep.subr.mxu0 0.0
        %478 = vmatpush1.msra.mxu0 0.0
        %479 = vmatprep.subr.mxu0 0.0
        %480 = vmatpush1.msra.mxu0 0.0
        %481 = vmatprep.subr.mxu0 0.0
        %482 = vmatpush1.msra.mxu0 0.0
        %483 = vmatprep.subr.mxu0 0.0
        %484 = vmatpush1.msra.mxu0 0.0
        %485 = vmatprep.subr.mxu0 0.0
        %486 = vmatpush1.msra.mxu0 0.0
        %487 = vmatprep.subr.mxu0 0.0
        %488 = vmatpush1.msra.mxu0 0.0
        %489 = vmatprep.subr.mxu0 0.0
        %490 = vmatpush1.msra.mxu0 0.0
        %491 = vmatprep.subr.mxu0 0.0
        %492 = vmatpush1.msra.mxu0 0.0
        %493 = vmatprep.subr.mxu0 0.0
        %494 = vmatpush1.msra.mxu0 0.0
        %495 = vmatprep.subr.mxu0 0.0
        %496 = vmatpush1.msra.mxu0 0.0
        %497 = vmatprep.subr.mxu0 0.0
        %498 = vmatpush1.msra.mxu0 0.0
        %499 = vmatprep.subr.mxu0 0.0
        %500 = vmatpush1.msra.mxu0 0.0
        %501 = vmatprep.subr.mxu0 0.0
        %502 = vmatpush1.msra.mxu0 0.0
        %503 = vmatprep.subr.mxu0 0.0
        %504 = vmatpush1.msra.mxu0 0.0
        %505 = vmatprep.subr.mxu0 0.0
        %506 = vmatpush1.msra.mxu0 0.0
        %507 = vmatprep.subr.mxu0 0.0
        %508 = vmatpush1.msra.mxu0 0.0
        %509 = vmatprep.subr.mxu0 0.0
        %510 = vmatpush1.msra.mxu0 0.0
        %511 = vmatprep.subr.mxu0 0.0
        %512 = vmatpush1.msra.mxu0 0.0
        %513 = vmatprep.subr.mxu0 0.0
        %514 = vmatpush1.msra.mxu0 0.0
        %515 = vmatprep.subr.mxu0 0.0
        %516 = vmatpush1.msra.mxu0 0.0
        %517 = vmatprep.subr.mxu0 0.0
        %518 = vmatpush1.msra.mxu0 0.0
        %519 = vmatprep.subr.mxu0 0.0
        %520 = vmatpush1.msra.mxu0 0.0
        %521 = vmatprep.subr.mxu0 0.0
        %522 = vmatpush1.msra.mxu0 0.0
        %523 = vmatprep.subr.mxu0 0.0
        %524 = vmatpush1.msra.mxu0 0.0
        %525 = vmatprep.subr.mxu0 0.0
        %526 = vmatpush1.msra.mxu0 0.0
        %527 = vmatprep.mubr.f32.mxu0 0.0
        %528 = vmatmul.mubr.f32.gmra.mrb[0].mxu0 %v416
        %v529 = vpop.f32.mrb[0].mxu0
        %v530 = vadd.f32 %v412, %v529
        %v531 = vpop.f32.mrb[0].mxu0
        %532 = vmatprep.mubr.f32.mxu0 0.0
        %533 = vmatmul.mubr.f32.gmra.mrb[0].mxu0 %v419
        %v534 = vpop.f32.mrb[0].mxu0
        %v535 = vadd.f32 %v412, %v534
        %v536 = vpop.f32.mrb[0].mxu0
        %537 = vmatprep.mubr.f32.mxu0 0.0
        %538 = vmatmul.mubr.f32.gmra.mrb[0].mxu0 %v422
        %v539 = vpop.f32.mrb[0].mxu0
        %v540 = vadd.f32 %v412, %v539
        %v541 = vpop.f32.mrb[0].mxu0
        %542 = vmatprep.mubr.f32.mxu0 0.0
        %543 = vmatmul.mubr.f32.gmra.mrb[0].mxu0 %v425
        %v544 = vpop.f32.mrb[0].mxu0
        %v545 = vadd.f32 %v412, %v544
        %v546 = vpop.f32.mrb[0].mxu0
        %547 = vmatprep.mubr.f32.mxu0 0.0
        %548 = vmatmul.mubr.f32.gmra.mrb[0].mxu0 %v428
        %v549 = vpop.f32.mrb[0].mxu0
        %v550 = vadd.f32 %v412, %v549
        %v551 = vpop.f32.mrb[0].mxu0
        %552 = vmatprep.mubr.f32.mxu0 0.0
        %553 = vmatmul.mubr.f32.gmra.mrb[0].mxu0 %v431
        %v554 = vpop.f32.mrb[0].mxu0
        %v555 = vadd.f32 %v412, %v554
        %v556 = vpop.f32.mrb[0].mxu0
        %557 = vmatprep.mubr.f32.mxu0 0.0
        %558 = vmatmul.mubr.f32.gmra.mrb[0].mxu0 %v434
        %v559 = vpop.f32.mrb[0].mxu0
        %v560 = vadd.f32 %v412, %v559
        %v561 = vpop.f32.mrb[0].mxu0
        %562 = vmatprep.mubr.f32.mxu0 0.0
        %563 = vmatmul.mubr.f32.gmra.mrb[0].mxu0 %v437
        %v564 = vpop.f32.mrb[0].mxu0
        %v565 = vadd.f32 %v412, %v564
        %v566 = vpop.f32.mrb[0].mxu0
        %567 = vmatprep.mubr.f32.mxu0 0.0
        %568 = vmatmul.mubr.f32.gmra.mrb[0].mxu0 %v440
        %v569 = vpop.f32.mrb[0].mxu0
        %v570 = vadd.f32 %v412, %v569
        %v571 = vpop.f32.mrb[0].mxu0
        %572 = vmatprep.mubr.f32.mxu0 0.0
        %573 = vmatmul.mubr.f32.gmra.mrb[0].mxu0 %v443
        %v574 = vpop.f32.mrb[0].mxu0
        %v575 = vadd.f32 %v412, %v574
        %v576 = vpop.f32.mrb[0].mxu0
        %577 = vmatprep.mubr.f32.mxu0 0.0
        %578 = vmatmul.mubr.f32.gmra.mrb[0].mxu0 %v446
        %v579 = vpop.f32.mrb[0].mxu0
        %v580 = vadd.f32 %v412, %v579
        %v581 = vpop.f32.mrb[0].mxu0
        %582 = vmatprep.mubr.f32.mxu0 0.0
        %583 = vmatmul.mubr.f32.gmra.mrb[0].mxu0 %v449
        %v584 = vpop.f32.mrb[0].mxu0
        %v585 = vadd.f32 %v412, %v584
        %v586 = vpop.f32.mrb[0].mxu0
        %587 = vmatprep.mubr.f32.mxu0 0.0
        %588 = vmatmul.mubr.f32.gmra.mrb[0].mxu0 %v452
        %v589 = vpop.f32.mrb[0].mxu0
        %v590 = vadd.f32 %v412, %v589
        %v591 = vpop.f32.mrb[0].mxu0
        %592 = vmatprep.mubr.f32.mxu0 0.0
        %593 = vmatmul.mubr.f32.gmra.mrb[0].mxu0 %v455
        %v594 = vpop.f32.mrb[0].mxu0
        %v595 = vadd.f32 %v412, %v594
        %v596 = vpop.f32.mrb[0].mxu0
        %597 = vmatprep.mubr.f32.mxu0 0.0
        %598 = vmatmul.mubr.f32.gmra.mrb[0].mxu0 %v458
        %v599 = vpop.f32.mrb[0].mxu0
        %v600 = vadd.f32 %v412, %v599
        %v601 = vpop.f32.mrb[0].mxu0
        %602 = vmatprep.mubr.f32.mxu0 0.0
        %603 = vmatmul.mubr.f32.gmra.mrb[0].mxu0 %v461
        %v604 = vpop.f32.mrb[0].mxu0
        %v605 = vadd.f32 %v412, %v604
        %v606 = vpop.f32.mrb[0].mxu0
        %607 = vdwg.mxu0
        %608 = vst [vmem:[#allocation2] sm:$0xff] %v530
        %609 = vst [vmem:[#allocation2 + $0x8] sm:$0xff] %v535
        %610 = vst [vmem:[#allocation2 + $0x10] sm:$0xff] %v540
        %611 = vst [vmem:[#allocation2 + $0x18] sm:$0xff] %v545
        %612 = vst [vmem:[#allocation2 + $0x20] sm:$0xff] %v550
        %613 = vst [vmem:[#allocation2 + $0x28] sm:$0xff] %v555
        %614 = vst [vmem:[#allocation2 + $0x30] sm:$0xff] %v560
        %615 = vst [vmem:[#allocation2 + $0x38] sm:$0xff] %v565
        %616 = vst [vmem:[#allocation2 + $0x40] sm:$0xff] %v570
        %617 = vst [vmem:[#allocation2 + $0x48] sm:$0xff] %v575
        %618 = vst [vmem:[#allocation2 + $0x50] sm:$0xff] %v580
        %619 = vst [vmem:[#allocation2 + $0x58] sm:$0xff] %v585
        %620 = vst [vmem:[#allocation2 + $0x60] sm:$0xff] %v590
        %621 = vst [vmem:[#allocation2 + $0x68] sm:$0xff] %v595
        %622 = vst [vmem:[#allocation2 + $0x70] sm:$0xff] %v600
        %623 = vst [vmem:[#allocation2 + $0x78] sm:$0xff] %v605
        %v624 = vld [vmem:[#allocation10] sm:$0xff]
        %v625 = vld [vmem:[#allocation10 + $0x8] sm:$0xff]
        %v626 = vld [vmem:[#allocation12] sm:$0xff]
        %v627 = vld [vmem:[#allocation12 + $0x8] sm:$0xff]
        %v628 = vld [vmem:[#allocation8] sm:$0xff]
        %v629 = vld [vmem:[#allocation8 + $0x8] sm:$0xff]
        %v630 = vld [vmem:[#allocation8 + $0x10] sm:$0xff]
        %v631 = vld [vmem:[#allocation8 + $0x18] sm:$0xff]
        %v632 = vld [vmem:[%s371] sm:$0xff]
        %v633 = vld [vmem:[%s371 + $0x8] sm:$0xff]
        %s634 = smul.u32 %s32, 8
        %v635 = vlaneseq
        %v636 = vand.u32 %v635, 127
        %v637 = vstv %s634
        %v638 = vadd.s32 %v637, %v636
        %639 = vset.pattern.permute.xlu0 0
        %640 = vperm.xlu0 %639, %v632
        %v641 = vpop.permute.xlu0 %640
        %642 = vset.pattern.permute.xlu0 0
        %643 = vperm.xlu0 %642, %v633
        %v644 = vpop.permute.xlu0 %643
        %vm645 = vcmp.lt.s32.totalorder %v638, %v641
        %vm646 = vcmp.lt.s32.totalorder %v638, %v644
        %v647 = vld [vmem:[#allocation2] sm:$0xff]
        %v648 = vld [vmem:[#allocation2 + $0x8] sm:$0xff]
        %v650 = vsel %vm414, %v624, 0
        %v653 = vsel %vm414, %v625, 0
        %655 = vmatprep.subr.mxu0 0.0
        %656 = vmatpush1.msra.mxu0 %v628
        %657 = vmatprep.subr.mxu0 0.0
        %658 = vmatpush1.msra.mxu0 %v629
        %659 = vmatprep.subr.mxu0 0.0
        %660 = vmatpush1.msra.mxu0 %v630
        %661 = vmatprep.subr.mxu0 0.0
        %662 = vmatpush1.msra.mxu0 %v631
        %663 = vmatprep.subr.mxu0 0.0
        %664 = vmatpush1.msra.mxu0 0.0
        %665 = vmatprep.subr.mxu0 0.0
        %666 = vmatpush1.msra.mxu0 0.0
        %667 = vmatprep.subr.mxu0 0.0
        %668 = vmatpush1.msra.mxu0 0.0
        %669 = vmatprep.subr.mxu0 0.0
        %670 = vmatpush1.msra.mxu0 0.0
        %671 = vmatprep.subr.mxu0 0.0
        %672 = vmatpush1.msra.mxu0 0.0
        %673 = vmatprep.subr.mxu0 0.0
        %674 = vmatpush1.msra.mxu0 0.0
        %675 = vmatprep.subr.mxu0 0.0
        %676 = vmatpush1.msra.mxu0 0.0
        %677 = vmatprep.subr.mxu0 0.0
        %678 = vmatpush1.msra.mxu0 0.0
        %679 = vmatprep.subr.mxu0 0.0
        %680 = vmatpush1.msra.mxu0 0.0
        %681 = vmatprep.subr.mxu0 0.0
        %682 = vmatpush1.msra.mxu0 0.0
        %683 = vmatprep.subr.mxu0 0.0
        %684 = vmatpush1.msra.mxu0 0.0
        %685 = vmatprep.subr.mxu0 0.0
        %686 = vmatpush1.msra.mxu0 0.0
        %687 = vmatprep.subr.mxu0 0.0
        %688 = vmatpush1.msra.mxu0 0.0
        %689 = vmatprep.subr.mxu0 0.0
        %690 = vmatpush1.msra.mxu0 0.0
        %691 = vmatprep.subr.mxu0 0.0
        %692 = vmatpush1.msra.mxu0 0.0
        %693 = vmatprep.subr.mxu0 0.0
        %694 = vmatpush1.msra.mxu0 0.0
        %695 = vmatprep.subr.mxu0 0.0
        %696 = vmatpush1.msra.mxu0 0.0
        %697 = vmatprep.subr.mxu0 0.0
        %698 = vmatpush1.msra.mxu0 0.0
        %699 = vmatprep.subr.mxu0 0.0
        %700 = vmatpush1.msra.mxu0 0.0
        %701 = vmatprep.subr.mxu0 0.0
        %702 = vmatpush1.msra.mxu0 0.0
        %703 = vmatprep.subr.mxu0 0.0
        %704 = vmatpush1.msra.mxu0 0.0
        %705 = vmatprep.subr.mxu0 0.0
        %706 = vmatpush1.msra.mxu0 0.0
        %707 = vmatprep.subr.mxu0 0.0
        %708 = vmatpush1.msra.mxu0 0.0
        %709 = vmatprep.subr.mxu0 0.0
        %710 = vmatpush1.msra.mxu0 0.0
        %711 = vmatprep.subr.mxu0 0.0
        %712 = vmatpush1.msra.mxu0 0.0
        %713 = vmatprep.subr.mxu0 0.0
        %714 = vmatpush1.msra.mxu0 0.0
        %715 = vmatprep.subr.mxu0 0.0
        %716 = vmatpush1.msra.mxu0 0.0
        %717 = vmatprep.subr.mxu0 0.0
        %718 = vmatpush1.msra.mxu0 0.0
        %719 = vmatprep.mubr.f32.mxu0 0.0
        %720 = vmatmul.mubr.f32.gmra.mrb[0].mxu0 %v650
        %v721 = vpop.f32.mrb[0].mxu0
        %v722 = vadd.f32 0.0, %v721
        %v723 = vpop.f32.mrb[0].mxu0
        %724 = vmatprep.mubr.f32.mxu0 0.0
        %725 = vmatmul.mubr.f32.gmra.mrb[0].mxu0 %v653
        %v726 = vpop.f32.mrb[0].mxu0
        %v727 = vadd.f32 0.0, %v726
        %v728 = vpop.f32.mrb[0].mxu0
        %729 = vdwg.mxu0
        %v730 = vadd.f32 %v647, %v722
        %v731 = vadd.f32 %v648, %v727
        %v732 = vmul.f32 %v730, 0.5
        %v733 = vmul.f32 %v731, 0.5
        %v734 = vtanh.pop %v732
        %v735 = vtanh.pop %v733
        %v736 = vadd.f32 %v734, 1.0
        %v737 = vadd.f32 %v735, 1.0
        %v738 = vmul.f32 %v736, 0.5
        %v739 = vmul.f32 %v737, 0.5
        %v740 = vtanh.pop %v730
        %v741 = vtanh.pop %v731
        %744 = vrot.lane.b32.xlu0 %v626, 32
        %v745 = vpop.permute.xlu0 %744
        %746 = vrot.lane.b32.xlu0 %v627, 32
        %v747 = vpop.permute.xlu0 %746
        %v750 = vmul.f32 %v738, %v745
        %v751 = vmul.f32 %v739, %v747
        %754 = vrot.lane.b32.xlu0 %v740, 64
        %v755 = vpop.permute.xlu0 %754
        %756 = vrot.lane.b32.xlu0 %v741, 64
        %v757 = vpop.permute.xlu0 %756
        %v760 = vmul.f32 %v738, %v755
        %v761 = vmul.f32 %v739, %v757
        %764 = vrot.lane.b32.xlu0 %v760, 32
        %v765 = vpop.permute.xlu0 %764
        %766 = vrot.lane.b32.xlu0 %v761, 32
        %v767 = vpop.permute.xlu0 %766
        %v770 = vadd.f32 %v750, %v765
        %v771 = vadd.f32 %v751, %v767
        %v772 = vtanh.pop %v770
        %v773 = vtanh.pop %v771
        %776 = vrot.lane.b32.xlu0 %v772, 64
        %v777 = vpop.permute.xlu0 %776
        %778 = vrot.lane.b32.xlu0 %v773, 64
        %v779 = vpop.permute.xlu0 %778
        %v782 = vmul.f32 %v738, %v777
        %v783 = vmul.f32 %v739, %v779
        %v784 = vsel %vm645, 1, 0
        %v785 = vsel %vm646, 1, 0
        %786 = vset.pattern.permute.xlu0 0
        %787 = vperm.xlu0 %786, %v784
        %v788 = vpop.permute.xlu0 %787
        %789 = vset.pattern.permute.xlu0 0
        %790 = vperm.xlu0 %789, %v785
        %v791 = vpop.permute.xlu0 %790
        %vm792 = vcmp.eq.s32.totalorder %v788, 1
        %vm793 = vcmp.eq.s32.totalorder %v791, 1
        %v794 = vsel %vm792, %v770, %v745
        %v795 = vsel %vm793, %v771, %v747
        %796 = vrot.lane.b32.xlu0 %v624, 96
        %v797 = vpop.permute.xlu0 %796
        %798 = vrot.lane.b32.xlu0 %v625, 96
        %v799 = vpop.permute.xlu0 %798
        %v802 = vsel %vm792, %v782, %v797
        %v803 = vsel %vm793, %v783, %v799
        %v804 = vsel %vm792, %v782, 0.0
        %v805 = vsel %vm793, %v783, 0.0
        %v808 = vcombine.high %v804, %v804
        %v810 = vunpack.c.l.s4 1966171168
        %v811 = vunpack.c.0.s8 %v810
        %v812 = vlaneseq
        %v813 = vshrl.u32 %v812, 7
        %v814 = vsub.s32 %v811, %v813
        %v815 = vrot.slane %v804, %v814
        %v817 = vunpack.c.l.s4 1966171168
        %v818 = vunpack.c.0.s8 %v817
        %v819 = vlaneseq
        %v820 = vshrl.u32 %v819, 7
        %v821 = vsub.s32 %v818, %v820
        %v822 = vrot.slane %v808, %v821
        %v823 = vcombine.high %v815, %v815
        %v824 = vcombine.high %v822, %v822
        %v826 = vunpack.c.l.s4 1966171168
        %v827 = vunpack.c.0.s8 %v826
        %v828 = vlaneseq
        %v829 = vshrl.u32 %v828, 7
        %v830 = vsub.s32 %v827, %v829
        %v831 = vrot.slane %v815, %v830
        %v833 = vunpack.c.l.s4 1966171168
        %v834 = vunpack.c.0.s8 %v833
        %v835 = vlaneseq
        %v836 = vshrl.u32 %v835, 7
        %v837 = vsub.s32 %v834, %v836
        %v838 = vrot.slane %v822, %v837
        %v840 = vunpack.c.l.s4 1966171168
        %v841 = vunpack.c.0.s8 %v840
        %v842 = vlaneseq
        %v843 = vshrl.u32 %v842, 7
        %v844 = vsub.s32 %v841, %v843
        %v845 = vrot.slane %v823, %v844
        %v847 = vunpack.c.l.s4 1966171168
        %v848 = vunpack.c.0.s8 %v847
        %v849 = vlaneseq
        %v850 = vshrl.u32 %v849, 7
        %v851 = vsub.s32 %v848, %v850
        %v852 = vrot.slane %v824, %v851
        %v853 = vcombine.high %v831, %v831
        %v854 = vcombine.high %v838, %v838
        %v855 = vcombine.high %v845, %v845
        %v856 = vcombine.high %v852, %v852
        %v857 = vcombine.high %v805, %v805
        %v859 = vunpack.c.l.s4 1966171168
        %v860 = vunpack.c.0.s8 %v859
        %v861 = vlaneseq
        %v862 = vshrl.u32 %v861, 7
        %v863 = vsub.s32 %v860, %v862
        %v864 = vrot.slane %v805, %v863
        %v866 = vunpack.c.l.s4 1966171168
        %v867 = vunpack.c.0.s8 %v866
        %v868 = vlaneseq
        %v869 = vshrl.u32 %v868, 7
        %v870 = vsub.s32 %v867, %v869
        %v871 = vrot.slane %v857, %v870
        %v872 = vcombine.high %v864, %v864
        %v873 = vcombine.high %v871, %v871
        %v875 = vunpack.c.l.s4 1966171168
        %v876 = vunpack.c.0.s8 %v875
        %v877 = vlaneseq
        %v878 = vshrl.u32 %v877, 7
        %v879 = vsub.s32 %v876, %v878
        %v880 = vrot.slane %v864, %v879
        %v882 = vunpack.c.l.s4 1966171168
        %v883 = vunpack.c.0.s8 %v882
        %v884 = vlaneseq
        %v885 = vshrl.u32 %v884, 7
        %v886 = vsub.s32 %v883, %v885
        %v887 = vrot.slane %v871, %v886
        %v889 = vunpack.c.l.s4 1966171168
        %v890 = vunpack.c.0.s8 %v889
        %v891 = vlaneseq
        %v892 = vshrl.u32 %v891, 7
        %v893 = vsub.s32 %v890, %v892
        %v894 = vrot.slane %v872, %v893
        %v896 = vunpack.c.l.s4 1966171168
        %v897 = vunpack.c.0.s8 %v896
        %v898 = vlaneseq
        %v899 = vshrl.u32 %v898, 7
        %v900 = vsub.s32 %v897, %v899
        %v901 = vrot.slane %v873, %v900
        %v902 = vcombine.high %v880, %v880
        %v903 = vcombine.high %v887, %v887
        %v904 = vcombine.high %v894, %v894
        %v905 = vcombine.high %v901, %v901
        %v906 = vlaneseq
        %v907 = vshrl.u32 %v906, 7
        %v908 = vsub.s32 0, %v907
        %v909 = vrot.slane %v831, %v908
        %v910 = vlaneseq
        %v911 = vshrl.u32 %v910, 7
        %v912 = vsub.s32 0, %v911
        %v913 = vrot.slane %v845, %v912
        %v914 = vlaneseq
        %v915 = vshrl.u32 %v914, 7
        %v916 = vsub.s32 0, %v915
        %v917 = vrot.slane %v853, %v916
        %v918 = vlaneseq
        %v919 = vshrl.u32 %v918, 7
        %v920 = vsub.s32 0, %v919
        %v921 = vrot.slane %v855, %v920
        %v922 = vlaneseq
        %v923 = vshrl.u32 %v922, 7
        %v924 = vsub.s32 0, %v923
        %v925 = vrot.slane %v838, %v924
        %v926 = vlaneseq
        %v927 = vshrl.u32 %v926, 7
        %v928 = vsub.s32 0, %v927
        %v929 = vrot.slane %v852, %v928
        %v930 = vlaneseq
        %v931 = vshrl.u32 %v930, 7
        %v932 = vsub.s32 0, %v931
        %v933 = vrot.slane %v854, %v932
        %v934 = vlaneseq
        %v935 = vshrl.u32 %v934, 7
        %v936 = vsub.s32 0, %v935
        %v937 = vrot.slane %v856, %v936
        %v938 = vlaneseq
        %v939 = vshrl.u32 %v938, 7
        %v940 = vsub.s32 0, %v939
        %v941 = vrot.slane %v880, %v940
        %v942 = vlaneseq
        %v943 = vshrl.u32 %v942, 7
        %v944 = vsub.s32 0, %v943
        %v945 = vrot.slane %v894, %v944
        %v946 = vlaneseq
        %v947 = vshrl.u32 %v946, 7
        %v948 = vsub.s32 0, %v947
        %v949 = vrot.slane %v902, %v948
        %v950 = vlaneseq
        %v951 = vshrl.u32 %v950, 7
        %v952 = vsub.s32 0, %v951
        %v953 = vrot.slane %v904, %v952
        %v954 = vlaneseq
        %v955 = vshrl.u32 %v954, 7
        %v956 = vsub.s32 0, %v955
        %v957 = vrot.slane %v887, %v956
        %v958 = vlaneseq
        %v959 = vshrl.u32 %v958, 7
        %v960 = vsub.s32 0, %v959
        %v961 = vrot.slane %v901, %v960
        %v962 = vlaneseq
        %v963 = vshrl.u32 %v962, 7
        %v964 = vsub.s32 0, %v963
        %v965 = vrot.slane %v903, %v964
        %v966 = vlaneseq
        %v967 = vshrl.u32 %v966, 7
        %v968 = vsub.s32 0, %v967
        %v969 = vrot.slane %v905, %v968
        %970 = vrot.lane.b32.xlu0 %v909, 32
        %v971 = vpop.permute.xlu0 %970
        %972 = vrot.lane.b32.xlu0 %v913, 32
        %v973 = vpop.permute.xlu0 %972
        %974 = vrot.lane.b32.xlu0 %v917, 32
        %v975 = vpop.permute.xlu0 %974
        %976 = vrot.lane.b32.xlu0 %v921, 32
        %v977 = vpop.permute.xlu0 %976
        %978 = vrot.lane.b32.xlu0 %v925, 32
        %v979 = vpop.permute.xlu0 %978
        %980 = vrot.lane.b32.xlu0 %v929, 32
        %v981 = vpop.permute.xlu0 %980
        %982 = vrot.lane.b32.xlu0 %v933, 32
        %v983 = vpop.permute.xlu0 %982
        %984 = vrot.lane.b32.xlu0 %v937, 32
        %v985 = vpop.permute.xlu0 %984
        %986 = vrot.lane.b32.xlu0 %v941, 32
        %v987 = vpop.permute.xlu0 %986
        %988 = vrot.lane.b32.xlu0 %v945, 32
        %v989 = vpop.permute.xlu0 %988
        %990 = vrot.lane.b32.xlu0 %v949, 32
        %v991 = vpop.permute.xlu0 %990
        %992 = vrot.lane.b32.xlu0 %v953, 32
        %v993 = vpop.permute.xlu0 %992
        %994 = vrot.lane.b32.xlu0 %v957, 32
        %v995 = vpop.permute.xlu0 %994
        %996 = vrot.lane.b32.xlu0 %v961, 32
        %v997 = vpop.permute.xlu0 %996
        %998 = vrot.lane.b32.xlu0 %v965, 32
        %v999 = vpop.permute.xlu0 %998
        %1000 = vrot.lane.b32.xlu0 %v969, 32
        %v1001 = vpop.permute.xlu0 %1000
        %vm1018 = vcmask 253952
        %1019 = vst.msk [vmem:[%s362] sm:$0x1] %vm1018, %v971
        %1020 = vst.msk [vmem:[%s362 + $0x8] sm:$0x1] %vm1018, %v973
        %1021 = vst.msk [vmem:[%s362 + $0x10] sm:$0x1] %vm1018, %v975
        %1022 = vst.msk [vmem:[%s362 + $0x18] sm:$0x1] %vm1018, %v977
        %1023 = vst.msk [vmem:[%s362 + $0x20] sm:$0x1] %vm1018, %v979
        %1024 = vst.msk [vmem:[%s362 + $0x28] sm:$0x1] %vm1018, %v981
        %1025 = vst.msk [vmem:[%s362 + $0x30] sm:$0x1] %vm1018, %v983
        %1026 = vst.msk [vmem:[%s362 + $0x38] sm:$0x1] %vm1018, %v985
        %1027 = vst.msk [vmem:[%s362 + $0x40] sm:$0x1] %vm1018, %v987
        %1028 = vst.msk [vmem:[%s362 + $0x48] sm:$0x1] %vm1018, %v989
        %1029 = vst.msk [vmem:[%s362 + $0x50] sm:$0x1] %vm1018, %v991
        %1030 = vst.msk [vmem:[%s362 + $0x58] sm:$0x1] %vm1018, %v993
        %1031 = vst.msk [vmem:[%s362 + $0x60] sm:$0x1] %vm1018, %v995
        %1032 = vst.msk [vmem:[%s362 + $0x68] sm:$0x1] %vm1018, %v997
        %1033 = vst.msk [vmem:[%s362 + $0x70] sm:$0x1] %vm1018, %v999
        %1034 = vst.msk [vmem:[%s362 + $0x78] sm:$0x1] %vm1018, %v1001
        %v1035 = vld [vmem:[#allocation2 + $0x10] sm:$0xff]
        %v1036 = vld [vmem:[#allocation2 + $0x18] sm:$0xff]
        %1039 = vrot.lane.b32.xlu0 %v802, 32
        %v1040 = vpop.permute.xlu0 %1039
        %1041 = vrot.lane.b32.xlu0 %v803, 32
        %v1042 = vpop.permute.xlu0 %1041
        %v1043 = vsel %vm414, %v1040, 0
        %v1045 = vsel %vm414, %v1042, 0
        %1047 = vmatprep.subr.mxu0 0.0
        %1048 = vmatpush1.msra.mxu0 %v628
        %1049 = vmatprep.subr.mxu0 0.0
        %1050 = vmatpush1.msra.mxu0 %v629
        %1051 = vmatprep.subr.mxu0 0.0
        %1052 = vmatpush1.msra.mxu0 %v630
        %1053 = vmatprep.subr.mxu0 0.0
        %1054 = vmatpush1.msra.mxu0 %v631
        %1055 = vmatprep.subr.mxu0 0.0
        %1056 = vmatpush1.msra.mxu0 0.0
        %1057 = vmatprep.subr.mxu0 0.0
        %1058 = vmatpush1.msra.mxu0 0.0
        %1059 = vmatprep.subr.mxu0 0.0
        %1060 = vmatpush1.msra.mxu0 0.0
        %1061 = vmatprep.subr.mxu0 0.0
        %1062 = vmatpush1.msra.mxu0 0.0
        %1063 = vmatprep.subr.mxu0 0.0
        %1064 = vmatpush1.msra.mxu0 0.0
        %1065 = vmatprep.subr.mxu0 0.0
        %1066 = vmatpush1.msra.mxu0 0.0
        %1067 = vmatprep.subr.mxu0 0.0
        %1068 = vmatpush1.msra.mxu0 0.0
        %1069 = vmatprep.subr.mxu0 0.0
        %1070 = vmatpush1.msra.mxu0 0.0
        %1071 = vmatprep.subr.mxu0 0.0
        %1072 = vmatpush1.msra.mxu0 0.0
        %1073 = vmatprep.subr.mxu0 0.0
        %1074 = vmatpush1.msra.mxu0 0.0
        %1075 = vmatprep.subr.mxu0 0.0
        %1076 = vmatpush1.msra.mxu0 0.0
        %1077 = vmatprep.subr.mxu0 0.0
        %1078 = vmatpush1.msra.mxu0 0.0
        %1079 = vmatprep.subr.mxu0 0.0
        %1080 = vmatpush1.msra.mxu0 0.0
        %1081 = vmatprep.subr.mxu0 0.0
        %1082 = vmatpush1.msra.mxu0 0.0
        %1083 = vmatprep.subr.mxu0 0.0
        %1084 = vmatpush1.msra.mxu0 0.0
        %1085 = vmatprep.subr.mxu0 0.0
        %1086 = vmatpush1.msra.mxu0 0.0
        %1087 = vmatprep.subr.mxu0 0.0
        %1088 = vmatpush1.msra.mxu0 0.0
        %1089 = vmatprep.subr.mxu0 0.0
        %1090 = vmatpush1.msra.mxu0 0.0
        %1091 = vmatprep.subr.mxu0 0.0
        %1092 = vmatpush1.msra.mxu0 0.0
        %1093 = vmatprep.subr.mxu0 0.0
        %1094 = vmatpush1.msra.mxu0 0.0
        %1095 = vmatprep.subr.mxu0 0.0
        %1096 = vmatpush1.msra.mxu0 0.0
        %1097 = vmatprep.subr.mxu0 0.0
        %1098 = vmatpush1.msra.mxu0 0.0
        %1099 = vmatprep.subr.mxu0 0.0
        %1100 = vmatpush1.msra.mxu0 0.0
        %1101 = vmatprep.subr.mxu0 0.0
        %1102 = vmatpush1.msra.mxu0 0.0
        %1103 = vmatprep.subr.mxu0 0.0
        %1104 = vmatpush1.msra.mxu0 0.0
        %1105 = vmatprep.subr.mxu0 0.0
        %1106 = vmatpush1.msra.mxu0 0.0
        %1107 = vmatprep.subr.mxu0 0.0
        %1108 = vmatpush1.msra.mxu0 0.0
        %1109 = vmatprep.subr.mxu0 0.0
        %1110 = vmatpush1.msra.mxu0 0.0
        %1111 = vmatprep.mubr.f32.mxu0 0.0
        %1112 = vmatmul.mubr.f32.gmra.mrb[0].mxu0 %v1043
        %v1113 = vpop.f32.mrb[0].mxu0
        %v1114 = vadd.f32 0.0, %v1113
        %v1115 = vpop.f32.mrb[0].mxu0
        %1116 = vmatprep.mubr.f32.mxu0 0.0
        %1117 = vmatmul.mubr.f32.gmra.mrb[0].mxu0 %v1045
        %v1118 = vpop.f32.mrb[0].mxu0
        %v1119 = vadd.f32 0.0, %v1118
        %v1120 = vpop.f32.mrb[0].mxu0
        %1121 = vdwg.mxu0
        %v1122 = vadd.f32 %v1035, %v1114
        %v1123 = vadd.f32 %v1036, %v1119
        %v1124 = vmul.f32 %v1122, 0.5
        %v1125 = vmul.f32 %v1123, 0.5
        %v1126 = vtanh.pop %v1124
        %v1127 = vtanh.pop %v1125
        %v1128 = vadd.f32 %v1126, 1.0
        %v1129 = vadd.f32 %v1127, 1.0
        %v1130 = vmul.f32 %v1128, 0.5
        %v1131 = vmul.f32 %v1129, 0.5
        %v1132 = vtanh.pop %v1122
        %v1133 = vtanh.pop %v1123
        %v1134 = vmul.f32 %v1130, %v794
        %v1135 = vmul.f32 %v1131, %v795
        %1138 = vrot.lane.b32.xlu0 %v1132, 64
        %v1139 = vpop.permute.xlu0 %1138
        %1140 = vrot.lane.b32.xlu0 %v1133, 64
        %v1141 = vpop.permute.xlu0 %1140
        %v1144 = vmul.f32 %v1130, %v1139
        %v1145 = vmul.f32 %v1131, %v1141
        %1148 = vrot.lane.b32.xlu0 %v1144, 32
        %v1149 = vpop.permute.xlu0 %1148
        %1150 = vrot.lane.b32.xlu0 %v1145, 32
        %v1151 = vpop.permute.xlu0 %1150
        %v1154 = vadd.f32 %v1134, %v1149
        %v1155 = vadd.f32 %v1135, %v1151
        %v1156 = vtanh.pop %v1154
        %v1157 = vtanh.pop %v1155
        %1160 = vrot.lane.b32.xlu0 %v1156, 64
        %v1161 = vpop.permute.xlu0 %1160
        %1162 = vrot.lane.b32.xlu0 %v1157, 64
        %v1163 = vpop.permute.xlu0 %1162
        %v1166 = vmul.f32 %v1130, %v1161
        %v1167 = vmul.f32 %v1131, %v1163
        %1168 = vset.pattern.permute.xlu0 1
        %1169 = vperm.xlu0 %1168, %v784
        %v1170 = vpop.permute.xlu0 %1169
        %1171 = vset.pattern.permute.xlu0 1
        %1172 = vperm.xlu0 %1171, %v785
        %v1173 = vpop.permute.xlu0 %1172
        %vm1174 = vcmp.eq.s32.totalorder %v1170, 1
        %vm1175 = vcmp.eq.s32.totalorder %v1173, 1
        %v1176 = vsel %vm1174, %v1154, %v794
        %v1177 = vsel %vm1175, %v1155, %v795
        %v1178 = vsel %vm1174, %v1166, %v802
        %v1179 = vsel %vm1175, %v1167, %v803
        %v1180 = vsel %vm1174, %v1166, 0.0
        %v1181 = vsel %vm1175, %v1167, 0.0
        %v1184 = vcombine.high %v1180, %v1180
        %v1186 = vunpack.c.l.s4 1966171168
        %v1187 = vunpack.c.0.s8 %v1186
        %v1188 = vlaneseq
        %v1189 = vshrl.u32 %v1188, 7
        %v1190 = vsub.s32 %v1187, %v1189
        %v1191 = vrot.slane %v1180, %v1190
        %v1193 = vunpack.c.l.s4 1966171168
        %v1194 = vunpack.c.0.s8 %v1193
        %v1195 = vlaneseq
        %v1196 = vshrl.u32 %v1195, 7
        %v1197 = vsub.s32 %v1194, %v1196
        %v1198 = vrot.slane %v1184, %v1197
        %v1199 = vcombine.high %v1191, %v1191
        %v1200 = vcombine.high %v1198, %v1198
        %v1202 = vunpack.c.l.s4 1966171168
        %v1203 = vunpack.c.0.s8 %v1202
        %v1204 = vlaneseq
        %v1205 = vshrl.u32 %v1204, 7
        %v1206 = vsub.s32 %v1203, %v1205
        %v1207 = vrot.slane %v1191, %v1206
        %v1209 = vunpack.c.l.s4 1966171168
        %v1210 = vunpack.c.0.s8 %v1209
        %v1211 = vlaneseq
        %v1212 = vshrl.u32 %v1211, 7
        %v1213 = vsub.s32 %v1210, %v1212
        %v1214 = vrot.slane %v1198, %v1213
        %v1216 = vunpack.c.l.s4 1966171168
        %v1217 = vunpack.c.0.s8 %v1216
        %v1218 = vlaneseq
        %v1219 = vshrl.u32 %v1218, 7
        %v1220 = vsub.s32 %v1217, %v1219
        %v1221 = vrot.slane %v1199, %v1220
        %v1223 = vunpack.c.l.s4 1966171168
        %v1224 = vunpack.c.0.s8 %v1223
        %v1225 = vlaneseq
        %v1226 = vshrl.u32 %v1225, 7
        %v1227 = vsub.s32 %v1224, %v1226
        %v1228 = vrot.slane %v1200, %v1227
        %v1229 = vcombine.high %v1207, %v1207
        %v1230 = vcombine.high %v1214, %v1214
        %v1231 = vcombine.high %v1221, %v1221
        %v1232 = vcombine.high %v1228, %v1228
        %v1233 = vcombine.high %v1181, %v1181
        %v1235 = vunpack.c.l.s4 1966171168
        %v1236 = vunpack.c.0.s8 %v1235
        %v1237 = vlaneseq
        %v1238 = vshrl.u32 %v1237, 7
        %v1239 = vsub.s32 %v1236, %v1238
        %v1240 = vrot.slane %v1181, %v1239
        %v1242 = vunpack.c.l.s4 1966171168
        %v1243 = vunpack.c.0.s8 %v1242
        %v1244 = vlaneseq
        %v1245 = vshrl.u32 %v1244, 7
        %v1246 = vsub.s32 %v1243, %v1245
        %v1247 = vrot.slane %v1233, %v1246
        %v1248 = vcombine.high %v1240, %v1240
        %v1249 = vcombine.high %v1247, %v1247
        %v1251 = vunpack.c.l.s4 1966171168
        %v1252 = vunpack.c.0.s8 %v1251
        %v1253 = vlaneseq
        %v1254 = vshrl.u32 %v1253, 7
        %v1255 = vsub.s32 %v1252, %v1254
        %v1256 = vrot.slane %v1240, %v1255
        %v1258 = vunpack.c.l.s4 1966171168
        %v1259 = vunpack.c.0.s8 %v1258
        %v1260 = vlaneseq
        %v1261 = vshrl.u32 %v1260, 7
        %v1262 = vsub.s32 %v1259, %v1261
        %v1263 = vrot.slane %v1247, %v1262
        %v1265 = vunpack.c.l.s4 1966171168
        %v1266 = vunpack.c.0.s8 %v1265
        %v1267 = vlaneseq
        %v1268 = vshrl.u32 %v1267, 7
        %v1269 = vsub.s32 %v1266, %v1268
        %v1270 = vrot.slane %v1248, %v1269
        %v1272 = vunpack.c.l.s4 1966171168
        %v1273 = vunpack.c.0.s8 %v1272
        %v1274 = vlaneseq
        %v1275 = vshrl.u32 %v1274, 7
        %v1276 = vsub.s32 %v1273, %v1275
        %v1277 = vrot.slane %v1249, %v1276
        %v1278 = vcombine.high %v1256, %v1256
        %v1279 = vcombine.high %v1263, %v1263
        %v1280 = vcombine.high %v1270, %v1270
        %v1281 = vcombine.high %v1277, %v1277
        %v1282 = vlaneseq
        %v1283 = vshrl.u32 %v1282, 7
        %v1284 = vsub.s32 0, %v1283
        %v1285 = vrot.slane %v1207, %v1284
        %v1286 = vlaneseq
        %v1287 = vshrl.u32 %v1286, 7
        %v1288 = vsub.s32 0, %v1287
        %v1289 = vrot.slane %v1221, %v1288
        %v1290 = vlaneseq
        %v1291 = vshrl.u32 %v1290, 7
        %v1292 = vsub.s32 0, %v1291
        %v1293 = vrot.slane %v1229, %v1292
        %v1294 = vlaneseq
        %v1295 = vshrl.u32 %v1294, 7
        %v1296 = vsub.s32 0, %v1295
        %v1297 = vrot.slane %v1231, %v1296
        %v1298 = vlaneseq
        %v1299 = vshrl.u32 %v1298, 7
        %v1300 = vsub.s32 0, %v1299
        %v1301 = vrot.slane %v1214, %v1300
        %v1302 = vlaneseq
        %v1303 = vshrl.u32 %v1302, 7
        %v1304 = vsub.s32 0, %v1303
        %v1305 = vrot.slane %v1228, %v1304
        %v1306 = vlaneseq
        %v1307 = vshrl.u32 %v1306, 7
        %v1308 = vsub.s32 0, %v1307
        %v1309 = vrot.slane %v1230, %v1308
        %v1310 = vlaneseq
        %v1311 = vshrl.u32 %v1310, 7
        %v1312 = vsub.s32 0, %v1311
        %v1313 = vrot.slane %v1232, %v1312
        %v1314 = vlaneseq
        %v1315 = vshrl.u32 %v1314, 7
        %v1316 = vsub.s32 0, %v1315
        %v1317 = vrot.slane %v1256, %v1316
        %v1318 = vlaneseq
        %v1319 = vshrl.u32 %v1318, 7
        %v1320 = vsub.s32 0, %v1319
        %v1321 = vrot.slane %v1270, %v1320
        %v1322 = vlaneseq
        %v1323 = vshrl.u32 %v1322, 7
        %v1324 = vsub.s32 0, %v1323
        %v1325 = vrot.slane %v1278, %v1324
        %v1326 = vlaneseq
        %v1327 = vshrl.u32 %v1326, 7
        %v1328 = vsub.s32 0, %v1327
        %v1329 = vrot.slane %v1280, %v1328
        %v1330 = vlaneseq
        %v1331 = vshrl.u32 %v1330, 7
        %v1332 = vsub.s32 0, %v1331
        %v1333 = vrot.slane %v1263, %v1332
        %v1334 = vlaneseq
        %v1335 = vshrl.u32 %v1334, 7
        %v1336 = vsub.s32 0, %v1335
        %v1337 = vrot.slane %v1277, %v1336
        %v1338 = vlaneseq
        %v1339 = vshrl.u32 %v1338, 7
        %v1340 = vsub.s32 0, %v1339
        %v1341 = vrot.slane %v1279, %v1340
        %v1342 = vlaneseq
        %v1343 = vshrl.u32 %v1342, 7
        %v1344 = vsub.s32 0, %v1343
        %v1345 = vrot.slane %v1281, %v1344
        %1346 = vrot.lane.b32.xlu0 %v1285, 32
        %v1347 = vpop.permute.xlu0 %1346
        %1348 = vrot.lane.b32.xlu0 %v1289, 32
        %v1349 = vpop.permute.xlu0 %1348
        %1350 = vrot.lane.b32.xlu0 %v1293, 32
        %v1351 = vpop.permute.xlu0 %1350
        %1352 = vrot.lane.b32.xlu0 %v1297, 32
        %v1353 = vpop.permute.xlu0 %1352
        %1354 = vrot.lane.b32.xlu0 %v1301, 32
        %v1355 = vpop.permute.xlu0 %1354
        %1356 = vrot.lane.b32.xlu0 %v1305, 32
        %v1357 = vpop.permute.xlu0 %1356
        %1358 = vrot.lane.b32.xlu0 %v1309, 32
        %v1359 = vpop.permute.xlu0 %1358
        %1360 = vrot.lane.b32.xlu0 %v1313, 32
        %v1361 = vpop.permute.xlu0 %1360
        %1362 = vrot.lane.b32.xlu0 %v1317, 32
        %v1363 = vpop.permute.xlu0 %1362
        %1364 = vrot.lane.b32.xlu0 %v1321, 32
        %v1365 = vpop.permute.xlu0 %1364
        %1366 = vrot.lane.b32.xlu0 %v1325, 32
        %v1367 = vpop.permute.xlu0 %1366
        %1368 = vrot.lane.b32.xlu0 %v1329, 32
        %v1369 = vpop.permute.xlu0 %1368
        %1370 = vrot.lane.b32.xlu0 %v1333, 32
        %v1371 = vpop.permute.xlu0 %1370
        %1372 = vrot.lane.b32.xlu0 %v1337, 32
        %v1373 = vpop.permute.xlu0 %1372
        %1374 = vrot.lane.b32.xlu0 %v1341, 32
        %v1375 = vpop.permute.xlu0 %1374
        %1376 = vrot.lane.b32.xlu0 %v1345, 32
        %v1377 = vpop.permute.xlu0 %1376
        %1394 = vst.msk [vmem:[%s362 + $0x1] sm:$0x1] %vm1018, %v1347
        %1395 = vst.msk [vmem:[%s362 + $0x9] sm:$0x1] %vm1018, %v1349
        %1396 = vst.msk [vmem:[%s362 + $0x11] sm:$0x1] %vm1018, %v1351
        %1397 = vst.msk [vmem:[%s362 + $0x19] sm:$0x1] %vm1018, %v1353
        %1398 = vst.msk [vmem:[%s362 + $0x21] sm:$0x1] %vm1018, %v1355
        %1399 = vst.msk [vmem:[%s362 + $0x29] sm:$0x1] %vm1018, %v1357
        %1400 = vst.msk [vmem:[%s362 + $0x31] sm:$0x1] %vm1018, %v1359
        %1401 = vst.msk [vmem:[%s362 + $0x39] sm:$0x1] %vm1018, %v1361
        %1402 = vst.msk [vmem:[%s362 + $0x41] sm:$0x1] %vm1018, %v1363
        %1403 = vst.msk [vmem:[%s362 + $0x49] sm:$0x1] %vm1018, %v1365
        %1404 = vst.msk [vmem:[%s362 + $0x51] sm:$0x1] %vm1018, %v1367
        %1405 = vst.msk [vmem:[%s362 + $0x59] sm:$0x1] %vm1018, %v1369
        %1406 = vst.msk [vmem:[%s362 + $0x61] sm:$0x1] %vm1018, %v1371
        %1407 = vst.msk [vmem:[%s362 + $0x69] sm:$0x1] %vm1018, %v1373
        %1408 = vst.msk [vmem:[%s362 + $0x71] sm:$0x1] %vm1018, %v1375
        %1409 = vst.msk [vmem:[%s362 + $0x79] sm:$0x1] %vm1018, %v1377
        %v1410 = vld [vmem:[#allocation2 + $0x20] sm:$0xff]
        %v1411 = vld [vmem:[#allocation2 + $0x28] sm:$0xff]
        %1414 = vrot.lane.b32.xlu0 %v1178, 32
        %v1415 = vpop.permute.xlu0 %1414
        %1416 = vrot.lane.b32.xlu0 %v1179, 32
        %v1417 = vpop.permute.xlu0 %1416
        %v1418 = vsel %vm414, %v1415, 0
        %v1420 = vsel %vm414, %v1417, 0
        %1422 = vmatprep.subr.mxu0 0.0
        %1423 = vmatpush1.msra.mxu0 %v628
        %1424 = vmatprep.subr.mxu0 0.0
        %1425 = vmatpush1.msra.mxu0 %v629
        %1426 = vmatprep.subr.mxu0 0.0
        %1427 = vmatpush1.msra.mxu0 %v630
        %1428 = vmatprep.subr.mxu0 0.0
        %1429 = vmatpush1.msra.mxu0 %v631
        %1430 = vmatprep.subr.mxu0 0.0
        %1431 = vmatpush1.msra.mxu0 0.0
        %1432 = vmatprep.subr.mxu0 0.0
        %1433 = vmatpush1.msra.mxu0 0.0
        %1434 = vmatprep.subr.mxu0 0.0
        %1435 = vmatpush1.msra.mxu0 0.0
        %1436 = vmatprep.subr.mxu0 0.0
        %1437 = vmatpush1.msra.mxu0 0.0
        %1438 = vmatprep.subr.mxu0 0.0
        %1439 = vmatpush1.msra.mxu0 0.0
        %1440 = vmatprep.subr.mxu0 0.0
        %1441 = vmatpush1.msra.mxu0 0.0
        %1442 = vmatprep.subr.mxu0 0.0
        %1443 = vmatpush1.msra.mxu0 0.0
        %1444 = vmatprep.subr.mxu0 0.0
        %1445 = vmatpush1.msra.mxu0 0.0
        %1446 = vmatprep.subr.mxu0 0.0
        %1447 = vmatpush1.msra.mxu0 0.0
        %1448 = vmatprep.subr.mxu0 0.0
        %1449 = vmatpush1.msra.mxu0 0.0
        %1450 = vmatprep.subr.mxu0 0.0
        %1451 = vmatpush1.msra.mxu0 0.0
        %1452 = vmatprep.subr.mxu0 0.0
        %1453 = vmatpush1.msra.mxu0 0.0
        %1454 = vmatprep.subr.mxu0 0.0
        %1455 = vmatpush1.msra.mxu0 0.0
        %1456 = vmatprep.subr.mxu0 0.0
        %1457 = vmatpush1.msra.mxu0 0.0
        %1458 = vmatprep.subr.mxu0 0.0
        %1459 = vmatpush1.msra.mxu0 0.0
        %1460 = vmatprep.subr.mxu0 0.0
        %1461 = vmatpush1.msra.mxu0 0.0
        %1462 = vmatprep.subr.mxu0 0.0
        %1463 = vmatpush1.msra.mxu0 0.0
        %1464 = vmatprep.subr.mxu0 0.0
        %1465 = vmatpush1.msra.mxu0 0.0
        %1466 = vmatprep.subr.mxu0 0.0
        %1467 = vmatpush1.msra.mxu0 0.0
        %1468 = vmatprep.subr.mxu0 0.0
        %1469 = vmatpush1.msra.mxu0 0.0
        %1470 = vmatprep.subr.mxu0 0.0
        %1471 = vmatpush1.msra.mxu0 0.0
        %1472 = vmatprep.subr.mxu0 0.0
        %1473 = vmatpush1.msra.mxu0 0.0
        %1474 = vmatprep.subr.mxu0 0.0
        %1475 = vmatpush1.msra.mxu0 0.0
        %1476 = vmatprep.subr.mxu0 0.0
        %1477 = vmatpush1.msra.mxu0 0.0
        %1478 = vmatprep.subr.mxu0 0.0
        %1479 = vmatpush1.msra.mxu0 0.0
        %1480 = vmatprep.subr.mxu0 0.0
        %1481 = vmatpush1.msra.mxu0 0.0
        %1482 = vmatprep.subr.mxu0 0.0
        %1483 = vmatpush1.msra.mxu0 0.0
        %1484 = vmatprep.subr.mxu0 0.0
        %1485 = vmatpush1.msra.mxu0 0.0
        %1486 = vmatprep.mubr.f32.mxu0 0.0
        %1487 = vmatmul.mubr.f32.gmra.mrb[0].mxu0 %v1418
        %v1488 = vpop.f32.mrb[0].mxu0
        %v1489 = vadd.f32 0.0, %v1488
        %v1490 = vpop.f32.mrb[0].mxu0
        %1491 = vmatprep.mubr.f32.mxu0 0.0
        %1492 = vmatmul.mubr.f32.gmra.mrb[0].mxu0 %v1420
        %v1493 = vpop.f32.mrb[0].mxu0
        %v1494 = vadd.f32 0.0, %v1493
        %v1495 = vpop.f32.mrb[0].mxu0
        %1496 = vdwg.mxu0
        %v1497 = vadd.f32 %v1410, %v1489
        %v1498 = vadd.f32 %v1411, %v1494
        %v1499 = vmul.f32 %v1497, 0.5
        %v1500 = vmul.f32 %v1498, 0.5
        %v1501 = vtanh.pop %v1499
        %v1502 = vtanh.pop %v1500
        %v1503 = vadd.f32 %v1501, 1.0
        %v1504 = vadd.f32 %v1502, 1.0
        %v1505 = vmul.f32 %v1503, 0.5
        %v1506 = vmul.f32 %v1504, 0.5
        %v1507 = vtanh.pop %v1497
        %v1508 = vtanh.pop %v1498
        %v1509 = vmul.f32 %v1505, %v1176
        %v1510 = vmul.f32 %v1506, %v1177
        %1513 = vrot.lane.b32.xlu0 %v1507, 64
        %v1514 = vpop.permute.xlu0 %1513
        %1515 = vrot.lane.b32.xlu0 %v1508, 64
        %v1516 = vpop.permute.xlu0 %1515
        %v1519 = vmul.f32 %v1505, %v1514
        %v1520 = vmul.f32 %v1506, %v1516
        %1523 = vrot.lane.b32.xlu0 %v1519, 32
        %v1524 = vpop.permute.xlu0 %1523
        %1525 = vrot.lane.b32.xlu0 %v1520, 32
        %v1526 = vpop.permute.xlu0 %1525
        %v1529 = vadd.f32 %v1509, %v1524
        %v1530 = vadd.f32 %v1510, %v1526
        %v1531 = vtanh.pop %v1529
        %v1532 = vtanh.pop %v1530
        %1535 = vrot.lane.b32.xlu0 %v1531, 64
        %v1536 = vpop.permute.xlu0 %1535
        %1537 = vrot.lane.b32.xlu0 %v1532, 64
        %v1538 = vpop.permute.xlu0 %1537
        %v1541 = vmul.f32 %v1505, %v1536
        %v1542 = vmul.f32 %v1506, %v1538
        %1543 = vset.pattern.permute.xlu0 2
        %1544 = vperm.xlu0 %1543, %v784
        %v1545 = vpop.permute.xlu0 %1544
        %1546 = vset.pattern.permute.xlu0 2
        %1547 = vperm.xlu0 %1546, %v785
        %v1548 = vpop.permute.xlu0 %1547
        %vm1549 = vcmp.eq.s32.totalorder %v1545, 1
        %vm1550 = vcmp.eq.s32.totalorder %v1548, 1
        %v1551 = vsel %vm1549, %v1529, %v1176
        %v1552 = vsel %vm1550, %v1530, %v1177
        %v1553 = vsel %vm1549, %v1541, %v1178
        %v1554 = vsel %vm1550, %v1542, %v1179
        %v1555 = vsel %vm1549, %v1541, 0.0
        %v1556 = vsel %vm1550, %v1542, 0.0
        %v1559 = vcombine.high %v1555, %v1555
        %v1561 = vunpack.c.l.s4 1966171168
        %v1562 = vunpack.c.0.s8 %v1561
        %v1563 = vlaneseq
        %v1564 = vshrl.u32 %v1563, 7
        %v1565 = vsub.s32 %v1562, %v1564
        %v1566 = vrot.slane %v1555, %v1565
        %v1568 = vunpack.c.l.s4 1966171168
        %v1569 = vunpack.c.0.s8 %v1568
        %v1570 = vlaneseq
        %v1571 = vshrl.u32 %v1570, 7
        %v1572 = vsub.s32 %v1569, %v1571
        %v1573 = vrot.slane %v1559, %v1572
        %v1574 = vcombine.high %v1566, %v1566
        %v1575 = vcombine.high %v1573, %v1573
        %v1577 = vunpack.c.l.s4 1966171168
        %v1578 = vunpack.c.0.s8 %v1577
        %v1579 = vlaneseq
        %v1580 = vshrl.u32 %v1579, 7
        %v1581 = vsub.s32 %v1578, %v1580
        %v1582 = vrot.slane %v1566, %v1581
        %v1584 = vunpack.c.l.s4 1966171168
        %v1585 = vunpack.c.0.s8 %v1584
        %v1586 = vlaneseq
        %v1587 = vshrl.u32 %v1586, 7
        %v1588 = vsub.s32 %v1585, %v1587
        %v1589 = vrot.slane %v1573, %v1588
        %v1591 = vunpack.c.l.s4 1966171168
        %v1592 = vunpack.c.0.s8 %v1591
        %v1593 = vlaneseq
        %v1594 = vshrl.u32 %v1593, 7
        %v1595 = vsub.s32 %v1592, %v1594
        %v1596 = vrot.slane %v1574, %v1595
        %v1598 = vunpack.c.l.s4 1966171168
        %v1599 = vunpack.c.0.s8 %v1598
        %v1600 = vlaneseq
        %v1601 = vshrl.u32 %v1600, 7
        %v1602 = vsub.s32 %v1599, %v1601
        %v1603 = vrot.slane %v1575, %v1602
        %v1604 = vcombine.high %v1582, %v1582
        %v1605 = vcombine.high %v1589, %v1589
        %v1606 = vcombine.high %v1596, %v1596
        %v1607 = vcombine.high %v1603, %v1603
        %v1608 = vcombine.high %v1556, %v1556
        %v1610 = vunpack.c.l.s4 1966171168
        %v1611 = vunpack.c.0.s8 %v1610
        %v1612 = vlaneseq
        %v1613 = vshrl.u32 %v1612, 7
        %v1614 = vsub.s32 %v1611, %v1613
        %v1615 = vrot.slane %v1556, %v1614
        %v1617 = vunpack.c.l.s4 1966171168
        %v1618 = vunpack.c.0.s8 %v1617
        %v1619 = vlaneseq
        %v1620 = vshrl.u32 %v1619, 7
        %v1621 = vsub.s32 %v1618, %v1620
        %v1622 = vrot.slane %v1608, %v1621
        %v1623 = vcombine.high %v1615, %v1615
        %v1624 = vcombine.high %v1622, %v1622
        %v1626 = vunpack.c.l.s4 1966171168
        %v1627 = vunpack.c.0.s8 %v1626
        %v1628 = vlaneseq
        %v1629 = vshrl.u32 %v1628, 7
        %v1630 = vsub.s32 %v1627, %v1629
        %v1631 = vrot.slane %v1615, %v1630
        %v1633 = vunpack.c.l.s4 1966171168
        %v1634 = vunpack.c.0.s8 %v1633
        %v1635 = vlaneseq
        %v1636 = vshrl.u32 %v1635, 7
        %v1637 = vsub.s32 %v1634, %v1636
        %v1638 = vrot.slane %v1622, %v1637
        %v1640 = vunpack.c.l.s4 1966171168
        %v1641 = vunpack.c.0.s8 %v1640
        %v1642 = vlaneseq
        %v1643 = vshrl.u32 %v1642, 7
        %v1644 = vsub.s32 %v1641, %v1643
        %v1645 = vrot.slane %v1623, %v1644
        %v1647 = vunpack.c.l.s4 1966171168
        %v1648 = vunpack.c.0.s8 %v1647
        %v1649 = vlaneseq
        %v1650 = vshrl.u32 %v1649, 7
        %v1651 = vsub.s32 %v1648, %v1650
        %v1652 = vrot.slane %v1624, %v1651
        %v1653 = vcombine.high %v1631, %v1631
        %v1654 = vcombine.high %v1638, %v1638
        %v1655 = vcombine.high %v1645, %v1645
        %v1656 = vcombine.high %v1652, %v1652
        %v1657 = vlaneseq
        %v1658 = vshrl.u32 %v1657, 7
        %v1659 = vsub.s32 0, %v1658
        %v1660 = vrot.slane %v1582, %v1659
        %v1661 = vlaneseq
        %v1662 = vshrl.u32 %v1661, 7
        %v1663 = vsub.s32 0, %v1662
        %v1664 = vrot.slane %v1596, %v1663
        %v1665 = vlaneseq
        %v1666 = vshrl.u32 %v1665, 7
        %v1667 = vsub.s32 0, %v1666
        %v1668 = vrot.slane %v1604, %v1667
        %v1669 = vlaneseq
        %v1670 = vshrl.u32 %v1669, 7
        %v1671 = vsub.s32 0, %v1670
        %v1672 = vrot.slane %v1606, %v1671
        %v1673 = vlaneseq
        %v1674 = vshrl.u32 %v1673, 7
        %v1675 = vsub.s32 0, %v1674
        %v1676 = vrot.slane %v1589, %v1675
        %v1677 = vlaneseq
        %v1678 = vshrl.u32 %v1677, 7
        %v1679 = vsub.s32 0, %v1678
        %v1680 = vrot.slane %v1603, %v1679
        %v1681 = vlaneseq
        %v1682 = vshrl.u32 %v1681, 7
        %v1683 = vsub.s32 0, %v1682
        %v1684 = vrot.slane %v1605, %v1683
        %v1685 = vlaneseq
        %v1686 = vshrl.u32 %v1685, 7
        %v1687 = vsub.s32 0, %v1686
        %v1688 = vrot.slane %v1607, %v1687
        %v1689 = vlaneseq
        %v1690 = vshrl.u32 %v1689, 7
        %v1691 = vsub.s32 0, %v1690
        %v1692 = vrot.slane %v1631, %v1691
        %v1693 = vlaneseq
        %v1694 = vshrl.u32 %v1693, 7
        %v1695 = vsub.s32 0, %v1694
        %v1696 = vrot.slane %v1645, %v1695
        %v1697 = vlaneseq
        %v1698 = vshrl.u32 %v1697, 7
        %v1699 = vsub.s32 0, %v1698
        %v1700 = vrot.slane %v1653, %v1699
        %v1701 = vlaneseq
        %v1702 = vshrl.u32 %v1701, 7
        %v1703 = vsub.s32 0, %v1702
        %v1704 = vrot.slane %v1655, %v1703
        %v1705 = vlaneseq
        %v1706 = vshrl.u32 %v1705, 7
        %v1707 = vsub.s32 0, %v1706
        %v1708 = vrot.slane %v1638, %v1707
        %v1709 = vlaneseq
        %v1710 = vshrl.u32 %v1709, 7
        %v1711 = vsub.s32 0, %v1710
        %v1712 = vrot.slane %v1652, %v1711
        %v1713 = vlaneseq
        %v1714 = vshrl.u32 %v1713, 7
        %v1715 = vsub.s32 0, %v1714
        %v1716 = vrot.slane %v1654, %v1715
        %v1717 = vlaneseq
        %v1718 = vshrl.u32 %v1717, 7
        %v1719 = vsub.s32 0, %v1718
        %v1720 = vrot.slane %v1656, %v1719
        %1721 = vrot.lane.b32.xlu0 %v1660, 32
        %v1722 = vpop.permute.xlu0 %1721
        %1723 = vrot.lane.b32.xlu0 %v1664, 32
        %v1724 = vpop.permute.xlu0 %1723
        %1725 = vrot.lane.b32.xlu0 %v1668, 32
        %v1726 = vpop.permute.xlu0 %1725
        %1727 = vrot.lane.b32.xlu0 %v1672, 32
        %v1728 = vpop.permute.xlu0 %1727
        %1729 = vrot.lane.b32.xlu0 %v1676, 32
        %v1730 = vpop.permute.xlu0 %1729
        %1731 = vrot.lane.b32.xlu0 %v1680, 32
        %v1732 = vpop.permute.xlu0 %1731
        %1733 = vrot.lane.b32.xlu0 %v1684, 32
        %v1734 = vpop.permute.xlu0 %1733
        %1735 = vrot.lane.b32.xlu0 %v1688, 32
        %v1736 = vpop.permute.xlu0 %1735
        %1737 = vrot.lane.b32.xlu0 %v1692, 32
        %v1738 = vpop.permute.xlu0 %1737
        %1739 = vrot.lane.b32.xlu0 %v1696, 32
        %v1740 = vpop.permute.xlu0 %1739
        %1741 = vrot.lane.b32.xlu0 %v1700, 32
        %v1742 = vpop.permute.xlu0 %1741
        %1743 = vrot.lane.b32.xlu0 %v1704, 32
        %v1744 = vpop.permute.xlu0 %1743
        %1745 = vrot.lane.b32.xlu0 %v1708, 32
        %v1746 = vpop.permute.xlu0 %1745
        %1747 = vrot.lane.b32.xlu0 %v1712, 32
        %v1748 = vpop.permute.xlu0 %1747
        %1749 = vrot.lane.b32.xlu0 %v1716, 32
        %v1750 = vpop.permute.xlu0 %1749
        %1751 = vrot.lane.b32.xlu0 %v1720, 32
        %v1752 = vpop.permute.xlu0 %1751
        %1769 = vst.msk [vmem:[%s362 + $0x2] sm:$0x1] %vm1018, %v1722
        %1770 = vst.msk [vmem:[%s362 + $0xa] sm:$0x1] %vm1018, %v1724
        %1771 = vst.msk [vmem:[%s362 + $0x12] sm:$0x1] %vm1018, %v1726
        %1772 = vst.msk [vmem:[%s362 + $0x1a] sm:$0x1] %vm1018, %v1728
        %1773 = vst.msk [vmem:[%s362 + $0x22] sm:$0x1] %vm1018, %v1730
        %1774 = vst.msk [vmem:[%s362 + $0x2a] sm:$0x1] %vm1018, %v1732
        %1775 = vst.msk [vmem:[%s362 + $0x32] sm:$0x1] %vm1018, %v1734
        %1776 = vst.msk [vmem:[%s362 + $0x3a] sm:$0x1] %vm1018, %v1736
        %1777 = vst.msk [vmem:[%s362 + $0x42] sm:$0x1] %vm1018, %v1738
        %1778 = vst.msk [vmem:[%s362 + $0x4a] sm:$0x1] %vm1018, %v1740
        %1779 = vst.msk [vmem:[%s362 + $0x52] sm:$0x1] %vm1018, %v1742
        %1780 = vst.msk [vmem:[%s362 + $0x5a] sm:$0x1] %vm1018, %v1744
        %1781 = vst.msk [vmem:[%s362 + $0x62] sm:$0x1] %vm1018, %v1746
        %1782 = vst.msk [vmem:[%s362 + $0x6a] sm:$0x1] %vm1018, %v1748
        %1783 = vst.msk [vmem:[%s362 + $0x72] sm:$0x1] %vm1018, %v1750
        %1784 = vst.msk [vmem:[%s362 + $0x7a] sm:$0x1] %vm1018, %v1752
        %v1785 = vld [vmem:[#allocation2 + $0x30] sm:$0xff]
        %v1786 = vld [vmem:[#allocation2 + $0x38] sm:$0xff]
        %1789 = vrot.lane.b32.xlu0 %v1553, 32
        %v1790 = vpop.permute.xlu0 %1789
        %1791 = vrot.lane.b32.xlu0 %v1554, 32
        %v1792 = vpop.permute.xlu0 %1791
        %v1793 = vsel %vm414, %v1790, 0
        %v1795 = vsel %vm414, %v1792, 0
        %1797 = vmatprep.subr.mxu0 0.0
        %1798 = vmatpush1.msra.mxu0 %v628
        %1799 = vmatprep.subr.mxu0 0.0
        %1800 = vmatpush1.msra.mxu0 %v629
        %1801 = vmatprep.subr.mxu0 0.0
        %1802 = vmatpush1.msra.mxu0 %v630
        %1803 = vmatprep.subr.mxu0 0.0
        %1804 = vmatpush1.msra.mxu0 %v631
        %1805 = vmatprep.subr.mxu0 0.0
        %1806 = vmatpush1.msra.mxu0 0.0
        %1807 = vmatprep.subr.mxu0 0.0
        %1808 = vmatpush1.msra.mxu0 0.0
        %1809 = vmatprep.subr.mxu0 0.0
        %1810 = vmatpush1.msra.mxu0 0.0
        %1811 = vmatprep.subr.mxu0 0.0
        %1812 = vmatpush1.msra.mxu0 0.0
        %1813 = vmatprep.subr.mxu0 0.0
        %1814 = vmatpush1.msra.mxu0 0.0
        %1815 = vmatprep.subr.mxu0 0.0
        %1816 = vmatpush1.msra.mxu0 0.0
        %1817 = vmatprep.subr.mxu0 0.0
        %1818 = vmatpush1.msra.mxu0 0.0
        %1819 = vmatprep.subr.mxu0 0.0
        %1820 = vmatpush1.msra.mxu0 0.0
        %1821 = vmatprep.subr.mxu0 0.0
        %1822 = vmatpush1.msra.mxu0 0.0
        %1823 = vmatprep.subr.mxu0 0.0
        %1824 = vmatpush1.msra.mxu0 0.0
        %1825 = vmatprep.subr.mxu0 0.0
        %1826 = vmatpush1.msra.mxu0 0.0
        %1827 = vmatprep.subr.mxu0 0.0
        %1828 = vmatpush1.msra.mxu0 0.0
        %1829 = vmatprep.subr.mxu0 0.0
        %1830 = vmatpush1.msra.mxu0 0.0
        %1831 = vmatprep.subr.mxu0 0.0
        %1832 = vmatpush1.msra.mxu0 0.0
        %1833 = vmatprep.subr.mxu0 0.0
        %1834 = vmatpush1.msra.mxu0 0.0
        %1835 = vmatprep.subr.mxu0 0.0
        %1836 = vmatpush1.msra.mxu0 0.0
        %1837 = vmatprep.subr.mxu0 0.0
        %1838 = vmatpush1.msra.mxu0 0.0
        %1839 = vmatprep.subr.mxu0 0.0
        %1840 = vmatpush1.msra.mxu0 0.0
        %1841 = vmatprep.subr.mxu0 0.0
        %1842 = vmatpush1.msra.mxu0 0.0
        %1843 = vmatprep.subr.mxu0 0.0
        %1844 = vmatpush1.msra.mxu0 0.0
        %1845 = vmatprep.subr.mxu0 0.0
        %1846 = vmatpush1.msra.mxu0 0.0
        %1847 = vmatprep.subr.mxu0 0.0
        %1848 = vmatpush1.msra.mxu0 0.0
        %1849 = vmatprep.subr.mxu0 0.0
        %1850 = vmatpush1.msra.mxu0 0.0
        %1851 = vmatprep.subr.mxu0 0.0
        %1852 = vmatpush1.msra.mxu0 0.0
        %1853 = vmatprep.subr.mxu0 0.0
        %1854 = vmatpush1.msra.mxu0 0.0
        %1855 = vmatprep.subr.mxu0 0.0
        %1856 = vmatpush1.msra.mxu0 0.0
        %1857 = vmatprep.subr.mxu0 0.0
        %1858 = vmatpush1.msra.mxu0 0.0
        %1859 = vmatprep.subr.mxu0 0.0
        %1860 = vmatpush1.msra.mxu0 0.0
        %1861 = vmatprep.mubr.f32.mxu0 0.0
        %1862 = vmatmul.mubr.f32.gmra.mrb[0].mxu0 %v1793
        %v1863 = vpop.f32.mrb[0].mxu0
        %v1864 = vadd.f32 0.0, %v1863
        %v1865 = vpop.f32.mrb[0].mxu0
        %1866 = vmatprep.mubr.f32.mxu0 0.0
        %1867 = vmatmul.mubr.f32.gmra.mrb[0].mxu0 %v1795
        %v1868 = vpop.f32.mrb[0].mxu0
        %v1869 = vadd.f32 0.0, %v1868
        %v1870 = vpop.f32.mrb[0].mxu0
        %1871 = vdwg.mxu0
        %v1872 = vadd.f32 %v1785, %v1864
        %v1873 = vadd.f32 %v1786, %v1869
        %v1874 = vmul.f32 %v1872, 0.5
        %v1875 = vmul.f32 %v1873, 0.5
        %v1876 = vtanh.pop %v1874
        %v1877 = vtanh.pop %v1875
        %v1878 = vadd.f32 %v1876, 1.0
        %v1879 = vadd.f32 %v1877, 1.0
        %v1880 = vmul.f32 %v1878, 0.5
        %v1881 = vmul.f32 %v1879, 0.5
        %v1882 = vtanh.pop %v1872
        %v1883 = vtanh.pop %v1873
        %v1884 = vmul.f32 %v1880, %v1551
        %v1885 = vmul.f32 %v1881, %v1552
        %1888 = vrot.lane.b32.xlu0 %v1882, 64
        %v1889 = vpop.permute.xlu0 %1888
        %1890 = vrot.lane.b32.xlu0 %v1883, 64
        %v1891 = vpop.permute.xlu0 %1890
        %v1894 = vmul.f32 %v1880, %v1889
        %v1895 = vmul.f32 %v1881, %v1891
        %1898 = vrot.lane.b32.xlu0 %v1894, 32
        %v1899 = vpop.permute.xlu0 %1898
        %1900 = vrot.lane.b32.xlu0 %v1895, 32
        %v1901 = vpop.permute.xlu0 %1900
        %v1904 = vadd.f32 %v1884, %v1899
        %v1905 = vadd.f32 %v1885, %v1901
        %v1906 = vtanh.pop %v1904
        %v1907 = vtanh.pop %v1905
        %1910 = vrot.lane.b32.xlu0 %v1906, 64
        %v1911 = vpop.permute.xlu0 %1910
        %1912 = vrot.lane.b32.xlu0 %v1907, 64
        %v1913 = vpop.permute.xlu0 %1912
        %v1916 = vmul.f32 %v1880, %v1911
        %v1917 = vmul.f32 %v1881, %v1913
        %1918 = vset.pattern.permute.xlu0 3
        %1919 = vperm.xlu0 %1918, %v784
        %v1920 = vpop.permute.xlu0 %1919
        %1921 = vset.pattern.permute.xlu0 3
        %1922 = vperm.xlu0 %1921, %v785
        %v1923 = vpop.permute.xlu0 %1922
        %vm1924 = vcmp.eq.s32.totalorder %v1920, 1
        %vm1925 = vcmp.eq.s32.totalorder %v1923, 1
        %v1926 = vsel %vm1924, %v1904, %v1551
        %v1927 = vsel %vm1925, %v1905, %v1552
        %v1928 = vsel %vm1924, %v1916, %v1553
        %v1929 = vsel %vm1925, %v1917, %v1554
        %v1930 = vsel %vm1924, %v1916, 0.0
        %v1931 = vsel %vm1925, %v1917, 0.0
        %v1934 = vcombine.high %v1930, %v1930
        %v1936 = vunpack.c.l.s4 1966171168
        %v1937 = vunpack.c.0.s8 %v1936
        %v1938 = vlaneseq
        %v1939 = vshrl.u32 %v1938, 7
        %v1940 = vsub.s32 %v1937, %v1939
        %v1941 = vrot.slane %v1930, %v1940
        %v1943 = vunpack.c.l.s4 1966171168
        %v1944 = vunpack.c.0.s8 %v1943
        %v1945 = vlaneseq
        %v1946 = vshrl.u32 %v1945, 7
        %v1947 = vsub.s32 %v1944, %v1946
        %v1948 = vrot.slane %v1934, %v1947
        %v1949 = vcombine.high %v1941, %v1941
        %v1950 = vcombine.high %v1948, %v1948
        %v1952 = vunpack.c.l.s4 1966171168
        %v1953 = vunpack.c.0.s8 %v1952
        %v1954 = vlaneseq
        %v1955 = vshrl.u32 %v1954, 7
        %v1956 = vsub.s32 %v1953, %v1955
        %v1957 = vrot.slane %v1941, %v1956
        %v1959 = vunpack.c.l.s4 1966171168
        %v1960 = vunpack.c.0.s8 %v1959
        %v1961 = vlaneseq
        %v1962 = vshrl.u32 %v1961, 7
        %v1963 = vsub.s32 %v1960, %v1962
        %v1964 = vrot.slane %v1948, %v1963
        %v1966 = vunpack.c.l.s4 1966171168
        %v1967 = vunpack.c.0.s8 %v1966
        %v1968 = vlaneseq
        %v1969 = vshrl.u32 %v1968, 7
        %v1970 = vsub.s32 %v1967, %v1969
        %v1971 = vrot.slane %v1949, %v1970
        %v1973 = vunpack.c.l.s4 1966171168
        %v1974 = vunpack.c.0.s8 %v1973
        %v1975 = vlaneseq
        %v1976 = vshrl.u32 %v1975, 7
        %v1977 = vsub.s32 %v1974, %v1976
        %v1978 = vrot.slane %v1950, %v1977
        %v1979 = vcombine.high %v1957, %v1957
        %v1980 = vcombine.high %v1964, %v1964
        %v1981 = vcombine.high %v1971, %v1971
        %v1982 = vcombine.high %v1978, %v1978
        %v1983 = vcombine.high %v1931, %v1931
        %v1985 = vunpack.c.l.s4 1966171168
        %v1986 = vunpack.c.0.s8 %v1985
        %v1987 = vlaneseq
        %v1988 = vshrl.u32 %v1987, 7
        %v1989 = vsub.s32 %v1986, %v1988
        %v1990 = vrot.slane %v1931, %v1989
        %v1992 = vunpack.c.l.s4 1966171168
        %v1993 = vunpack.c.0.s8 %v1992
        %v1994 = vlaneseq
        %v1995 = vshrl.u32 %v1994, 7
        %v1996 = vsub.s32 %v1993, %v1995
        %v1997 = vrot.slane %v1983, %v1996
        %v1998 = vcombine.high %v1990, %v1990
        %v1999 = vcombine.high %v1997, %v1997
        %v2001 = vunpack.c.l.s4 1966171168
        %v2002 = vunpack.c.0.s8 %v2001
        %v2003 = vlaneseq
        %v2004 = vshrl.u32 %v2003, 7
        %v2005 = vsub.s32 %v2002, %v2004
        %v2006 = vrot.slane %v1990, %v2005
        %v2008 = vunpack.c.l.s4 1966171168
        %v2009 = vunpack.c.0.s8 %v2008
        %v2010 = vlaneseq
        %v2011 = vshrl.u32 %v2010, 7
        %v2012 = vsub.s32 %v2009, %v2011
        %v2013 = vrot.slane %v1997, %v2012
        %v2015 = vunpack.c.l.s4 1966171168
        %v2016 = vunpack.c.0.s8 %v2015
        %v2017 = vlaneseq
        %v2018 = vshrl.u32 %v2017, 7
        %v2019 = vsub.s32 %v2016, %v2018
        %v2020 = vrot.slane %v1998, %v2019
        %v2022 = vunpack.c.l.s4 1966171168
        %v2023 = vunpack.c.0.s8 %v2022
        %v2024 = vlaneseq
        %v2025 = vshrl.u32 %v2024, 7
        %v2026 = vsub.s32 %v2023, %v2025
        %v2027 = vrot.slane %v1999, %v2026
        %v2028 = vcombine.high %v2006, %v2006
        %v2029 = vcombine.high %v2013, %v2013
        %v2030 = vcombine.high %v2020, %v2020
        %v2031 = vcombine.high %v2027, %v2027
        %v2032 = vlaneseq
        %v2033 = vshrl.u32 %v2032, 7
        %v2034 = vsub.s32 0, %v2033
        %v2035 = vrot.slane %v1957, %v2034
        %v2036 = vlaneseq
        %v2037 = vshrl.u32 %v2036, 7
        %v2038 = vsub.s32 0, %v2037
        %v2039 = vrot.slane %v1971, %v2038
        %v2040 = vlaneseq
        %v2041 = vshrl.u32 %v2040, 7
        %v2042 = vsub.s32 0, %v2041
        %v2043 = vrot.slane %v1979, %v2042
        %v2044 = vlaneseq
        %v2045 = vshrl.u32 %v2044, 7
        %v2046 = vsub.s32 0, %v2045
        %v2047 = vrot.slane %v1981, %v2046
        %v2048 = vlaneseq
        %v2049 = vshrl.u32 %v2048, 7
        %v2050 = vsub.s32 0, %v2049
        %v2051 = vrot.slane %v1964, %v2050
        %v2052 = vlaneseq
        %v2053 = vshrl.u32 %v2052, 7
        %v2054 = vsub.s32 0, %v2053
        %v2055 = vrot.slane %v1978, %v2054
        %v2056 = vlaneseq
        %v2057 = vshrl.u32 %v2056, 7
        %v2058 = vsub.s32 0, %v2057
        %v2059 = vrot.slane %v1980, %v2058
        %v2060 = vlaneseq
        %v2061 = vshrl.u32 %v2060, 7
        %v2062 = vsub.s32 0, %v2061
        %v2063 = vrot.slane %v1982, %v2062
        %v2064 = vlaneseq
        %v2065 = vshrl.u32 %v2064, 7
        %v2066 = vsub.s32 0, %v2065
        %v2067 = vrot.slane %v2006, %v2066
        %v2068 = vlaneseq
        %v2069 = vshrl.u32 %v2068, 7
        %v2070 = vsub.s32 0, %v2069
        %v2071 = vrot.slane %v2020, %v2070
        %v2072 = vlaneseq
        %v2073 = vshrl.u32 %v2072, 7
        %v2074 = vsub.s32 0, %v2073
        %v2075 = vrot.slane %v2028, %v2074
        %v2076 = vlaneseq
        %v2077 = vshrl.u32 %v2076, 7
        %v2078 = vsub.s32 0, %v2077
        %v2079 = vrot.slane %v2030, %v2078
        %v2080 = vlaneseq
        %v2081 = vshrl.u32 %v2080, 7
        %v2082 = vsub.s32 0, %v2081
        %v2083 = vrot.slane %v2013, %v2082
        %v2084 = vlaneseq
        %v2085 = vshrl.u32 %v2084, 7
        %v2086 = vsub.s32 0, %v2085
        %v2087 = vrot.slane %v2027, %v2086
        %v2088 = vlaneseq
        %v2089 = vshrl.u32 %v2088, 7
        %v2090 = vsub.s32 0, %v2089
        %v2091 = vrot.slane %v2029, %v2090
        %v2092 = vlaneseq
        %v2093 = vshrl.u32 %v2092, 7
        %v2094 = vsub.s32 0, %v2093
        %v2095 = vrot.slane %v2031, %v2094
        %2096 = vrot.lane.b32.xlu0 %v2035, 32
        %v2097 = vpop.permute.xlu0 %2096
        %2098 = vrot.lane.b32.xlu0 %v2039, 32
        %v2099 = vpop.permute.xlu0 %2098
        %2100 = vrot.lane.b32.xlu0 %v2043, 32
        %v2101 = vpop.permute.xlu0 %2100
        %2102 = vrot.lane.b32.xlu0 %v2047, 32
        %v2103 = vpop.permute.xlu0 %2102
        %2104 = vrot.lane.b32.xlu0 %v2051, 32
        %v2105 = vpop.permute.xlu0 %2104
        %2106 = vrot.lane.b32.xlu0 %v2055, 32
        %v2107 = vpop.permute.xlu0 %2106
        %2108 = vrot.lane.b32.xlu0 %v2059, 32
        %v2109 = vpop.permute.xlu0 %2108
        %2110 = vrot.lane.b32.xlu0 %v2063, 32
        %v2111 = vpop.permute.xlu0 %2110
        %2112 = vrot.lane.b32.xlu0 %v2067, 32
        %v2113 = vpop.permute.xlu0 %2112
        %2114 = vrot.lane.b32.xlu0 %v2071, 32
        %v2115 = vpop.permute.xlu0 %2114
        %2116 = vrot.lane.b32.xlu0 %v2075, 32
        %v2117 = vpop.permute.xlu0 %2116
        %2118 = vrot.lane.b32.xlu0 %v2079, 32
        %v2119 = vpop.permute.xlu0 %2118
        %2120 = vrot.lane.b32.xlu0 %v2083, 32
        %v2121 = vpop.permute.xlu0 %2120
        %2122 = vrot.lane.b32.xlu0 %v2087, 32
        %v2123 = vpop.permute.xlu0 %2122
        %2124 = vrot.lane.b32.xlu0 %v2091, 32
        %v2125 = vpop.permute.xlu0 %2124
        %2126 = vrot.lane.b32.xlu0 %v2095, 32
        %v2127 = vpop.permute.xlu0 %2126
        %2144 = vst.msk [vmem:[%s362 + $0x3] sm:$0x1] %vm1018, %v2097
        %2145 = vst.msk [vmem:[%s362 + $0xb] sm:$0x1] %vm1018, %v2099
        %2146 = vst.msk [vmem:[%s362 + $0x13] sm:$0x1] %vm1018, %v2101
        %2147 = vst.msk [vmem:[%s362 + $0x1b] sm:$0x1] %vm1018, %v2103
        %2148 = vst.msk [vmem:[%s362 + $0x23] sm:$0x1] %vm1018, %v2105
        %2149 = vst.msk [vmem:[%s362 + $0x2b] sm:$0x1] %vm1018, %v2107
        %2150 = vst.msk [vmem:[%s362 + $0x33] sm:$0x1] %vm1018, %v2109
        %2151 = vst.msk [vmem:[%s362 + $0x3b] sm:$0x1] %vm1018, %v2111
        %2152 = vst.msk [vmem:[%s362 + $0x43] sm:$0x1] %vm1018, %v2113
        %2153 = vst.msk [vmem:[%s362 + $0x4b] sm:$0x1] %vm1018, %v2115
        %2154 = vst.msk [vmem:[%s362 + $0x53] sm:$0x1] %vm1018, %v2117
        %2155 = vst.msk [vmem:[%s362 + $0x5b] sm:$0x1] %vm1018, %v2119
        %2156 = vst.msk [vmem:[%s362 + $0x63] sm:$0x1] %vm1018, %v2121
        %2157 = vst.msk [vmem:[%s362 + $0x6b] sm:$0x1] %vm1018, %v2123
        %2158 = vst.msk [vmem:[%s362 + $0x73] sm:$0x1] %vm1018, %v2125
        %2159 = vst.msk [vmem:[%s362 + $0x7b] sm:$0x1] %vm1018, %v2127
        %v2160 = vld [vmem:[#allocation2 + $0x40] sm:$0xff]
        %v2161 = vld [vmem:[#allocation2 + $0x48] sm:$0xff]
        %2164 = vrot.lane.b32.xlu0 %v1928, 32
        %v2165 = vpop.permute.xlu0 %2164
        %2166 = vrot.lane.b32.xlu0 %v1929, 32
        %v2167 = vpop.permute.xlu0 %2166
        %v2168 = vsel %vm414, %v2165, 0
        %v2170 = vsel %vm414, %v2167, 0
        %2172 = vmatprep.subr.mxu0 0.0
        %2173 = vmatpush1.msra.mxu0 %v628
        %2174 = vmatprep.subr.mxu0 0.0
        %2175 = vmatpush1.msra.mxu0 %v629
        %2176 = vmatprep.subr.mxu0 0.0
        %2177 = vmatpush1.msra.mxu0 %v630
        %2178 = vmatprep.subr.mxu0 0.0
        %2179 = vmatpush1.msra.mxu0 %v631
        %2180 = vmatprep.subr.mxu0 0.0
        %2181 = vmatpush1.msra.mxu0 0.0
        %2182 = vmatprep.subr.mxu0 0.0
        %2183 = vmatpush1.msra.mxu0 0.0
        %2184 = vmatprep.subr.mxu0 0.0
        %2185 = vmatpush1.msra.mxu0 0.0
        %2186 = vmatprep.subr.mxu0 0.0
        %2187 = vmatpush1.msra.mxu0 0.0
        %2188 = vmatprep.subr.mxu0 0.0
        %2189 = vmatpush1.msra.mxu0 0.0
        %2190 = vmatprep.subr.mxu0 0.0
        %2191 = vmatpush1.msra.mxu0 0.0
        %2192 = vmatprep.subr.mxu0 0.0
        %2193 = vmatpush1.msra.mxu0 0.0
        %2194 = vmatprep.subr.mxu0 0.0
        %2195 = vmatpush1.msra.mxu0 0.0
        %2196 = vmatprep.subr.mxu0 0.0
        %2197 = vmatpush1.msra.mxu0 0.0
        %2198 = vmatprep.subr.mxu0 0.0
        %2199 = vmatpush1.msra.mxu0 0.0
        %2200 = vmatprep.subr.mxu0 0.0
        %2201 = vmatpush1.msra.mxu0 0.0
        %2202 = vmatprep.subr.mxu0 0.0
        %2203 = vmatpush1.msra.mxu0 0.0
        %2204 = vmatprep.subr.mxu0 0.0
        %2205 = vmatpush1.msra.mxu0 0.0
        %2206 = vmatprep.subr.mxu0 0.0
        %2207 = vmatpush1.msra.mxu0 0.0
        %2208 = vmatprep.subr.mxu0 0.0
        %2209 = vmatpush1.msra.mxu0 0.0
        %2210 = vmatprep.subr.mxu0 0.0
        %2211 = vmatpush1.msra.mxu0 0.0
        %2212 = vmatprep.subr.mxu0 0.0
        %2213 = vmatpush1.msra.mxu0 0.0
        %2214 = vmatprep.subr.mxu0 0.0
        %2215 = vmatpush1.msra.mxu0 0.0
        %2216 = vmatprep.subr.mxu0 0.0
        %2217 = vmatpush1.msra.mxu0 0.0
        %2218 = vmatprep.subr.mxu0 0.0
        %2219 = vmatpush1.msra.mxu0 0.0
        %2220 = vmatprep.subr.mxu0 0.0
        %2221 = vmatpush1.msra.mxu0 0.0
        %2222 = vmatprep.subr.mxu0 0.0
        %2223 = vmatpush1.msra.mxu0 0.0
        %2224 = vmatprep.subr.mxu0 0.0
        %2225 = vmatpush1.msra.mxu0 0.0
        %2226 = vmatprep.subr.mxu0 0.0
        %2227 = vmatpush1.msra.mxu0 0.0
        %2228 = vmatprep.subr.mxu0 0.0
        %2229 = vmatpush1.msra.mxu0 0.0
        %2230 = vmatprep.subr.mxu0 0.0
        %2231 = vmatpush1.msra.mxu0 0.0
        %2232 = vmatprep.subr.mxu0 0.0
        %2233 = vmatpush1.msra.mxu0 0.0
        %2234 = vmatprep.subr.mxu0 0.0
        %2235 = vmatpush1.msra.mxu0 0.0
        %2236 = vmatprep.mubr.f32.mxu0 0.0
        %2237 = vmatmul.mubr.f32.gmra.mrb[0].mxu0 %v2168
        %v2238 = vpop.f32.mrb[0].mxu0
        %v2239 = vadd.f32 0.0, %v2238
        %v2240 = vpop.f32.mrb[0].mxu0
        %2241 = vmatprep.mubr.f32.mxu0 0.0
        %2242 = vmatmul.mubr.f32.gmra.mrb[0].mxu0 %v2170
        %v2243 = vpop.f32.mrb[0].mxu0
        %v2244 = vadd.f32 0.0, %v2243
        %v2245 = vpop.f32.mrb[0].mxu0
        %2246 = vdwg.mxu0
        %v2247 = vadd.f32 %v2160, %v2239
        %v2248 = vadd.f32 %v2161, %v2244
        %v2249 = vmul.f32 %v2247, 0.5
        %v2250 = vmul.f32 %v2248, 0.5
        %v2251 = vtanh.pop %v2249
        %v2252 = vtanh.pop %v2250
        %v2253 = vadd.f32 %v2251, 1.0
        %v2254 = vadd.f32 %v2252, 1.0
        %v2255 = vmul.f32 %v2253, 0.5
        %v2256 = vmul.f32 %v2254, 0.5
        %v2257 = vtanh.pop %v2247
        %v2258 = vtanh.pop %v2248
        %v2259 = vmul.f32 %v2255, %v1926
        %v2260 = vmul.f32 %v2256, %v1927
        %2263 = vrot.lane.b32.xlu0 %v2257, 64
        %v2264 = vpop.permute.xlu0 %2263
        %2265 = vrot.lane.b32.xlu0 %v2258, 64
        %v2266 = vpop.permute.xlu0 %2265
        %v2269 = vmul.f32 %v2255, %v2264
        %v2270 = vmul.f32 %v2256, %v2266
        %2273 = vrot.lane.b32.xlu0 %v2269, 32
        %v2274 = vpop.permute.xlu0 %2273
        %2275 = vrot.lane.b32.xlu0 %v2270, 32
        %v2276 = vpop.permute.xlu0 %2275
        %v2279 = vadd.f32 %v2259, %v2274
        %v2280 = vadd.f32 %v2260, %v2276
        %v2281 = vtanh.pop %v2279
        %v2282 = vtanh.pop %v2280
        %2285 = vrot.lane.b32.xlu0 %v2281, 64
        %v2286 = vpop.permute.xlu0 %2285
        %2287 = vrot.lane.b32.xlu0 %v2282, 64
        %v2288 = vpop.permute.xlu0 %2287
        %v2291 = vmul.f32 %v2255, %v2286
        %v2292 = vmul.f32 %v2256, %v2288
        %2293 = vset.pattern.permute.xlu0 4
        %2294 = vperm.xlu0 %2293, %v784
        %v2295 = vpop.permute.xlu0 %2294
        %2296 = vset.pattern.permute.xlu0 4
        %2297 = vperm.xlu0 %2296, %v785
        %v2298 = vpop.permute.xlu0 %2297
        %vm2299 = vcmp.eq.s32.totalorder %v2295, 1
        %vm2300 = vcmp.eq.s32.totalorder %v2298, 1
        %v2301 = vsel %vm2299, %v2279, %v1926
        %v2302 = vsel %vm2300, %v2280, %v1927
        %v2303 = vsel %vm2299, %v2291, %v1928
        %v2304 = vsel %vm2300, %v2292, %v1929
        %v2305 = vsel %vm2299, %v2291, 0.0
        %v2306 = vsel %vm2300, %v2292, 0.0
        %v2309 = vcombine.high %v2305, %v2305
        %v2311 = vunpack.c.l.s4 1966171168
        %v2312 = vunpack.c.0.s8 %v2311
        %v2313 = vlaneseq
        %v2314 = vshrl.u32 %v2313, 7
        %v2315 = vsub.s32 %v2312, %v2314
        %v2316 = vrot.slane %v2305, %v2315
        %v2318 = vunpack.c.l.s4 1966171168
        %v2319 = vunpack.c.0.s8 %v2318
        %v2320 = vlaneseq
        %v2321 = vshrl.u32 %v2320, 7
        %v2322 = vsub.s32 %v2319, %v2321
        %v2323 = vrot.slane %v2309, %v2322
        %v2324 = vcombine.high %v2316, %v2316
        %v2325 = vcombine.high %v2323, %v2323
        %v2327 = vunpack.c.l.s4 1966171168
        %v2328 = vunpack.c.0.s8 %v2327
        %v2329 = vlaneseq
        %v2330 = vshrl.u32 %v2329, 7
        %v2331 = vsub.s32 %v2328, %v2330
        %v2332 = vrot.slane %v2316, %v2331
        %v2334 = vunpack.c.l.s4 1966171168
        %v2335 = vunpack.c.0.s8 %v2334
        %v2336 = vlaneseq
        %v2337 = vshrl.u32 %v2336, 7
        %v2338 = vsub.s32 %v2335, %v2337
        %v2339 = vrot.slane %v2323, %v2338
        %v2341 = vunpack.c.l.s4 1966171168
        %v2342 = vunpack.c.0.s8 %v2341
        %v2343 = vlaneseq
        %v2344 = vshrl.u32 %v2343, 7
        %v2345 = vsub.s32 %v2342, %v2344
        %v2346 = vrot.slane %v2324, %v2345
        %v2348 = vunpack.c.l.s4 1966171168
        %v2349 = vunpack.c.0.s8 %v2348
        %v2350 = vlaneseq
        %v2351 = vshrl.u32 %v2350, 7
        %v2352 = vsub.s32 %v2349, %v2351
        %v2353 = vrot.slane %v2325, %v2352
        %v2354 = vcombine.high %v2332, %v2332
        %v2355 = vcombine.high %v2339, %v2339
        %v2356 = vcombine.high %v2346, %v2346
        %v2357 = vcombine.high %v2353, %v2353
        %v2358 = vcombine.high %v2306, %v2306
        %v2360 = vunpack.c.l.s4 1966171168
        %v2361 = vunpack.c.0.s8 %v2360
        %v2362 = vlaneseq
        %v2363 = vshrl.u32 %v2362, 7
        %v2364 = vsub.s32 %v2361, %v2363
        %v2365 = vrot.slane %v2306, %v2364
        %v2367 = vunpack.c.l.s4 1966171168
        %v2368 = vunpack.c.0.s8 %v2367
        %v2369 = vlaneseq
        %v2370 = vshrl.u32 %v2369, 7
        %v2371 = vsub.s32 %v2368, %v2370
        %v2372 = vrot.slane %v2358, %v2371
        %v2373 = vcombine.high %v2365, %v2365
        %v2374 = vcombine.high %v2372, %v2372
        %v2376 = vunpack.c.l.s4 1966171168
        %v2377 = vunpack.c.0.s8 %v2376
        %v2378 = vlaneseq
        %v2379 = vshrl.u32 %v2378, 7
        %v2380 = vsub.s32 %v2377, %v2379
        %v2381 = vrot.slane %v2365, %v2380
        %v2383 = vunpack.c.l.s4 1966171168
        %v2384 = vunpack.c.0.s8 %v2383
        %v2385 = vlaneseq
        %v2386 = vshrl.u32 %v2385, 7
        %v2387 = vsub.s32 %v2384, %v2386
        %v2388 = vrot.slane %v2372, %v2387
        %v2390 = vunpack.c.l.s4 1966171168
        %v2391 = vunpack.c.0.s8 %v2390
        %v2392 = vlaneseq
        %v2393 = vshrl.u32 %v2392, 7
        %v2394 = vsub.s32 %v2391, %v2393
        %v2395 = vrot.slane %v2373, %v2394
        %v2397 = vunpack.c.l.s4 1966171168
        %v2398 = vunpack.c.0.s8 %v2397
        %v2399 = vlaneseq
        %v2400 = vshrl.u32 %v2399, 7
        %v2401 = vsub.s32 %v2398, %v2400
        %v2402 = vrot.slane %v2374, %v2401
        %v2403 = vcombine.high %v2381, %v2381
        %v2404 = vcombine.high %v2388, %v2388
        %v2405 = vcombine.high %v2395, %v2395
        %v2406 = vcombine.high %v2402, %v2402
        %v2407 = vlaneseq
        %v2408 = vshrl.u32 %v2407, 7
        %v2409 = vsub.s32 0, %v2408
        %v2410 = vrot.slane %v2332, %v2409
        %v2411 = vlaneseq
        %v2412 = vshrl.u32 %v2411, 7
        %v2413 = vsub.s32 0, %v2412
        %v2414 = vrot.slane %v2346, %v2413
        %v2415 = vlaneseq
        %v2416 = vshrl.u32 %v2415, 7
        %v2417 = vsub.s32 0, %v2416
        %v2418 = vrot.slane %v2354, %v2417
        %v2419 = vlaneseq
        %v2420 = vshrl.u32 %v2419, 7
        %v2421 = vsub.s32 0, %v2420
        %v2422 = vrot.slane %v2356, %v2421
        %v2423 = vlaneseq
        %v2424 = vshrl.u32 %v2423, 7
        %v2425 = vsub.s32 0, %v2424
        %v2426 = vrot.slane %v2339, %v2425
        %v2427 = vlaneseq
        %v2428 = vshrl.u32 %v2427, 7
        %v2429 = vsub.s32 0, %v2428
        %v2430 = vrot.slane %v2353, %v2429
        %v2431 = vlaneseq
        %v2432 = vshrl.u32 %v2431, 7
        %v2433 = vsub.s32 0, %v2432
        %v2434 = vrot.slane %v2355, %v2433
        %v2435 = vlaneseq
        %v2436 = vshrl.u32 %v2435, 7
        %v2437 = vsub.s32 0, %v2436
        %v2438 = vrot.slane %v2357, %v2437
        %v2439 = vlaneseq
        %v2440 = vshrl.u32 %v2439, 7
        %v2441 = vsub.s32 0, %v2440
        %v2442 = vrot.slane %v2381, %v2441
        %v2443 = vlaneseq
        %v2444 = vshrl.u32 %v2443, 7
        %v2445 = vsub.s32 0, %v2444
        %v2446 = vrot.slane %v2395, %v2445
        %v2447 = vlaneseq
        %v2448 = vshrl.u32 %v2447, 7
        %v2449 = vsub.s32 0, %v2448
        %v2450 = vrot.slane %v2403, %v2449
        %v2451 = vlaneseq
        %v2452 = vshrl.u32 %v2451, 7
        %v2453 = vsub.s32 0, %v2452
        %v2454 = vrot.slane %v2405, %v2453
        %v2455 = vlaneseq
        %v2456 = vshrl.u32 %v2455, 7
        %v2457 = vsub.s32 0, %v2456
        %v2458 = vrot.slane %v2388, %v2457
        %v2459 = vlaneseq
        %v2460 = vshrl.u32 %v2459, 7
        %v2461 = vsub.s32 0, %v2460
        %v2462 = vrot.slane %v2402, %v2461
        %v2463 = vlaneseq
        %v2464 = vshrl.u32 %v2463, 7
        %v2465 = vsub.s32 0, %v2464
        %v2466 = vrot.slane %v2404, %v2465
        %v2467 = vlaneseq
        %v2468 = vshrl.u32 %v2467, 7
        %v2469 = vsub.s32 0, %v2468
        %v2470 = vrot.slane %v2406, %v2469
        %2471 = vrot.lane.b32.xlu0 %v2410, 32
        %v2472 = vpop.permute.xlu0 %2471
        %2473 = vrot.lane.b32.xlu0 %v2414, 32
        %v2474 = vpop.permute.xlu0 %2473
        %2475 = vrot.lane.b32.xlu0 %v2418, 32
        %v2476 = vpop.permute.xlu0 %2475
        %2477 = vrot.lane.b32.xlu0 %v2422, 32
        %v2478 = vpop.permute.xlu0 %2477
        %2479 = vrot.lane.b32.xlu0 %v2426, 32
        %v2480 = vpop.permute.xlu0 %2479
        %2481 = vrot.lane.b32.xlu0 %v2430, 32
        %v2482 = vpop.permute.xlu0 %2481
        %2483 = vrot.lane.b32.xlu0 %v2434, 32
        %v2484 = vpop.permute.xlu0 %2483
        %2485 = vrot.lane.b32.xlu0 %v2438, 32
        %v2486 = vpop.permute.xlu0 %2485
        %2487 = vrot.lane.b32.xlu0 %v2442, 32
        %v2488 = vpop.permute.xlu0 %2487
        %2489 = vrot.lane.b32.xlu0 %v2446, 32
        %v2490 = vpop.permute.xlu0 %2489
        %2491 = vrot.lane.b32.xlu0 %v2450, 32
        %v2492 = vpop.permute.xlu0 %2491
        %2493 = vrot.lane.b32.xlu0 %v2454, 32
        %v2494 = vpop.permute.xlu0 %2493
        %2495 = vrot.lane.b32.xlu0 %v2458, 32
        %v2496 = vpop.permute.xlu0 %2495
        %2497 = vrot.lane.b32.xlu0 %v2462, 32
        %v2498 = vpop.permute.xlu0 %2497
        %2499 = vrot.lane.b32.xlu0 %v2466, 32
        %v2500 = vpop.permute.xlu0 %2499
        %2501 = vrot.lane.b32.xlu0 %v2470, 32
        %v2502 = vpop.permute.xlu0 %2501
        %2519 = vst.msk [vmem:[%s362 + $0x4] sm:$0x1] %vm1018, %v2472
        %2520 = vst.msk [vmem:[%s362 + $0xc] sm:$0x1] %vm1018, %v2474
        %2521 = vst.msk [vmem:[%s362 + $0x14] sm:$0x1] %vm1018, %v2476
        %2522 = vst.msk [vmem:[%s362 + $0x1c] sm:$0x1] %vm1018, %v2478
        %2523 = vst.msk [vmem:[%s362 + $0x24] sm:$0x1] %vm1018, %v2480
        %2524 = vst.msk [vmem:[%s362 + $0x2c] sm:$0x1] %vm1018, %v2482
        %2525 = vst.msk [vmem:[%s362 + $0x34] sm:$0x1] %vm1018, %v2484
        %2526 = vst.msk [vmem:[%s362 + $0x3c] sm:$0x1] %vm1018, %v2486
        %2527 = vst.msk [vmem:[%s362 + $0x44] sm:$0x1] %vm1018, %v2488
        %2528 = vst.msk [vmem:[%s362 + $0x4c] sm:$0x1] %vm1018, %v2490
        %2529 = vst.msk [vmem:[%s362 + $0x54] sm:$0x1] %vm1018, %v2492
        %2530 = vst.msk [vmem:[%s362 + $0x5c] sm:$0x1] %vm1018, %v2494
        %2531 = vst.msk [vmem:[%s362 + $0x64] sm:$0x1] %vm1018, %v2496
        %2532 = vst.msk [vmem:[%s362 + $0x6c] sm:$0x1] %vm1018, %v2498
        %2533 = vst.msk [vmem:[%s362 + $0x74] sm:$0x1] %vm1018, %v2500
        %2534 = vst.msk [vmem:[%s362 + $0x7c] sm:$0x1] %vm1018, %v2502
        %v2535 = vld [vmem:[#allocation2 + $0x50] sm:$0xff]
        %v2536 = vld [vmem:[#allocation2 + $0x58] sm:$0xff]
        %2539 = vrot.lane.b32.xlu0 %v2303, 32
        %v2540 = vpop.permute.xlu0 %2539
        %2541 = vrot.lane.b32.xlu0 %v2304, 32
        %v2542 = vpop.permute.xlu0 %2541
        %v2543 = vsel %vm414, %v2540, 0
        %v2545 = vsel %vm414, %v2542, 0
        %2547 = vmatprep.subr.mxu0 0.0
        %2548 = vmatpush1.msra.mxu0 %v628
        %2549 = vmatprep.subr.mxu0 0.0
        %2550 = vmatpush1.msra.mxu0 %v629
        %2551 = vmatprep.subr.mxu0 0.0
        %2552 = vmatpush1.msra.mxu0 %v630
        %2553 = vmatprep.subr.mxu0 0.0
        %2554 = vmatpush1.msra.mxu0 %v631
        %2555 = vmatprep.subr.mxu0 0.0
        %2556 = vmatpush1.msra.mxu0 0.0
        %2557 = vmatprep.subr.mxu0 0.0
        %2558 = vmatpush1.msra.mxu0 0.0
        %2559 = vmatprep.subr.mxu0 0.0
        %2560 = vmatpush1.msra.mxu0 0.0
        %2561 = vmatprep.subr.mxu0 0.0
        %2562 = vmatpush1.msra.mxu0 0.0
        %2563 = vmatprep.subr.mxu0 0.0
        %2564 = vmatpush1.msra.mxu0 0.0
        %2565 = vmatprep.subr.mxu0 0.0
        %2566 = vmatpush1.msra.mxu0 0.0
        %2567 = vmatprep.subr.mxu0 0.0
        %2568 = vmatpush1.msra.mxu0 0.0
        %2569 = vmatprep.subr.mxu0 0.0
        %2570 = vmatpush1.msra.mxu0 0.0
        %2571 = vmatprep.subr.mxu0 0.0
        %2572 = vmatpush1.msra.mxu0 0.0
        %2573 = vmatprep.subr.mxu0 0.0
        %2574 = vmatpush1.msra.mxu0 0.0
        %2575 = vmatprep.subr.mxu0 0.0
        %2576 = vmatpush1.msra.mxu0 0.0
        %2577 = vmatprep.subr.mxu0 0.0
        %2578 = vmatpush1.msra.mxu0 0.0
        %2579 = vmatprep.subr.mxu0 0.0
        %2580 = vmatpush1.msra.mxu0 0.0
        %2581 = vmatprep.subr.mxu0 0.0
        %2582 = vmatpush1.msra.mxu0 0.0
        %2583 = vmatprep.subr.mxu0 0.0
        %2584 = vmatpush1.msra.mxu0 0.0
        %2585 = vmatprep.subr.mxu0 0.0
        %2586 = vmatpush1.msra.mxu0 0.0
        %2587 = vmatprep.subr.mxu0 0.0
        %2588 = vmatpush1.msra.mxu0 0.0
        %2589 = vmatprep.subr.mxu0 0.0
        %2590 = vmatpush1.msra.mxu0 0.0
        %2591 = vmatprep.subr.mxu0 0.0
        %2592 = vmatpush1.msra.mxu0 0.0
        %2593 = vmatprep.subr.mxu0 0.0
        %2594 = vmatpush1.msra.mxu0 0.0
        %2595 = vmatprep.subr.mxu0 0.0
        %2596 = vmatpush1.msra.mxu0 0.0
        %2597 = vmatprep.subr.mxu0 0.0
        %2598 = vmatpush1.msra.mxu0 0.0
        %2599 = vmatprep.subr.mxu0 0.0
        %2600 = vmatpush1.msra.mxu0 0.0
        %2601 = vmatprep.subr.mxu0 0.0
        %2602 = vmatpush1.msra.mxu0 0.0
        %2603 = vmatprep.subr.mxu0 0.0
        %2604 = vmatpush1.msra.mxu0 0.0
        %2605 = vmatprep.subr.mxu0 0.0
        %2606 = vmatpush1.msra.mxu0 0.0
        %2607 = vmatprep.subr.mxu0 0.0
        %2608 = vmatpush1.msra.mxu0 0.0
        %2609 = vmatprep.subr.mxu0 0.0
        %2610 = vmatpush1.msra.mxu0 0.0
        %2611 = vmatprep.mubr.f32.mxu0 0.0
        %2612 = vmatmul.mubr.f32.gmra.mrb[0].mxu0 %v2543
        %v2613 = vpop.f32.mrb[0].mxu0
        %v2614 = vadd.f32 0.0, %v2613
        %v2615 = vpop.f32.mrb[0].mxu0
        %2616 = vmatprep.mubr.f32.mxu0 0.0
        %2617 = vmatmul.mubr.f32.gmra.mrb[0].mxu0 %v2545
        %v2618 = vpop.f32.mrb[0].mxu0
        %v2619 = vadd.f32 0.0, %v2618
        %v2620 = vpop.f32.mrb[0].mxu0
        %2621 = vdwg.mxu0
        %v2622 = vadd.f32 %v2535, %v2614
        %v2623 = vadd.f32 %v2536, %v2619
        %v2624 = vmul.f32 %v2622, 0.5
        %v2625 = vmul.f32 %v2623, 0.5
        %v2626 = vtanh.pop %v2624
        %v2627 = vtanh.pop %v2625
        %v2628 = vadd.f32 %v2626, 1.0
        %v2629 = vadd.f32 %v2627, 1.0
        %v2630 = vmul.f32 %v2628, 0.5
        %v2631 = vmul.f32 %v2629, 0.5
        %v2632 = vtanh.pop %v2622
        %v2633 = vtanh.pop %v2623
        %v2634 = vmul.f32 %v2630, %v2301
        %v2635 = vmul.f32 %v2631, %v2302
        %2638 = vrot.lane.b32.xlu0 %v2632, 64
        %v2639 = vpop.permute.xlu0 %2638
        %2640 = vrot.lane.b32.xlu0 %v2633, 64
        %v2641 = vpop.permute.xlu0 %2640
        %v2644 = vmul.f32 %v2630, %v2639
        %v2645 = vmul.f32 %v2631, %v2641
        %2648 = vrot.lane.b32.xlu0 %v2644, 32
        %v2649 = vpop.permute.xlu0 %2648
        %2650 = vrot.lane.b32.xlu0 %v2645, 32
        %v2651 = vpop.permute.xlu0 %2650
        %v2654 = vadd.f32 %v2634, %v2649
        %v2655 = vadd.f32 %v2635, %v2651
        %v2656 = vtanh.pop %v2654
        %v2657 = vtanh.pop %v2655
        %2660 = vrot.lane.b32.xlu0 %v2656, 64
        %v2661 = vpop.permute.xlu0 %2660
        %2662 = vrot.lane.b32.xlu0 %v2657, 64
        %v2663 = vpop.permute.xlu0 %2662
        %v2666 = vmul.f32 %v2630, %v2661
        %v2667 = vmul.f32 %v2631, %v2663
        %2668 = vset.pattern.permute.xlu0 5
        %2669 = vperm.xlu0 %2668, %v784
        %v2670 = vpop.permute.xlu0 %2669
        %2671 = vset.pattern.permute.xlu0 5
        %2672 = vperm.xlu0 %2671, %v785
        %v2673 = vpop.permute.xlu0 %2672
        %vm2674 = vcmp.eq.s32.totalorder %v2670, 1
        %vm2675 = vcmp.eq.s32.totalorder %v2673, 1
        %v2676 = vsel %vm2674, %v2654, %v2301
        %v2677 = vsel %vm2675, %v2655, %v2302
        %v2678 = vsel %vm2674, %v2666, %v2303
        %v2679 = vsel %vm2675, %v2667, %v2304
        %v2680 = vsel %vm2674, %v2666, 0.0
        %v2681 = vsel %vm2675, %v2667, 0.0
        %v2684 = vcombine.high %v2680, %v2680
        %v2686 = vunpack.c.l.s4 1966171168
        %v2687 = vunpack.c.0.s8 %v2686
        %v2688 = vlaneseq
        %v2689 = vshrl.u32 %v2688, 7
        %v2690 = vsub.s32 %v2687, %v2689
        %v2691 = vrot.slane %v2680, %v2690
        %v2693 = vunpack.c.l.s4 1966171168
        %v2694 = vunpack.c.0.s8 %v2693
        %v2695 = vlaneseq
        %v2696 = vshrl.u32 %v2695, 7
        %v2697 = vsub.s32 %v2694, %v2696
        %v2698 = vrot.slane %v2684, %v2697
        %v2699 = vcombine.high %v2691, %v2691
        %v2700 = vcombine.high %v2698, %v2698
        %v2702 = vunpack.c.l.s4 1966171168
        %v2703 = vunpack.c.0.s8 %v2702
        %v2704 = vlaneseq
        %v2705 = vshrl.u32 %v2704, 7
        %v2706 = vsub.s32 %v2703, %v2705
        %v2707 = vrot.slane %v2691, %v2706
        %v2709 = vunpack.c.l.s4 1966171168
        %v2710 = vunpack.c.0.s8 %v2709
        %v2711 = vlaneseq
        %v2712 = vshrl.u32 %v2711, 7
        %v2713 = vsub.s32 %v2710, %v2712
        %v2714 = vrot.slane %v2698, %v2713
        %v2716 = vunpack.c.l.s4 1966171168
        %v2717 = vunpack.c.0.s8 %v2716
        %v2718 = vlaneseq
        %v2719 = vshrl.u32 %v2718, 7
        %v2720 = vsub.s32 %v2717, %v2719
        %v2721 = vrot.slane %v2699, %v2720
        %v2723 = vunpack.c.l.s4 1966171168
        %v2724 = vunpack.c.0.s8 %v2723
        %v2725 = vlaneseq
        %v2726 = vshrl.u32 %v2725, 7
        %v2727 = vsub.s32 %v2724, %v2726
        %v2728 = vrot.slane %v2700, %v2727
        %v2729 = vcombine.high %v2707, %v2707
        %v2730 = vcombine.high %v2714, %v2714
        %v2731 = vcombine.high %v2721, %v2721
        %v2732 = vcombine.high %v2728, %v2728
        %v2733 = vcombine.high %v2681, %v2681
        %v2735 = vunpack.c.l.s4 1966171168
        %v2736 = vunpack.c.0.s8 %v2735
        %v2737 = vlaneseq
        %v2738 = vshrl.u32 %v2737, 7
        %v2739 = vsub.s32 %v2736, %v2738
        %v2740 = vrot.slane %v2681, %v2739
        %v2742 = vunpack.c.l.s4 1966171168
        %v2743 = vunpack.c.0.s8 %v2742
        %v2744 = vlaneseq
        %v2745 = vshrl.u32 %v2744, 7
        %v2746 = vsub.s32 %v2743, %v2745
        %v2747 = vrot.slane %v2733, %v2746
        %v2748 = vcombine.high %v2740, %v2740
        %v2749 = vcombine.high %v2747, %v2747
        %v2751 = vunpack.c.l.s4 1966171168
        %v2752 = vunpack.c.0.s8 %v2751
        %v2753 = vlaneseq
        %v2754 = vshrl.u32 %v2753, 7
        %v2755 = vsub.s32 %v2752, %v2754
        %v2756 = vrot.slane %v2740, %v2755
        %v2758 = vunpack.c.l.s4 1966171168
        %v2759 = vunpack.c.0.s8 %v2758
        %v2760 = vlaneseq
        %v2761 = vshrl.u32 %v2760, 7
        %v2762 = vsub.s32 %v2759, %v2761
        %v2763 = vrot.slane %v2747, %v2762
        %v2765 = vunpack.c.l.s4 1966171168
        %v2766 = vunpack.c.0.s8 %v2765
        %v2767 = vlaneseq
        %v2768 = vshrl.u32 %v2767, 7
        %v2769 = vsub.s32 %v2766, %v2768
        %v2770 = vrot.slane %v2748, %v2769
        %v2772 = vunpack.c.l.s4 1966171168
        %v2773 = vunpack.c.0.s8 %v2772
        %v2774 = vlaneseq
        %v2775 = vshrl.u32 %v2774, 7
        %v2776 = vsub.s32 %v2773, %v2775
        %v2777 = vrot.slane %v2749, %v2776
        %v2778 = vcombine.high %v2756, %v2756
        %v2779 = vcombine.high %v2763, %v2763
        %v2780 = vcombine.high %v2770, %v2770
        %v2781 = vcombine.high %v2777, %v2777
        %v2782 = vlaneseq
        %v2783 = vshrl.u32 %v2782, 7
        %v2784 = vsub.s32 0, %v2783
        %v2785 = vrot.slane %v2707, %v2784
        %v2786 = vlaneseq
        %v2787 = vshrl.u32 %v2786, 7
        %v2788 = vsub.s32 0, %v2787
        %v2789 = vrot.slane %v2721, %v2788
        %v2790 = vlaneseq
        %v2791 = vshrl.u32 %v2790, 7
        %v2792 = vsub.s32 0, %v2791
        %v2793 = vrot.slane %v2729, %v2792
        %v2794 = vlaneseq
        %v2795 = vshrl.u32 %v2794, 7
        %v2796 = vsub.s32 0, %v2795
        %v2797 = vrot.slane %v2731, %v2796
        %v2798 = vlaneseq
        %v2799 = vshrl.u32 %v2798, 7
        %v2800 = vsub.s32 0, %v2799
        %v2801 = vrot.slane %v2714, %v2800
        %v2802 = vlaneseq
        %v2803 = vshrl.u32 %v2802, 7
        %v2804 = vsub.s32 0, %v2803
        %v2805 = vrot.slane %v2728, %v2804
        %v2806 = vlaneseq
        %v2807 = vshrl.u32 %v2806, 7
        %v2808 = vsub.s32 0, %v2807
        %v2809 = vrot.slane %v2730, %v2808
        %v2810 = vlaneseq
        %v2811 = vshrl.u32 %v2810, 7
        %v2812 = vsub.s32 0, %v2811
        %v2813 = vrot.slane %v2732, %v2812
        %v2814 = vlaneseq
        %v2815 = vshrl.u32 %v2814, 7
        %v2816 = vsub.s32 0, %v2815
        %v2817 = vrot.slane %v2756, %v2816
        %v2818 = vlaneseq
        %v2819 = vshrl.u32 %v2818, 7
        %v2820 = vsub.s32 0, %v2819
        %v2821 = vrot.slane %v2770, %v2820
        %v2822 = vlaneseq
        %v2823 = vshrl.u32 %v2822, 7
        %v2824 = vsub.s32 0, %v2823
        %v2825 = vrot.slane %v2778, %v2824
        %v2826 = vlaneseq
        %v2827 = vshrl.u32 %v2826, 7
        %v2828 = vsub.s32 0, %v2827
        %v2829 = vrot.slane %v2780, %v2828
        %v2830 = vlaneseq
        %v2831 = vshrl.u32 %v2830, 7
        %v2832 = vsub.s32 0, %v2831
        %v2833 = vrot.slane %v2763, %v2832
        %v2834 = vlaneseq
        %v2835 = vshrl.u32 %v2834, 7
        %v2836 = vsub.s32 0, %v2835
        %v2837 = vrot.slane %v2777, %v2836
        %v2838 = vlaneseq
        %v2839 = vshrl.u32 %v2838, 7
        %v2840 = vsub.s32 0, %v2839
        %v2841 = vrot.slane %v2779, %v2840
        %v2842 = vlaneseq
        %v2843 = vshrl.u32 %v2842, 7
        %v2844 = vsub.s32 0, %v2843
        %v2845 = vrot.slane %v2781, %v2844
        %2846 = vrot.lane.b32.xlu0 %v2785, 32
        %v2847 = vpop.permute.xlu0 %2846
        %2848 = vrot.lane.b32.xlu0 %v2789, 32
        %v2849 = vpop.permute.xlu0 %2848
        %2850 = vrot.lane.b32.xlu0 %v2793, 32
        %v2851 = vpop.permute.xlu0 %2850
        %2852 = vrot.lane.b32.xlu0 %v2797, 32
        %v2853 = vpop.permute.xlu0 %2852
        %2854 = vrot.lane.b32.xlu0 %v2801, 32
        %v2855 = vpop.permute.xlu0 %2854
        %2856 = vrot.lane.b32.xlu0 %v2805, 32
        %v2857 = vpop.permute.xlu0 %2856
        %2858 = vrot.lane.b32.xlu0 %v2809, 32
        %v2859 = vpop.permute.xlu0 %2858
        %2860 = vrot.lane.b32.xlu0 %v2813, 32
        %v2861 = vpop.permute.xlu0 %2860
        %2862 = vrot.lane.b32.xlu0 %v2817, 32
        %v2863 = vpop.permute.xlu0 %2862
        %2864 = vrot.lane.b32.xlu0 %v2821, 32
        %v2865 = vpop.permute.xlu0 %2864
        %2866 = vrot.lane.b32.xlu0 %v2825, 32
        %v2867 = vpop.permute.xlu0 %2866
        %2868 = vrot.lane.b32.xlu0 %v2829, 32
        %v2869 = vpop.permute.xlu0 %2868
        %2870 = vrot.lane.b32.xlu0 %v2833, 32
        %v2871 = vpop.permute.xlu0 %2870
        %2872 = vrot.lane.b32.xlu0 %v2837, 32
        %v2873 = vpop.permute.xlu0 %2872
        %2874 = vrot.lane.b32.xlu0 %v2841, 32
        %v2875 = vpop.permute.xlu0 %2874
        %2876 = vrot.lane.b32.xlu0 %v2845, 32
        %v2877 = vpop.permute.xlu0 %2876
        %2894 = vst.msk [vmem:[%s362 + $0x5] sm:$0x1] %vm1018, %v2847
        %2895 = vst.msk [vmem:[%s362 + $0xd] sm:$0x1] %vm1018, %v2849
        %2896 = vst.msk [vmem:[%s362 + $0x15] sm:$0x1] %vm1018, %v2851
        %2897 = vst.msk [vmem:[%s362 + $0x1d] sm:$0x1] %vm1018, %v2853
        %2898 = vst.msk [vmem:[%s362 + $0x25] sm:$0x1] %vm1018, %v2855
        %2899 = vst.msk [vmem:[%s362 + $0x2d] sm:$0x1] %vm1018, %v2857
        %2900 = vst.msk [vmem:[%s362 + $0x35] sm:$0x1] %vm1018, %v2859
        %2901 = vst.msk [vmem:[%s362 + $0x3d] sm:$0x1] %vm1018, %v2861
        %2902 = vst.msk [vmem:[%s362 + $0x45] sm:$0x1] %vm1018, %v2863
        %2903 = vst.msk [vmem:[%s362 + $0x4d] sm:$0x1] %vm1018, %v2865
        %2904 = vst.msk [vmem:[%s362 + $0x55] sm:$0x1] %vm1018, %v2867
        %2905 = vst.msk [vmem:[%s362 + $0x5d] sm:$0x1] %vm1018, %v2869
        %2906 = vst.msk [vmem:[%s362 + $0x65] sm:$0x1] %vm1018, %v2871
        %2907 = vst.msk [vmem:[%s362 + $0x6d] sm:$0x1] %vm1018, %v2873
        %2908 = vst.msk [vmem:[%s362 + $0x75] sm:$0x1] %vm1018, %v2875
        %2909 = vst.msk [vmem:[%s362 + $0x7d] sm:$0x1] %vm1018, %v2877
        %v2910 = vld [vmem:[#allocation2 + $0x60] sm:$0xff]
        %v2911 = vld [vmem:[#allocation2 + $0x68] sm:$0xff]
        %2914 = vrot.lane.b32.xlu0 %v2678, 32
        %v2915 = vpop.permute.xlu0 %2914
        %2916 = vrot.lane.b32.xlu0 %v2679, 32
        %v2917 = vpop.permute.xlu0 %2916
        %v2918 = vsel %vm414, %v2915, 0
        %v2920 = vsel %vm414, %v2917, 0
        %2922 = vmatprep.subr.mxu0 0.0
        %2923 = vmatpush1.msra.mxu0 %v628
        %2924 = vmatprep.subr.mxu0 0.0
        %2925 = vmatpush1.msra.mxu0 %v629
        %2926 = vmatprep.subr.mxu0 0.0
        %2927 = vmatpush1.msra.mxu0 %v630
        %2928 = vmatprep.subr.mxu0 0.0
        %2929 = vmatpush1.msra.mxu0 %v631
        %2930 = vmatprep.subr.mxu0 0.0
        %2931 = vmatpush1.msra.mxu0 0.0
        %2932 = vmatprep.subr.mxu0 0.0
        %2933 = vmatpush1.msra.mxu0 0.0
        %2934 = vmatprep.subr.mxu0 0.0
        %2935 = vmatpush1.msra.mxu0 0.0
        %2936 = vmatprep.subr.mxu0 0.0
        %2937 = vmatpush1.msra.mxu0 0.0
        %2938 = vmatprep.subr.mxu0 0.0
        %2939 = vmatpush1.msra.mxu0 0.0
        %2940 = vmatprep.subr.mxu0 0.0
        %2941 = vmatpush1.msra.mxu0 0.0
        %2942 = vmatprep.subr.mxu0 0.0
        %2943 = vmatpush1.msra.mxu0 0.0
        %2944 = vmatprep.subr.mxu0 0.0
        %2945 = vmatpush1.msra.mxu0 0.0
        %2946 = vmatprep.subr.mxu0 0.0
        %2947 = vmatpush1.msra.mxu0 0.0
        %2948 = vmatprep.subr.mxu0 0.0
        %2949 = vmatpush1.msra.mxu0 0.0
        %2950 = vmatprep.subr.mxu0 0.0
        %2951 = vmatpush1.msra.mxu0 0.0
        %2952 = vmatprep.subr.mxu0 0.0
        %2953 = vmatpush1.msra.mxu0 0.0
        %2954 = vmatprep.subr.mxu0 0.0
        %2955 = vmatpush1.msra.mxu0 0.0
        %2956 = vmatprep.subr.mxu0 0.0
        %2957 = vmatpush1.msra.mxu0 0.0
        %2958 = vmatprep.subr.mxu0 0.0
        %2959 = vmatpush1.msra.mxu0 0.0
        %2960 = vmatprep.subr.mxu0 0.0
        %2961 = vmatpush1.msra.mxu0 0.0
        %2962 = vmatprep.subr.mxu0 0.0
        %2963 = vmatpush1.msra.mxu0 0.0
        %2964 = vmatprep.subr.mxu0 0.0
        %2965 = vmatpush1.msra.mxu0 0.0
        %2966 = vmatprep.subr.mxu0 0.0
        %2967 = vmatpush1.msra.mxu0 0.0
        %2968 = vmatprep.subr.mxu0 0.0
        %2969 = vmatpush1.msra.mxu0 0.0
        %2970 = vmatprep.subr.mxu0 0.0
        %2971 = vmatpush1.msra.mxu0 0.0
        %2972 = vmatprep.subr.mxu0 0.0
        %2973 = vmatpush1.msra.mxu0 0.0
        %2974 = vmatprep.subr.mxu0 0.0
        %2975 = vmatpush1.msra.mxu0 0.0
        %2976 = vmatprep.subr.mxu0 0.0
        %2977 = vmatpush1.msra.mxu0 0.0
        %2978 = vmatprep.subr.mxu0 0.0
        %2979 = vmatpush1.msra.mxu0 0.0
        %2980 = vmatprep.subr.mxu0 0.0
        %2981 = vmatpush1.msra.mxu0 0.0
        %2982 = vmatprep.subr.mxu0 0.0
        %2983 = vmatpush1.msra.mxu0 0.0
        %2984 = vmatprep.subr.mxu0 0.0
        %2985 = vmatpush1.msra.mxu0 0.0
        %2986 = vmatprep.mubr.f32.mxu0 0.0
        %2987 = vmatmul.mubr.f32.gmra.mrb[0].mxu0 %v2918
        %v2988 = vpop.f32.mrb[0].mxu0
        %v2989 = vadd.f32 0.0, %v2988
        %v2990 = vpop.f32.mrb[0].mxu0
        %2991 = vmatprep.mubr.f32.mxu0 0.0
        %2992 = vmatmul.mubr.f32.gmra.mrb[0].mxu0 %v2920
        %v2993 = vpop.f32.mrb[0].mxu0
        %v2994 = vadd.f32 0.0, %v2993
        %v2995 = vpop.f32.mrb[0].mxu0
        %2996 = vdwg.mxu0
        %v2997 = vadd.f32 %v2910, %v2989
        %v2998 = vadd.f32 %v2911, %v2994
        %v2999 = vmul.f32 %v2997, 0.5
        %v3000 = vmul.f32 %v2998, 0.5
        %v3001 = vtanh.pop %v2999
        %v3002 = vtanh.pop %v3000
        %v3003 = vadd.f32 %v3001, 1.0
        %v3004 = vadd.f32 %v3002, 1.0
        %v3005 = vmul.f32 %v3003, 0.5
        %v3006 = vmul.f32 %v3004, 0.5
        %v3007 = vtanh.pop %v2997
        %v3008 = vtanh.pop %v2998
        %v3009 = vmul.f32 %v3005, %v2676
        %v3010 = vmul.f32 %v3006, %v2677
        %3013 = vrot.lane.b32.xlu0 %v3007, 64
        %v3014 = vpop.permute.xlu0 %3013
        %3015 = vrot.lane.b32.xlu0 %v3008, 64
        %v3016 = vpop.permute.xlu0 %3015
        %v3019 = vmul.f32 %v3005, %v3014
        %v3020 = vmul.f32 %v3006, %v3016
        %3023 = vrot.lane.b32.xlu0 %v3019, 32
        %v3024 = vpop.permute.xlu0 %3023
        %3025 = vrot.lane.b32.xlu0 %v3020, 32
        %v3026 = vpop.permute.xlu0 %3025
        %v3029 = vadd.f32 %v3009, %v3024
        %v3030 = vadd.f32 %v3010, %v3026
        %v3031 = vtanh.pop %v3029
        %v3032 = vtanh.pop %v3030
        %3035 = vrot.lane.b32.xlu0 %v3031, 64
        %v3036 = vpop.permute.xlu0 %3035
        %3037 = vrot.lane.b32.xlu0 %v3032, 64
        %v3038 = vpop.permute.xlu0 %3037
        %v3041 = vmul.f32 %v3005, %v3036
        %v3042 = vmul.f32 %v3006, %v3038
        %3043 = vset.pattern.permute.xlu0 6
        %3044 = vperm.xlu0 %3043, %v784
        %v3045 = vpop.permute.xlu0 %3044
        %3046 = vset.pattern.permute.xlu0 6
        %3047 = vperm.xlu0 %3046, %v785
        %v3048 = vpop.permute.xlu0 %3047
        %vm3049 = vcmp.eq.s32.totalorder %v3045, 1
        %vm3050 = vcmp.eq.s32.totalorder %v3048, 1
        %v3051 = vsel %vm3049, %v3029, %v2676
        %v3052 = vsel %vm3050, %v3030, %v2677
        %v3053 = vsel %vm3049, %v3041, %v2678
        %v3054 = vsel %vm3050, %v3042, %v2679
        %v3055 = vsel %vm3049, %v3041, 0.0
        %v3056 = vsel %vm3050, %v3042, 0.0
        %v3059 = vcombine.high %v3055, %v3055
        %v3061 = vunpack.c.l.s4 1966171168
        %v3062 = vunpack.c.0.s8 %v3061
        %v3063 = vlaneseq
        %v3064 = vshrl.u32 %v3063, 7
        %v3065 = vsub.s32 %v3062, %v3064
        %v3066 = vrot.slane %v3055, %v3065
        %v3068 = vunpack.c.l.s4 1966171168
        %v3069 = vunpack.c.0.s8 %v3068
        %v3070 = vlaneseq
        %v3071 = vshrl.u32 %v3070, 7
        %v3072 = vsub.s32 %v3069, %v3071
        %v3073 = vrot.slane %v3059, %v3072
        %v3074 = vcombine.high %v3066, %v3066
        %v3075 = vcombine.high %v3073, %v3073
        %v3077 = vunpack.c.l.s4 1966171168
        %v3078 = vunpack.c.0.s8 %v3077
        %v3079 = vlaneseq
        %v3080 = vshrl.u32 %v3079, 7
        %v3081 = vsub.s32 %v3078, %v3080
        %v3082 = vrot.slane %v3066, %v3081
        %v3084 = vunpack.c.l.s4 1966171168
        %v3085 = vunpack.c.0.s8 %v3084
        %v3086 = vlaneseq
        %v3087 = vshrl.u32 %v3086, 7
        %v3088 = vsub.s32 %v3085, %v3087
        %v3089 = vrot.slane %v3073, %v3088
        %v3091 = vunpack.c.l.s4 1966171168
        %v3092 = vunpack.c.0.s8 %v3091
        %v3093 = vlaneseq
        %v3094 = vshrl.u32 %v3093, 7
        %v3095 = vsub.s32 %v3092, %v3094
        %v3096 = vrot.slane %v3074, %v3095
        %v3098 = vunpack.c.l.s4 1966171168
        %v3099 = vunpack.c.0.s8 %v3098
        %v3100 = vlaneseq
        %v3101 = vshrl.u32 %v3100, 7
        %v3102 = vsub.s32 %v3099, %v3101
        %v3103 = vrot.slane %v3075, %v3102
        %v3104 = vcombine.high %v3082, %v3082
        %v3105 = vcombine.high %v3089, %v3089
        %v3106 = vcombine.high %v3096, %v3096
        %v3107 = vcombine.high %v3103, %v3103
        %v3108 = vcombine.high %v3056, %v3056
        %v3110 = vunpack.c.l.s4 1966171168
        %v3111 = vunpack.c.0.s8 %v3110
        %v3112 = vlaneseq
        %v3113 = vshrl.u32 %v3112, 7
        %v3114 = vsub.s32 %v3111, %v3113
        %v3115 = vrot.slane %v3056, %v3114
        %v3117 = vunpack.c.l.s4 1966171168
        %v3118 = vunpack.c.0.s8 %v3117
        %v3119 = vlaneseq
        %v3120 = vshrl.u32 %v3119, 7
        %v3121 = vsub.s32 %v3118, %v3120
        %v3122 = vrot.slane %v3108, %v3121
        %v3123 = vcombine.high %v3115, %v3115
        %v3124 = vcombine.high %v3122, %v3122
        %v3126 = vunpack.c.l.s4 1966171168
        %v3127 = vunpack.c.0.s8 %v3126
        %v3128 = vlaneseq
        %v3129 = vshrl.u32 %v3128, 7
        %v3130 = vsub.s32 %v3127, %v3129
        %v3131 = vrot.slane %v3115, %v3130
        %v3133 = vunpack.c.l.s4 1966171168
        %v3134 = vunpack.c.0.s8 %v3133
        %v3135 = vlaneseq
        %v3136 = vshrl.u32 %v3135, 7
        %v3137 = vsub.s32 %v3134, %v3136
        %v3138 = vrot.slane %v3122, %v3137
        %v3140 = vunpack.c.l.s4 1966171168
        %v3141 = vunpack.c.0.s8 %v3140
        %v3142 = vlaneseq
        %v3143 = vshrl.u32 %v3142, 7
        %v3144 = vsub.s32 %v3141, %v3143
        %v3145 = vrot.slane %v3123, %v3144
        %v3147 = vunpack.c.l.s4 1966171168
        %v3148 = vunpack.c.0.s8 %v3147
        %v3149 = vlaneseq
        %v3150 = vshrl.u32 %v3149, 7
        %v3151 = vsub.s32 %v3148, %v3150
        %v3152 = vrot.slane %v3124, %v3151
        %v3153 = vcombine.high %v3131, %v3131
        %v3154 = vcombine.high %v3138, %v3138
        %v3155 = vcombine.high %v3145, %v3145
        %v3156 = vcombine.high %v3152, %v3152
        %v3157 = vlaneseq
        %v3158 = vshrl.u32 %v3157, 7
        %v3159 = vsub.s32 0, %v3158
        %v3160 = vrot.slane %v3082, %v3159
        %v3161 = vlaneseq
        %v3162 = vshrl.u32 %v3161, 7
        %v3163 = vsub.s32 0, %v3162
        %v3164 = vrot.slane %v3096, %v3163
        %v3165 = vlaneseq
        %v3166 = vshrl.u32 %v3165, 7
        %v3167 = vsub.s32 0, %v3166
        %v3168 = vrot.slane %v3104, %v3167
        %v3169 = vlaneseq
        %v3170 = vshrl.u32 %v3169, 7
        %v3171 = vsub.s32 0, %v3170
        %v3172 = vrot.slane %v3106, %v3171
        %v3173 = vlaneseq
        %v3174 = vshrl.u32 %v3173, 7
        %v3175 = vsub.s32 0, %v3174
        %v3176 = vrot.slane %v3089, %v3175
        %v3177 = vlaneseq
        %v3178 = vshrl.u32 %v3177, 7
        %v3179 = vsub.s32 0, %v3178
        %v3180 = vrot.slane %v3103, %v3179
        %v3181 = vlaneseq
        %v3182 = vshrl.u32 %v3181, 7
        %v3183 = vsub.s32 0, %v3182
        %v3184 = vrot.slane %v3105, %v3183
        %v3185 = vlaneseq
        %v3186 = vshrl.u32 %v3185, 7
        %v3187 = vsub.s32 0, %v3186
        %v3188 = vrot.slane %v3107, %v3187
        %v3189 = vlaneseq
        %v3190 = vshrl.u32 %v3189, 7
        %v3191 = vsub.s32 0, %v3190
        %v3192 = vrot.slane %v3131, %v3191
        %v3193 = vlaneseq
        %v3194 = vshrl.u32 %v3193, 7
        %v3195 = vsub.s32 0, %v3194
        %v3196 = vrot.slane %v3145, %v3195
        %v3197 = vlaneseq
        %v3198 = vshrl.u32 %v3197, 7
        %v3199 = vsub.s32 0, %v3198
        %v3200 = vrot.slane %v3153, %v3199
        %v3201 = vlaneseq
        %v3202 = vshrl.u32 %v3201, 7
        %v3203 = vsub.s32 0, %v3202
        %v3204 = vrot.slane %v3155, %v3203
        %v3205 = vlaneseq
        %v3206 = vshrl.u32 %v3205, 7
        %v3207 = vsub.s32 0, %v3206
        %v3208 = vrot.slane %v3138, %v3207
        %v3209 = vlaneseq
        %v3210 = vshrl.u32 %v3209, 7
        %v3211 = vsub.s32 0, %v3210
        %v3212 = vrot.slane %v3152, %v3211
        %v3213 = vlaneseq
        %v3214 = vshrl.u32 %v3213, 7
        %v3215 = vsub.s32 0, %v3214
        %v3216 = vrot.slane %v3154, %v3215
        %v3217 = vlaneseq
        %v3218 = vshrl.u32 %v3217, 7
        %v3219 = vsub.s32 0, %v3218
        %v3220 = vrot.slane %v3156, %v3219
        %3221 = vrot.lane.b32.xlu0 %v3160, 32
        %v3222 = vpop.permute.xlu0 %3221
        %3223 = vrot.lane.b32.xlu0 %v3164, 32
        %v3224 = vpop.permute.xlu0 %3223
        %3225 = vrot.lane.b32.xlu0 %v3168, 32
        %v3226 = vpop.permute.xlu0 %3225
        %3227 = vrot.lane.b32.xlu0 %v3172, 32
        %v3228 = vpop.permute.xlu0 %3227
        %3229 = vrot.lane.b32.xlu0 %v3176, 32
        %v3230 = vpop.permute.xlu0 %3229
        %3231 = vrot.lane.b32.xlu0 %v3180, 32
        %v3232 = vpop.permute.xlu0 %3231
        %3233 = vrot.lane.b32.xlu0 %v3184, 32
        %v3234 = vpop.permute.xlu0 %3233
        %3235 = vrot.lane.b32.xlu0 %v3188, 32
        %v3236 = vpop.permute.xlu0 %3235
        %3237 = vrot.lane.b32.xlu0 %v3192, 32
        %v3238 = vpop.permute.xlu0 %3237
        %3239 = vrot.lane.b32.xlu0 %v3196, 32
        %v3240 = vpop.permute.xlu0 %3239
        %3241 = vrot.lane.b32.xlu0 %v3200, 32
        %v3242 = vpop.permute.xlu0 %3241
        %3243 = vrot.lane.b32.xlu0 %v3204, 32
        %v3244 = vpop.permute.xlu0 %3243
        %3245 = vrot.lane.b32.xlu0 %v3208, 32
        %v3246 = vpop.permute.xlu0 %3245
        %3247 = vrot.lane.b32.xlu0 %v3212, 32
        %v3248 = vpop.permute.xlu0 %3247
        %3249 = vrot.lane.b32.xlu0 %v3216, 32
        %v3250 = vpop.permute.xlu0 %3249
        %3251 = vrot.lane.b32.xlu0 %v3220, 32
        %v3252 = vpop.permute.xlu0 %3251
        %3269 = vst.msk [vmem:[%s362 + $0x6] sm:$0x1] %vm1018, %v3222
        %3270 = vst.msk [vmem:[%s362 + $0xe] sm:$0x1] %vm1018, %v3224
        %3271 = vst.msk [vmem:[%s362 + $0x16] sm:$0x1] %vm1018, %v3226
        %3272 = vst.msk [vmem:[%s362 + $0x1e] sm:$0x1] %vm1018, %v3228
        %3273 = vst.msk [vmem:[%s362 + $0x26] sm:$0x1] %vm1018, %v3230
        %3274 = vst.msk [vmem:[%s362 + $0x2e] sm:$0x1] %vm1018, %v3232
        %3275 = vst.msk [vmem:[%s362 + $0x36] sm:$0x1] %vm1018, %v3234
        %3276 = vst.msk [vmem:[%s362 + $0x3e] sm:$0x1] %vm1018, %v3236
        %3277 = vst.msk [vmem:[%s362 + $0x46] sm:$0x1] %vm1018, %v3238
        %3278 = vst.msk [vmem:[%s362 + $0x4e] sm:$0x1] %vm1018, %v3240
        %3279 = vst.msk [vmem:[%s362 + $0x56] sm:$0x1] %vm1018, %v3242
        %3280 = vst.msk [vmem:[%s362 + $0x5e] sm:$0x1] %vm1018, %v3244
        %3281 = vst.msk [vmem:[%s362 + $0x66] sm:$0x1] %vm1018, %v3246
        %3282 = vst.msk [vmem:[%s362 + $0x6e] sm:$0x1] %vm1018, %v3248
        %3283 = vst.msk [vmem:[%s362 + $0x76] sm:$0x1] %vm1018, %v3250
        %3284 = vst.msk [vmem:[%s362 + $0x7e] sm:$0x1] %vm1018, %v3252
        %v3285 = vld [vmem:[#allocation2 + $0x70] sm:$0xff]
        %v3286 = vld [vmem:[#allocation2 + $0x78] sm:$0xff]
        %3289 = vrot.lane.b32.xlu0 %v3053, 32
        %v3290 = vpop.permute.xlu0 %3289
        %3291 = vrot.lane.b32.xlu0 %v3054, 32
        %v3292 = vpop.permute.xlu0 %3291
        %v3293 = vsel %vm414, %v3290, 0
        %v3295 = vsel %vm414, %v3292, 0
        %3297 = vmatprep.subr.mxu0 0.0
        %3298 = vmatpush1.msra.mxu0 %v628
        %3299 = vmatprep.subr.mxu0 0.0
        %3300 = vmatpush1.msra.mxu0 %v629
        %3301 = vmatprep.subr.mxu0 0.0
        %3302 = vmatpush1.msra.mxu0 %v630
        %3303 = vmatprep.subr.mxu0 0.0
        %3304 = vmatpush1.msra.mxu0 %v631
        %3305 = vmatprep.subr.mxu0 0.0
        %3306 = vmatpush1.msra.mxu0 0.0
        %3307 = vmatprep.subr.mxu0 0.0
        %3308 = vmatpush1.msra.mxu0 0.0
        %3309 = vmatprep.subr.mxu0 0.0
        %3310 = vmatpush1.msra.mxu0 0.0
        %3311 = vmatprep.subr.mxu0 0.0
        %3312 = vmatpush1.msra.mxu0 0.0
        %3313 = vmatprep.subr.mxu0 0.0
        %3314 = vmatpush1.msra.mxu0 0.0
        %3315 = vmatprep.subr.mxu0 0.0
        %3316 = vmatpush1.msra.mxu0 0.0
        %3317 = vmatprep.subr.mxu0 0.0
        %3318 = vmatpush1.msra.mxu0 0.0
        %3319 = vmatprep.subr.mxu0 0.0
        %3320 = vmatpush1.msra.mxu0 0.0
        %3321 = vmatprep.subr.mxu0 0.0
        %3322 = vmatpush1.msra.mxu0 0.0
        %3323 = vmatprep.subr.mxu0 0.0
        %3324 = vmatpush1.msra.mxu0 0.0
        %3325 = vmatprep.subr.mxu0 0.0
        %3326 = vmatpush1.msra.mxu0 0.0
        %3327 = vmatprep.subr.mxu0 0.0
        %3328 = vmatpush1.msra.mxu0 0.0
        %3329 = vmatprep.subr.mxu0 0.0
        %3330 = vmatpush1.msra.mxu0 0.0
        %3331 = vmatprep.subr.mxu0 0.0
        %3332 = vmatpush1.msra.mxu0 0.0
        %3333 = vmatprep.subr.mxu0 0.0
        %3334 = vmatpush1.msra.mxu0 0.0
        %3335 = vmatprep.subr.mxu0 0.0
        %3336 = vmatpush1.msra.mxu0 0.0
        %3337 = vmatprep.subr.mxu0 0.0
        %3338 = vmatpush1.msra.mxu0 0.0
        %3339 = vmatprep.subr.mxu0 0.0
        %3340 = vmatpush1.msra.mxu0 0.0
        %3341 = vmatprep.subr.mxu0 0.0
        %3342 = vmatpush1.msra.mxu0 0.0
        %3343 = vmatprep.subr.mxu0 0.0
        %3344 = vmatpush1.msra.mxu0 0.0
        %3345 = vmatprep.subr.mxu0 0.0
        %3346 = vmatpush1.msra.mxu0 0.0
        %3347 = vmatprep.subr.mxu0 0.0
        %3348 = vmatpush1.msra.mxu0 0.0
        %3349 = vmatprep.subr.mxu0 0.0
        %3350 = vmatpush1.msra.mxu0 0.0
        %3351 = vmatprep.subr.mxu0 0.0
        %3352 = vmatpush1.msra.mxu0 0.0
        %3353 = vmatprep.subr.mxu0 0.0
        %3354 = vmatpush1.msra.mxu0 0.0
        %3355 = vmatprep.subr.mxu0 0.0
        %3356 = vmatpush1.msra.mxu0 0.0
        %3357 = vmatprep.subr.mxu0 0.0
        %3358 = vmatpush1.msra.mxu0 0.0
        %3359 = vmatprep.subr.mxu0 0.0
        %3360 = vmatpush1.msra.mxu0 0.0
        %3361 = vmatprep.mubr.f32.mxu0 0.0
        %3362 = vmatmul.mubr.f32.gmra.mrb[0].mxu0 %v3293
        %v3363 = vpop.f32.mrb[0].mxu0
        %v3364 = vadd.f32 0.0, %v3363
        %v3365 = vpop.f32.mrb[0].mxu0
        %3366 = vmatprep.mubr.f32.mxu0 0.0
        %3367 = vmatmul.mubr.f32.gmra.mrb[0].mxu0 %v3295
        %v3368 = vpop.f32.mrb[0].mxu0
        %v3369 = vadd.f32 0.0, %v3368
        %v3370 = vpop.f32.mrb[0].mxu0
        %3371 = vdwg.mxu0
        %v3372 = vadd.f32 %v3285, %v3364
        %v3373 = vadd.f32 %v3286, %v3369
        %v3374 = vmul.f32 %v3372, 0.5
        %v3375 = vmul.f32 %v3373, 0.5
        %v3376 = vtanh.pop %v3374
        %v3377 = vtanh.pop %v3375
        %v3378 = vadd.f32 %v3376, 1.0
        %v3379 = vadd.f32 %v3377, 1.0
        %v3380 = vmul.f32 %v3378, 0.5
        %v3381 = vmul.f32 %v3379, 0.5
        %v3382 = vtanh.pop %v3372
        %v3383 = vtanh.pop %v3373
        %v3384 = vmul.f32 %v3380, %v3051
        %v3385 = vmul.f32 %v3381, %v3052
        %3388 = vrot.lane.b32.xlu0 %v3382, 64
        %v3389 = vpop.permute.xlu0 %3388
        %3390 = vrot.lane.b32.xlu0 %v3383, 64
        %v3391 = vpop.permute.xlu0 %3390
        %v3394 = vmul.f32 %v3380, %v3389
        %v3395 = vmul.f32 %v3381, %v3391
        %3398 = vrot.lane.b32.xlu0 %v3394, 32
        %v3399 = vpop.permute.xlu0 %3398
        %3400 = vrot.lane.b32.xlu0 %v3395, 32
        %v3401 = vpop.permute.xlu0 %3400
        %v3404 = vadd.f32 %v3384, %v3399
        %v3405 = vadd.f32 %v3385, %v3401
        %v3406 = vtanh.pop %v3404
        %v3407 = vtanh.pop %v3405
        %3410 = vrot.lane.b32.xlu0 %v3406, 64
        %v3411 = vpop.permute.xlu0 %3410
        %3412 = vrot.lane.b32.xlu0 %v3407, 64
        %v3413 = vpop.permute.xlu0 %3412
        %v3416 = vmul.f32 %v3380, %v3411
        %v3417 = vmul.f32 %v3381, %v3413
        %3418 = vset.pattern.permute.xlu0 7
        %3419 = vperm.xlu0 %3418, %v784
        %v3420 = vpop.permute.xlu0 %3419
        %3421 = vset.pattern.permute.xlu0 7
        %3422 = vperm.xlu0 %3421, %v785
        %v3423 = vpop.permute.xlu0 %3422
        %vm3424 = vcmp.eq.s32.totalorder %v3420, 1
        %vm3425 = vcmp.eq.s32.totalorder %v3423, 1
        %v3426 = vsel %vm3424, %v3404, %v3051
        %v3427 = vsel %vm3425, %v3405, %v3052
        %v3428 = vsel %vm3424, %v3416, %v3053
        %v3429 = vsel %vm3425, %v3417, %v3054
        %v3430 = vsel %vm3424, %v3416, 0.0
        %v3431 = vsel %vm3425, %v3417, 0.0
        %v3434 = vcombine.high %v3430, %v3430
        %v3436 = vunpack.c.l.s4 1966171168
        %v3437 = vunpack.c.0.s8 %v3436
        %v3438 = vlaneseq
        %v3439 = vshrl.u32 %v3438, 7
        %v3440 = vsub.s32 %v3437, %v3439
        %v3441 = vrot.slane %v3430, %v3440
        %v3443 = vunpack.c.l.s4 1966171168
        %v3444 = vunpack.c.0.s8 %v3443
        %v3445 = vlaneseq
        %v3446 = vshrl.u32 %v3445, 7
        %v3447 = vsub.s32 %v3444, %v3446
        %v3448 = vrot.slane %v3434, %v3447
        %v3449 = vcombine.high %v3441, %v3441
        %v3450 = vcombine.high %v3448, %v3448
        %v3452 = vunpack.c.l.s4 1966171168
        %v3453 = vunpack.c.0.s8 %v3452
        %v3454 = vlaneseq
        %v3455 = vshrl.u32 %v3454, 7
        %v3456 = vsub.s32 %v3453, %v3455
        %v3457 = vrot.slane %v3441, %v3456
        %v3459 = vunpack.c.l.s4 1966171168
        %v3460 = vunpack.c.0.s8 %v3459
        %v3461 = vlaneseq
        %v3462 = vshrl.u32 %v3461, 7
        %v3463 = vsub.s32 %v3460, %v3462
        %v3464 = vrot.slane %v3448, %v3463
        %v3466 = vunpack.c.l.s4 1966171168
        %v3467 = vunpack.c.0.s8 %v3466
        %v3468 = vlaneseq
        %v3469 = vshrl.u32 %v3468, 7
        %v3470 = vsub.s32 %v3467, %v3469
        %v3471 = vrot.slane %v3449, %v3470
        %v3473 = vunpack.c.l.s4 1966171168
        %v3474 = vunpack.c.0.s8 %v3473
        %v3475 = vlaneseq
        %v3476 = vshrl.u32 %v3475, 7
        %v3477 = vsub.s32 %v3474, %v3476
        %v3478 = vrot.slane %v3450, %v3477
        %v3479 = vcombine.high %v3457, %v3457
        %v3480 = vcombine.high %v3464, %v3464
        %v3481 = vcombine.high %v3471, %v3471
        %v3482 = vcombine.high %v3478, %v3478
        %v3483 = vcombine.high %v3431, %v3431
        %v3485 = vunpack.c.l.s4 1966171168
        %v3486 = vunpack.c.0.s8 %v3485
        %v3487 = vlaneseq
        %v3488 = vshrl.u32 %v3487, 7
        %v3489 = vsub.s32 %v3486, %v3488
        %v3490 = vrot.slane %v3431, %v3489
        %v3492 = vunpack.c.l.s4 1966171168
        %v3493 = vunpack.c.0.s8 %v3492
        %v3494 = vlaneseq
        %v3495 = vshrl.u32 %v3494, 7
        %v3496 = vsub.s32 %v3493, %v3495
        %v3497 = vrot.slane %v3483, %v3496
        %v3498 = vcombine.high %v3490, %v3490
        %v3499 = vcombine.high %v3497, %v3497
        %v3501 = vunpack.c.l.s4 1966171168
        %v3502 = vunpack.c.0.s8 %v3501
        %v3503 = vlaneseq
        %v3504 = vshrl.u32 %v3503, 7
        %v3505 = vsub.s32 %v3502, %v3504
        %v3506 = vrot.slane %v3490, %v3505
        %v3508 = vunpack.c.l.s4 1966171168
        %v3509 = vunpack.c.0.s8 %v3508
        %v3510 = vlaneseq
        %v3511 = vshrl.u32 %v3510, 7
        %v3512 = vsub.s32 %v3509, %v3511
        %v3513 = vrot.slane %v3497, %v3512
        %v3515 = vunpack.c.l.s4 1966171168
        %v3516 = vunpack.c.0.s8 %v3515
        %v3517 = vlaneseq
        %v3518 = vshrl.u32 %v3517, 7
        %v3519 = vsub.s32 %v3516, %v3518
        %v3520 = vrot.slane %v3498, %v3519
        %v3522 = vunpack.c.l.s4 1966171168
        %v3523 = vunpack.c.0.s8 %v3522
        %v3524 = vlaneseq
        %v3525 = vshrl.u32 %v3524, 7
        %v3526 = vsub.s32 %v3523, %v3525
        %v3527 = vrot.slane %v3499, %v3526
        %v3528 = vcombine.high %v3506, %v3506
        %v3529 = vcombine.high %v3513, %v3513
        %v3530 = vcombine.high %v3520, %v3520
        %v3531 = vcombine.high %v3527, %v3527
        %v3532 = vlaneseq
        %v3533 = vshrl.u32 %v3532, 7
        %v3534 = vsub.s32 0, %v3533
        %v3535 = vrot.slane %v3457, %v3534
        %v3536 = vlaneseq
        %v3537 = vshrl.u32 %v3536, 7
        %v3538 = vsub.s32 0, %v3537
        %v3539 = vrot.slane %v3471, %v3538
        %v3540 = vlaneseq
        %v3541 = vshrl.u32 %v3540, 7
        %v3542 = vsub.s32 0, %v3541
        %v3543 = vrot.slane %v3479, %v3542
        %v3544 = vlaneseq
        %v3545 = vshrl.u32 %v3544, 7
        %v3546 = vsub.s32 0, %v3545
        %v3547 = vrot.slane %v3481, %v3546
        %v3548 = vlaneseq
        %v3549 = vshrl.u32 %v3548, 7
        %v3550 = vsub.s32 0, %v3549
        %v3551 = vrot.slane %v3464, %v3550
        %v3552 = vlaneseq
        %v3553 = vshrl.u32 %v3552, 7
        %v3554 = vsub.s32 0, %v3553
        %v3555 = vrot.slane %v3478, %v3554
        %v3556 = vlaneseq
        %v3557 = vshrl.u32 %v3556, 7
        %v3558 = vsub.s32 0, %v3557
        %v3559 = vrot.slane %v3480, %v3558
        %v3560 = vlaneseq
        %v3561 = vshrl.u32 %v3560, 7
        %v3562 = vsub.s32 0, %v3561
        %v3563 = vrot.slane %v3482, %v3562
        %v3564 = vlaneseq
        %v3565 = vshrl.u32 %v3564, 7
        %v3566 = vsub.s32 0, %v3565
        %v3567 = vrot.slane %v3506, %v3566
        %v3568 = vlaneseq
        %v3569 = vshrl.u32 %v3568, 7
        %v3570 = vsub.s32 0, %v3569
        %v3571 = vrot.slane %v3520, %v3570
        %v3572 = vlaneseq
        %v3573 = vshrl.u32 %v3572, 7
        %v3574 = vsub.s32 0, %v3573
        %v3575 = vrot.slane %v3528, %v3574
        %v3576 = vlaneseq
        %v3577 = vshrl.u32 %v3576, 7
        %v3578 = vsub.s32 0, %v3577
        %v3579 = vrot.slane %v3530, %v3578
        %v3580 = vlaneseq
        %v3581 = vshrl.u32 %v3580, 7
        %v3582 = vsub.s32 0, %v3581
        %v3583 = vrot.slane %v3513, %v3582
        %v3584 = vlaneseq
        %v3585 = vshrl.u32 %v3584, 7
        %v3586 = vsub.s32 0, %v3585
        %v3587 = vrot.slane %v3527, %v3586
        %v3588 = vlaneseq
        %v3589 = vshrl.u32 %v3588, 7
        %v3590 = vsub.s32 0, %v3589
        %v3591 = vrot.slane %v3529, %v3590
        %v3592 = vlaneseq
        %v3593 = vshrl.u32 %v3592, 7
        %v3594 = vsub.s32 0, %v3593
        %v3595 = vrot.slane %v3531, %v3594
        %3596 = vrot.lane.b32.xlu0 %v3535, 32
        %v3597 = vpop.permute.xlu0 %3596
        %3598 = vrot.lane.b32.xlu0 %v3539, 32
        %v3599 = vpop.permute.xlu0 %3598
        %3600 = vrot.lane.b32.xlu0 %v3543, 32
        %v3601 = vpop.permute.xlu0 %3600
        %3602 = vrot.lane.b32.xlu0 %v3547, 32
        %v3603 = vpop.permute.xlu0 %3602
        %3604 = vrot.lane.b32.xlu0 %v3551, 32
        %v3605 = vpop.permute.xlu0 %3604
        %3606 = vrot.lane.b32.xlu0 %v3555, 32
        %v3607 = vpop.permute.xlu0 %3606
        %3608 = vrot.lane.b32.xlu0 %v3559, 32
        %v3609 = vpop.permute.xlu0 %3608
        %3610 = vrot.lane.b32.xlu0 %v3563, 32
        %v3611 = vpop.permute.xlu0 %3610
        %3612 = vrot.lane.b32.xlu0 %v3567, 32
        %v3613 = vpop.permute.xlu0 %3612
        %3614 = vrot.lane.b32.xlu0 %v3571, 32
        %v3615 = vpop.permute.xlu0 %3614
        %3616 = vrot.lane.b32.xlu0 %v3575, 32
        %v3617 = vpop.permute.xlu0 %3616
        %3618 = vrot.lane.b32.xlu0 %v3579, 32
        %v3619 = vpop.permute.xlu0 %3618
        %3620 = vrot.lane.b32.xlu0 %v3583, 32
        %v3621 = vpop.permute.xlu0 %3620
        %3622 = vrot.lane.b32.xlu0 %v3587, 32
        %v3623 = vpop.permute.xlu0 %3622
        %3624 = vrot.lane.b32.xlu0 %v3591, 32
        %v3625 = vpop.permute.xlu0 %3624
        %3626 = vrot.lane.b32.xlu0 %v3595, 32
        %v3627 = vpop.permute.xlu0 %3626
        %3644 = vst.msk [vmem:[%s362 + $0x7] sm:$0x1] %vm1018, %v3597
        %3645 = vst.msk [vmem:[%s362 + $0xf] sm:$0x1] %vm1018, %v3599
        %3646 = vst.msk [vmem:[%s362 + $0x17] sm:$0x1] %vm1018, %v3601
        %3647 = vst.msk [vmem:[%s362 + $0x1f] sm:$0x1] %vm1018, %v3603
        %3648 = vst.msk [vmem:[%s362 + $0x27] sm:$0x1] %vm1018, %v3605
        %3649 = vst.msk [vmem:[%s362 + $0x2f] sm:$0x1] %vm1018, %v3607
        %3650 = vst.msk [vmem:[%s362 + $0x37] sm:$0x1] %vm1018, %v3609
        %3651 = vst.msk [vmem:[%s362 + $0x3f] sm:$0x1] %vm1018, %v3611
        %3652 = vst.msk [vmem:[%s362 + $0x47] sm:$0x1] %vm1018, %v3613
        %3653 = vst.msk [vmem:[%s362 + $0x4f] sm:$0x1] %vm1018, %v3615
        %3654 = vst.msk [vmem:[%s362 + $0x57] sm:$0x1] %vm1018, %v3617
        %3655 = vst.msk [vmem:[%s362 + $0x5f] sm:$0x1] %vm1018, %v3619
        %3656 = vst.msk [vmem:[%s362 + $0x67] sm:$0x1] %vm1018, %v3621
        %3657 = vst.msk [vmem:[%s362 + $0x6f] sm:$0x1] %vm1018, %v3623
        %3658 = vst.msk [vmem:[%s362 + $0x77] sm:$0x1] %vm1018, %v3625
        %3659 = vst.msk [vmem:[%s362 + $0x7f] sm:$0x1] %vm1018, %v3627
        %3662 = vrot.lane.b32.xlu0 %v3428, 32
        %v3663 = vpop.permute.xlu0 %3662
        %3664 = vrot.lane.b32.xlu0 %v3429, 32
        %v3665 = vpop.permute.xlu0 %3664
        %3668 = vst.msk [vmem:[#allocation10] sm:$0xff] %vm414, %v3663
        %3669 = vst.msk [vmem:[#allocation10 + $0x8] sm:$0xff] %vm414, %v3665
        %3672 = vrot.lane.b32.xlu0 %v3426, 96
        %v3673 = vpop.permute.xlu0 %3672
        %3674 = vrot.lane.b32.xlu0 %v3427, 96
        %v3675 = vpop.permute.xlu0 %3674
        %3678 = vst.msk [vmem:[#allocation12] sm:$0xff] %vm414, %v3673
        %3679 = vst.msk [vmem:[#allocation12 + $0x8] sm:$0xff] %vm414, %v3675
        %s3680 = sand.u32 %s166, 1
        %s3681 = scalar_lea.sflag [#allocation5], %s3680
        %s3682 = sand.u32 %s166, 1
        %s3683 = smul.addr %s3682, 128
        %s3684 = scalar_lea.vmem [#allocation9], %s3683
        // Predicated region
        $region57: #{tpu_custom_call.1} parent=39 // pred_check
          %p3685 = pneg %p176
        $region58: #{tpu_custom_call.1} parent=39 // pred_check_branch
          %3687 = sbr.rel (%p3685) target = $region60
        $region59: #{tpu_custom_call.1} parent=39 // pred_region
          %s3688 = smul.u32 16, %s31
          %s3690 = ssub.s32 2048, 2048
          %3691 = vsyncadd %s3681, %s3690
          %s3692 = smul.addr %s3688, 2
          %s3693 = sadd.s32 %s32, %s3692
          %s3694 = smul.addr %s3693, 128
          %s3695 = scalar_lea.hbm %s5, %s3694
          %s3696 = sshll.u32 %s3684, 4
          %s3697 = int_to_ptr.vmem [resolvable:$true] %s3696
          %3702 = dma.vmem_to_hbm [thread:$0]  %s3697, 2048, %s3695, %s3681, 128, 256, 8
        $region60: #{tpu_custom_call.1} parent=39 // pred_fallthru
          _
        // Predicated region
        $region61: #{tpu_custom_call.1} parent=39 // pred_check
          %p3703 = pneg %p202
        $region62: #{tpu_custom_call.1} parent=39 // pred_check_branch
          %3705 = sbr.rel (%p3703) target = $region64
        $region63: #{tpu_custom_call.1} parent=39 // pred_region
          %s3706 = smul.u32 2, %s31
          %s3708 = ssub.s32 256, 256
          %3709 = vsyncadd [#allocation11], %s3708
          %s3710 = smul.addr %s3706, 128
          %s3711 = scalar_lea.hbm %s6, %s3710
          %s3712 = sshll.u32 [#allocation10], 4
          %s3713 = int_to_ptr.vmem [resolvable:$true] %s3712
          %3718 = dma.vmem_to_hbm [thread:$0]  %s3713, 256, %s3711, [#allocation11], 128, 128, 8
        $region64: #{tpu_custom_call.1} parent=39 // pred_fallthru
          _
        // Predicated region
        $region65: #{tpu_custom_call.1} parent=39 // pred_check
          %p3719 = pneg %p228
        $region66: #{tpu_custom_call.1} parent=39 // pred_check_branch
          %3721 = sbr.rel (%p3719) target = $region68
        $region67: #{tpu_custom_call.1} parent=39 // pred_region
          %s3722 = smul.u32 2, %s31
          %s3724 = ssub.s32 256, 256
          %3725 = vsyncadd [#allocation11], %s3724
          %s3726 = smul.addr %s3722, 128
          %s3727 = scalar_lea.hbm %s7, %s3726
          %s3728 = sshll.u32 [#allocation12], 4
          %s3729 = int_to_ptr.vmem [resolvable:$true] %s3728
          %3734 = dma.vmem_to_hbm [thread:$0]  %s3729, 256, %s3727, [#allocation11], 128, 128, 8
        $region68: #{tpu_custom_call.1} parent=39 // pred_fallthru
          _
        // Predicated region
        $region69: #{tpu_custom_call.1} parent=39 // pred_check
          %p3735 = pneg %p202
        $region70: #{tpu_custom_call.1} parent=39 // pred_check_branch
          %3737 = sbr.rel (%p3735) target = $region72
        $region71: #{tpu_custom_call.1} parent=39 // pred_region
          %3738 = dma.done [#allocation11], 256
        $region72: #{tpu_custom_call.1} parent=39 // pred_fallthru
          _
        // Predicated region
        $region73: #{tpu_custom_call.1} parent=39 // pred_check
          %p3739 = pneg %p228
        $region74: #{tpu_custom_call.1} parent=39 // pred_check_branch
          %3741 = sbr.rel (%p3739) target = $region76
        $region75: #{tpu_custom_call.1} parent=39 // pred_region
          %3742 = dma.done [#allocation11], 256
        $region76: #{tpu_custom_call.1} parent=39 // pred_fallthru
          _
      $region40: #{tpu_custom_call.1} parent=5 // pred_fallthru
        _
      %p3743 = scmp.le.s32.totalorder 2, %s22
      // Predicated region
      $region77: #{tpu_custom_call.1} parent=5 // pred_check
        %p3744 = pneg %p3743
      $region78: #{tpu_custom_call.1} parent=5 // pred_check_branch
        %3746 = sbr.rel (%p3744) target = $region80
      $region79: #{tpu_custom_call.1} parent=5 // pred_region
        %s3747 = ssub.s32 %s22, 2
        // Predicated region
        $region81: #{tpu_custom_call.1} parent=79 // pred_check
          %p3748 = pneg %p182
        $region82: #{tpu_custom_call.1} parent=79 // pred_check_branch
          %3750 = sbr.rel (%p3748) target = $region84
        $region83: #{tpu_custom_call.1} parent=79 // pred_region
          %s3751 = sand.u32 %s167, 1
          %s3752 = scalar_lea.sflag [#allocation5], %s3751
          %s3753 = sand.u32 %s167, 1
          %s3754 = smul.addr %s3753, 128
          %s3755 = scalar_lea.vmem [#allocation9], %s3754
          %3756 = dma.done %s3752, 2048
        $region84: #{tpu_custom_call.1} parent=79 // pred_fallthru
          _
      $region80: #{tpu_custom_call.1} parent=5 // pred_fallthru
        _
    $region6: #{tpu_custom_call.1} parent=1 // loop_footer
      %s26 = sadd.s32 1, %s22
    $region7: #{tpu_custom_call.1} parent=1 // loop_footer_branch
      %21 = sbr.rel target = $region3
    $region8: #{tpu_custom_call.1} parent=1 // loop_exit
      _
    %3757 = vsyncpa [#allocation4], 1
    %s3758 = scalar_lea.sflag [#allocation4], 1
    %3759 = vsyncpa %s3758, 1
    %3760 = vsyncpa [#allocation7], 1
    %3761 = vsyncpa [#allocation5], 1
    %s3762 = scalar_lea.sflag [#allocation5], 1
    %3763 = vsyncpa %s3762, 1
    %3764 = vsyncpa [#allocation11], 1

</llo_original>
